<compile_context>
chip_gen: v7x
topology: tpu7x:2x2x1
jax: 0.10.0
libtpu: 0.0.40
codegen_flags: <defaults>
</compile_context>

<pallas_src>
import functools

import jax
import jax.numpy as jnp
from jax import lax
from jax.experimental import pallas as pl
from jax.experimental.pallas import tpu as pltpu


# ---------------------------------------------------------------------------
# Layer configuration (static, trace-time): shapes + valid-tap pruning.
# ---------------------------------------------------------------------------
def _layer_cfgs(H0, W0, layer_params, strides, pads, relu_out):
    cfgs = []
    H_in, W_in, C_in = H0, W0, 1
    for (w, _), s, p, r in zip(layer_params, strides, pads, relu_out):
        C_out, c_in, kh = w.shape
        assert c_in == C_in
        H_out = (H_in + 2 * p - kh) // s + 1
        W_out = W_in + 2 * p                       # kernel width is 1, stride 1 in W
        valid_k = tuple(k for k in range(kh)
                        if any(0 <= ho * s + k - p < H_in for ho in range(H_out)))
        cfgs.append(dict(kh=kh, stride=s, pad=p,
                         C_in=C_in, C_out=C_out,
                         H_in=H_in, W_in=W_in, H_out=H_out, W_out=W_out,
                         relu_out=r, valid_k=valid_k,
                         k_slot={k: j for j, k in enumerate(valid_k)}))
        H_in, W_in, C_in = H_out, W_out, C_out
    return cfgs


# ---------------------------------------------------------------------------
# Fused MPD kernel: one grid step = one batch sample, all 6 layers in VMEM.
# Feature maps are channels-last (H_out*W_out, C_out) slabs; each layer reads
# its input back from the previous layer's output ref.
# ---------------------------------------------------------------------------
def _mpd_fused_kernel(*refs, cfgs):
    nl = len(cfgs)
    x_ref = refs[0]                                   # (1, W0, H0) lane-transposed input
    w_refs = [refs[1 + 2 * l] for l in range(nl)]
    b_refs = [refs[2 + 2 * l] for l in range(nl)]
    f_refs = list(refs[1 + 2 * nl: 1 + 3 * nl])       # channels-last feature-map outputs

    for l, cfg in enumerate(cfgs):
        kh, s, p = cfg["kh"], cfg["stride"], cfg["pad"]
        C_in, C_out = cfg["C_in"], cfg["C_out"]
        H_in, W_in = cfg["H_in"], cfg["W_in"]
        H_out, W_out = cfg["H_out"], cfg["W_out"]
        N_out = H_out * W_out
        relu_out = cfg["relu_out"]
        f = f_refs[l]
        b = b_refs[l][...]                            # (1, C_out)

        # Every W-halo output column only sees zero padding, so its value is
        # exactly activation(bias).  Fill the whole slab once (lane-dense store);
        # core columns are overwritten below.
        halo = jnp.maximum(b, 0.0) if relu_out else b
        f[0, :, :] = jnp.broadcast_to(halo, (N_out, C_out))

        if l == 0:
            # Degenerate first layer (C_in == 1): per output row the valid taps
            # form a contiguous window of input rows.  Keep it on the VPU as a
            # few broadcasted outer products - no im2col, no MXU.
            xT = x_ref[0]                             # (W_in, H_in)  == (W0, H0)
            w0 = w_refs[0][...]                       # (kh, C_out)
            for ho in range(H_out):
                lo = ho * s - p
                h_start, h_end = max(0, lo), min(H_in, lo + kh)
                nk = h_end - h_start
                if nk <= 0:
                    continue
                y = None
                for j in range(nk):
                    col = xT[:, h_start + j:h_start + j + 1]        # (W_in, 1)
                    wk = w0[h_start - lo + j:h_start - lo + j + 1, :]  # (1, C_out)
                    c = col * wk                                     # (W_in, C_out)
                    y = c if y is None else y + c
                y = y + b
                if relu_out:
                    y = jnp.maximum(y, 0.0)
                f[0, pl.ds(ho * W_out + p, W_in), :] = y
            continue

        prev = f_refs[l - 1]                          # (1, H_in*W_in, C_in)
        consume_relu = not cfgs[l - 1]["relu_out"]    # hoisted ReLU: conv1 -> conv2
        k_slot = cfg["k_slot"]
        w = w_refs[l]                                 # (n_valid*C_in, C_out) or (n_valid, C_in)

        for ho in range(H_out):
            acc = None
            for k in range(kh):
                hi = ho * s + k - p
                if not (0 <= hi < H_in):
                    continue                          # pruned zero tap
                j = k_slot[k]
                a = prev[0, pl.ds(hi * W_in, W_in), :]            # (W_in, C_in)
                if consume_relu:
                    a = jnp.maximum(a, 0.0)
                if C_out == 1:
                    # Final 1-channel conv: VPU multiply + lane reduction
                    # instead of a 1-column MXU matmul.
                    contrib = jnp.sum(a * w[pl.ds(j, 1), :],
                                      axis=-1, keepdims=True)     # (W_in, 1)
                else:
                    contrib = jnp.dot(a, w[pl.ds(j * C_in, C_in), :],
                                      preferred_element_type=jnp.float32)
                acc = contrib if acc is None else acc + contrib
            if acc is None:
                continue                              # pure-padding row: halo value already stored
            y = acc + b
            if relu_out:
                y = jnp.maximum(y, 0.0)
            f[0, pl.ds(ho * W_out + p, W_in), :] = y


# ---------------------------------------------------------------------------
# Wrapper: weight flattening / tap pruning, pallas_call, NCHW reassembly.
# ---------------------------------------------------------------------------
def mpd_forward(x_nchw, params):
    """Fused MPD forward. x_nchw: (B, 1, H, W). Returns (out, [6 fmaps]) in NCHW."""
    B, C0, H0, W0 = x_nchw.shape
    assert C0 == 1
    layer_params = list(params["convs"]) + [params["conv1"], params["conv2"]]
    strides = (3, 3, 3, 3, 1, 1)
    pads = (2, 2, 2, 2, 2, 1)
    relu_out = (True, True, True, True, False, False)
    cfgs = _layer_cfgs(H0, W0, layer_params, strides, pads, relu_out)

    # Input lane-transposed to (B, W0, H0) so the layer-0 kernel can slice
    # H-columns as sublane columns.
    x_t = jnp.transpose(x_nchw[:, 0, :, :], (0, 2, 1)).astype(jnp.float32)

    flat_inputs = [x_t]
    in_specs = [pl.BlockSpec((1, W0, H0), lambda b: (b, 0, 0))]
    for l, ((w, bias), cfg) in enumerate(zip(layer_params, cfgs)):
        C_out, C_in, kh = w.shape
        if l == 0:
            wmat = jnp.transpose(w[:, 0, :], (1, 0))                      # (kh, C_out)
        elif C_out == 1:
            wmat = jnp.stack([w[0, :, k] for k in cfg["valid_k"]], axis=0)  # (n_valid, C_in)
        else:
            wmat = jnp.concatenate(
                [jnp.transpose(w[:, :, k], (1, 0)) for k in cfg["valid_k"]],
                axis=0)                                                   # (n_valid*C_in, C_out)
        flat_inputs.append(wmat.astype(jnp.float32))
        flat_inputs.append(bias.reshape(1, C_out).astype(jnp.float32))
        in_specs.append(pl.BlockSpec(tuple(wmat.shape), lambda b: (0, 0)))
        in_specs.append(pl.BlockSpec((1, C_out), lambda b: (0, 0)))

    out_shape = tuple(
        jax.ShapeDtypeStruct((B, c["H_out"] * c["W_out"], c["C_out"]), jnp.float32)
        for c in cfgs)
    out_specs = tuple(
        pl.BlockSpec((1, c["H_out"] * c["W_out"], c["C_out"]), lambda b: (b, 0, 0))
        for c in cfgs)

    kernel = functools.partial(_mpd_fused_kernel, cfgs=cfgs)
    outs = pl.pallas_call(
        kernel,
        out_shape=out_shape,
        grid_spec=pltpu.PrefetchScalarGridSpec(
            num_scalar_prefetch=0,
            grid=(B,),
            in_specs=in_specs,
            out_specs=out_specs,
        ),
        compiler_params=pltpu.CompilerParams(
            dimension_semantics=("parallel",),
            vmem_limit_bytes=24 * 1024 * 1024,
        ),
    )(*flat_inputs)

    # (B, H*W, C) channels-last -> NCHW outside the kernel (layout plumbing only).
    fmaps = [jnp.transpose(o.reshape(B, c["H_out"], c["W_out"], c["C_out"]),
                           (0, 3, 1, 2))
             for o, c in zip(outs, cfgs)]
    return fmaps[-1], fmaps


# ---------------------------------------------------------------------------
# Deterministic parameter init (weight_norm reparam: w = g * v / ||v||_per_out)
# ---------------------------------------------------------------------------
def init_weight_norm_conv(key, c_out, c_in, kh):
    kv, kg, kb = jax.random.split(key, 3)
    v = 0.05 * jax.random.normal(kv, (c_out, c_in, kh), jnp.float32)
    g = jax.random.uniform(kg, (c_out,), jnp.float32, minval=0.5, maxval=1.5)
    bias = 0.05 * jax.random.normal(kb, (c_out,), jnp.float32)
    norm = jnp.sqrt(jnp.sum(v * v, axis=(1, 2), keepdims=True))
    w = (g.reshape(-1, 1, 1) / norm) * v
    return w, bias


def init_mpd_params(key):
    params = {"convs": []}
    keys = jax.random.split(key, 6)
    in_ch = 1
    for i in range(4):
        out_ch = 2 ** (5 + i)  # 32, 64, 128, 256
        params["convs"].append(init_weight_norm_conv(keys[i], out_ch, in_ch, 5))
        in_ch = out_ch
    params["conv1"] = init_weight_norm_conv(keys[4], 1024, in_ch, 5)
    params["conv2"] = init_weight_norm_conv(keys[5], 1, 1024, 3)
    return params


# ---------------------------------------------------------------------------
# Pure-JAX reference (lax.conv) for correctness checking.
# ---------------------------------------------------------------------------
def _ref_conv(x, w, b, stride_h, pad):
    w4 = w[..., None]  # (C_out, C_in, kh, 1)
    y = lax.conv_general_dilated(
        x, w4, window_strides=(stride_h, 1),
        padding=[(pad, pad), (pad, pad)],
        dimension_numbers=("NCHW", "OIHW", "NCHW"),
        precision=lax.Precision.HIGHEST,
    )
    return y + b.reshape(1, -1, 1, 1)


def mpd_forward_ref(x, params):
    fmaps = []
    for (w, b) in params["convs"]:
        x = jnp.maximum(_ref_conv(x, w, b, 3, 2), 0.0)
        fmaps.append(x)
    w1, b1 = params["conv1"]
    x = _ref_conv(x, w1, b1, 1, 2)
    fmaps.append(x)
    x = jnp.maximum(x, 0.0)
    w2, b2 = params["conv2"]
    x = _ref_conv(x, w2, b2, 1, 1)
    fmaps.append(x)
    return x, fmaps


if __name__ == "__main__":
    key = jax.random.PRNGKey(0)
    k_x, k_p = jax.random.split(key)

    period = 4
    B, H, W = 2, 24, period  # input already reshaped to (B, 1, T//period, period)
    x = jax.random.normal(k_x, (B, 1, H, W), jnp.float32)
    params = init_mpd_params(k_p)

    out, fmaps = mpd_forward(x, params)
    out = jax.block_until_ready(out)
    fmaps = jax.block_until_ready(fmaps)

    ref_out, ref_fmaps = mpd_forward_ref(x, params)
    assert out.shape == ref_out.shape, (out.shape, ref_out.shape)
    assert jnp.allclose(out, ref_out, rtol=1e-3, atol=1e-3), "final output mismatch"
    assert len(fmaps) == len(ref_fmaps) == 6
    for a, r in zip(fmaps, ref_fmaps):
        assert a.shape == r.shape, (a.shape, r.shape)
        assert jnp.allclose(a, r, rtol=1e-3, atol=1e-3), "feature map mismatch"

    print("KERNEL_OK")
</pallas_src>

<mosaic_0001>
module attributes {stable_mosaic.version = 11 : i64} {
  func.func @_mpd_fused_kernel(%arg0: i32, %arg1: memref<1x4x24xf32, #tpu.memory_space<vmem>>, %arg2: memref<5x32xf32, #tpu.memory_space<vmem>>, %arg3: memref<1x32xf32, #tpu.memory_space<vmem>>, %arg4: memref<160x64xf32, #tpu.memory_space<vmem>>, %arg5: memref<1x64xf32, #tpu.memory_space<vmem>>, %arg6: memref<192x128xf32, #tpu.memory_space<vmem>>, %arg7: memref<1x128xf32, #tpu.memory_space<vmem>>, %arg8: memref<128x256xf32, #tpu.memory_space<vmem>>, %arg9: memref<1x256xf32, #tpu.memory_space<vmem>>, %arg10: memref<256x1024xf32, #tpu.memory_space<vmem>>, %arg11: memref<1x1024xf32, #tpu.memory_space<vmem>>, %arg12: memref<1x1024xf32, #tpu.memory_space<vmem>>, %arg13: memref<1x1xf32, #tpu.memory_space<vmem>>, %arg14: memref<1x64x32xf32, #tpu.memory_space<vmem>>, %arg15: memref<1x36x64xf32, #tpu.memory_space<vmem>>, %arg16: memref<1x16x128xf32, #tpu.memory_space<vmem>>, %arg17: memref<1x20x256xf32, #tpu.memory_space<vmem>>, %arg18: memref<1x24x1024xf32, #tpu.memory_space<vmem>>, %arg19: memref<1x26x1xf32, #tpu.memory_space<vmem>>) attributes {dimension_semantics = [#tpu.dimension_semantics<parallel>], iteration_bounds = array<i64: 2>, scalar_prefetch = 0 : i64, scratch_operands = 0 : i64, tpu.core_type = #tpu.core_type<tc>, window_params = [{transform_indices = @transform_0, window_bounds = array<i64: 1, 4, 24>}, {pipeline_mode = #tpu.pipeline_mode<synchronous>, transform_indices = @transform_1, window_bounds = array<i64: 5, 32>}, {pipeline_mode = #tpu.pipeline_mode<synchronous>, transform_indices = @transform_2, window_bounds = array<i64: 1, 32>}, {pipeline_mode = #tpu.pipeline_mode<synchronous>, transform_indices = @transform_3, window_bounds = array<i64: 160, 64>}, {pipeline_mode = #tpu.pipeline_mode<synchronous>, transform_indices = @transform_4, window_bounds = array<i64: 1, 64>}, {pipeline_mode = #tpu.pipeline_mode<synchronous>, transform_indices = @transform_5, window_bounds = array<i64: 192, 128>}, {pipeline_mode = #tpu.pipeline_mode<synchronous>, transform_indices = @transform_6, window_bounds = array<i64: 1, 128>}, {pipeline_mode = #tpu.pipeline_mode<synchronous>, transform_indices = @transform_7, window_bounds = array<i64: 128, 256>}, {pipeline_mode = #tpu.pipeline_mode<synchronous>, transform_indices = @transform_8, window_bounds = array<i64: 1, 256>}, {pipeline_mode = #tpu.pipeline_mode<synchronous>, transform_indices = @transform_9, window_bounds = array<i64: 256, 1024>}, {pipeline_mode = #tpu.pipeline_mode<synchronous>, transform_indices = @transform_10, window_bounds = array<i64: 1, 1024>}, {pipeline_mode = #tpu.pipeline_mode<synchronous>, transform_indices = @transform_11, window_bounds = array<i64: 1, 1024>}, {pipeline_mode = #tpu.pipeline_mode<synchronous>, transform_indices = @transform_12, window_bounds = array<i64: 1, 1>}, {transform_indices = @transform_13, window_bounds = array<i64: 1, 64, 32>}, {transform_indices = @transform_14, window_bounds = array<i64: 1, 36, 64>}, {transform_indices = @transform_15, window_bounds = array<i64: 1, 16, 128>}, {transform_indices = @transform_16, window_bounds = array<i64: 1, 20, 256>}, {transform_indices = @transform_17, window_bounds = array<i64: 1, 24, 1024>}, {transform_indices = @transform_18, window_bounds = array<i64: 1, 26, 1>}]} {
    %c0 = arith.constant 0 : index
    %c0_0 = arith.constant 0 : index
    %0 = vector.load %arg3[%c0, %c0_0] : memref<1x32xf32, #tpu.memory_space<vmem>>, vector<1x32xf32>
    %cst = arith.constant 0.000000e+00 : f32
    %1 = vector.broadcast %cst : f32 to vector<1x32xf32>
    %2 = arith.maximumf %0, %1 : vector<1x32xf32>
    %3 = vector.shape_cast %2 : vector<1x32xf32> to vector<1x32xf32>
    %4 = vector.broadcast %3 : vector<1x32xf32> to vector<64x32xf32>
    %c0_1 = arith.constant 0 : index
    %c0_2 = arith.constant 0 : index
    %c0_3 = arith.constant 0 : index
    %5 = vector.load %arg14[%c0_1, %c0_2, %c0_3] : memref<1x64x32xf32, #tpu.memory_space<vmem>>, vector<1x64x32xf32>
    %6 = vector.shape_cast %5 : vector<1x64x32xf32> to vector<64x32xf32>
    %7 = vector.shape_cast %4 : vector<64x32xf32> to vector<1x64x32xf32>
    tpu.vector_store %arg14[%c0_1, %c0_2, %c0_3], %7 {strides = array<i32>} : memref<1x64x32xf32, #tpu.memory_space<vmem>>, vector<1x64x32xf32>,
    %c0_4 = arith.constant 0 : index
    %c0_5 = arith.constant 0 : index
    %c0_6 = arith.constant 0 : index
    %8 = vector.load %arg1[%c0_4, %c0_5, %c0_6] : memref<1x4x24xf32, #tpu.memory_space<vmem>>, vector<1x4x24xf32>
    %9 = vector.shape_cast %8 : vector<1x4x24xf32> to vector<4x24xf32>
    %c0_7 = arith.constant 0 : index
    %c0_8 = arith.constant 0 : index
    %10 = vector.load %arg2[%c0_7, %c0_8] : memref<5x32xf32, #tpu.memory_space<vmem>>, vector<5x32xf32>
    %11 = vector.extract_strided_slice %9 {offsets = [0, 0], sizes = [4, 1], strides = [1, 1]} : vector<4x24xf32> to vector<4x1xf32>
    %12 = vector.extract_strided_slice %10 {offsets = [2, 0], sizes = [1, 32], strides = [1, 1]} : vector<5x32xf32> to vector<1x32xf32>
    %13 = vector.broadcast %11 : vector<4x1xf32> to vector<4x32xf32>
    %14 = vector.broadcast %12 : vector<1x32xf32> to vector<4x32xf32>
    %15 = arith.mulf %13, %14 : vector<4x32xf32>
    %16 = vector.extract_strided_slice %9 {offsets = [0, 1], sizes = [4, 1], strides = [1, 1]} : vector<4x24xf32> to vector<4x1xf32>
    %17 = vector.extract_strided_slice %10 {offsets = [3, 0], sizes = [1, 32], strides = [1, 1]} : vector<5x32xf32> to vector<1x32xf32>
    %18 = vector.broadcast %16 : vector<4x1xf32> to vector<4x32xf32>
    %19 = vector.broadcast %17 : vector<1x32xf32> to vector<4x32xf32>
    %20 = arith.mulf %18, %19 : vector<4x32xf32>
    %21 = arith.addf %15, %20 : vector<4x32xf32>
    %22 = vector.extract_strided_slice %9 {offsets = [0, 2], sizes = [4, 1], strides = [1, 1]} : vector<4x24xf32> to vector<4x1xf32>
    %23 = vector.extract_strided_slice %10 {offsets = [4, 0], sizes = [1, 32], strides = [1, 1]} : vector<5x32xf32> to vector<1x32xf32>
    %24 = vector.broadcast %22 : vector<4x1xf32> to vector<4x32xf32>
    %25 = vector.broadcast %23 : vector<1x32xf32> to vector<4x32xf32>
    %26 = arith.mulf %24, %25 : vector<4x32xf32>
    %27 = arith.addf %21, %26 : vector<4x32xf32>
    %28 = vector.broadcast %0 : vector<1x32xf32> to vector<4x32xf32>
    %29 = arith.addf %27, %28 : vector<4x32xf32>
    %cst_9 = arith.constant 0.000000e+00 : f32
    %30 = vector.broadcast %cst_9 : f32 to vector<4x32xf32>
    %31 = arith.maximumf %29, %30 : vector<4x32xf32>
    %c0_10 = arith.constant 0 : index
    %c2 = arith.constant 2 : index
    %c0_11 = arith.constant 0 : index
    %32 = vector.load %arg14[%c0_10, %c2, %c0_11] : memref<1x64x32xf32, #tpu.memory_space<vmem>>, vector<1x4x32xf32>
    %33 = vector.shape_cast %32 : vector<1x4x32xf32> to vector<4x32xf32>
    %34 = vector.shape_cast %31 : vector<4x32xf32> to vector<1x4x32xf32>
    tpu.vector_store %arg14[%c0_10, %c2, %c0_11], %34 {strides = array<i32>} : memref<1x64x32xf32, #tpu.memory_space<vmem>>, vector<1x4x32xf32>,
    %35 = vector.extract_strided_slice %9 {offsets = [0, 1], sizes = [4, 1], strides = [1, 1]} : vector<4x24xf32> to vector<4x1xf32>
    %36 = vector.extract_strided_slice %10 {offsets = [0, 0], sizes = [1, 32], strides = [1, 1]} : vector<5x32xf32> to vector<1x32xf32>
    %37 = vector.broadcast %35 : vector<4x1xf32> to vector<4x32xf32>
    %38 = vector.broadcast %36 : vector<1x32xf32> to vector<4x32xf32>
    %39 = arith.mulf %37, %38 : vector<4x32xf32>
    %40 = vector.extract_strided_slice %9 {offsets = [0, 2], sizes = [4, 1], strides = [1, 1]} : vector<4x24xf32> to vector<4x1xf32>
    %41 = vector.extract_strided_slice %10 {offsets = [1, 0], sizes = [1, 32], strides = [1, 1]} : vector<5x32xf32> to vector<1x32xf32>
    %42 = vector.broadcast %40 : vector<4x1xf32> to vector<4x32xf32>
    %43 = vector.broadcast %41 : vector<1x32xf32> to vector<4x32xf32>
    %44 = arith.mulf %42, %43 : vector<4x32xf32>
    %45 = arith.addf %39, %44 : vector<4x32xf32>
    %46 = vector.extract_strided_slice %9 {offsets = [0, 3], sizes = [4, 1], strides = [1, 1]} : vector<4x24xf32> to vector<4x1xf32>
    %47 = vector.extract_strided_slice %10 {offsets = [2, 0], sizes = [1, 32], strides = [1, 1]} : vector<5x32xf32> to vector<1x32xf32>
    %48 = vector.broadcast %46 : vector<4x1xf32> to vector<4x32xf32>
    %49 = vector.broadcast %47 : vector<1x32xf32> to vector<4x32xf32>
    %50 = arith.mulf %48, %49 : vector<4x32xf32>
    %51 = arith.addf %45, %50 : vector<4x32xf32>
    %52 = vector.extract_strided_slice %9 {offsets = [0, 4], sizes = [4, 1], strides = [1, 1]} : vector<4x24xf32> to vector<4x1xf32>
    %53 = vector.extract_strided_slice %10 {offsets = [3, 0], sizes = [1, 32], strides = [1, 1]} : vector<5x32xf32> to vector<1x32xf32>
    %54 = vector.broadcast %52 : vector<4x1xf32> to vector<4x32xf32>
    %55 = vector.broadcast %53 : vector<1x32xf32> to vector<4x32xf32>
    %56 = arith.mulf %54, %55 : vector<4x32xf32>
    %57 = arith.addf %51, %56 : vector<4x32xf32>
    %58 = vector.extract_strided_slice %9 {offsets = [0, 5], sizes = [4, 1], strides = [1, 1]} : vector<4x24xf32> to vector<4x1xf32>
    %59 = vector.extract_strided_slice %10 {offsets = [4, 0], sizes = [1, 32], strides = [1, 1]} : vector<5x32xf32> to vector<1x32xf32>
    %60 = vector.broadcast %58 : vector<4x1xf32> to vector<4x32xf32>
    %61 = vector.broadcast %59 : vector<1x32xf32> to vector<4x32xf32>
    %62 = arith.mulf %60, %61 : vector<4x32xf32>
    %63 = arith.addf %57, %62 : vector<4x32xf32>
    %64 = vector.broadcast %0 : vector<1x32xf32> to vector<4x32xf32>
    %65 = arith.addf %63, %64 : vector<4x32xf32>
    %cst_12 = arith.constant 0.000000e+00 : f32
    %66 = vector.broadcast %cst_12 : f32 to vector<4x32xf32>
    %67 = arith.maximumf %65, %66 : vector<4x32xf32>
    %c0_13 = arith.constant 0 : index
    %c10 = arith.constant 10 : index
    %c0_14 = arith.constant 0 : index
    %68 = vector.load %arg14[%c0_13, %c10, %c0_14] : memref<1x64x32xf32, #tpu.memory_space<vmem>>, vector<1x4x32xf32>
    %69 = vector.shape_cast %68 : vector<1x4x32xf32> to vector<4x32xf32>
    %70 = vector.shape_cast %67 : vector<4x32xf32> to vector<1x4x32xf32>
    tpu.vector_store %arg14[%c0_13, %c10, %c0_14], %70 {strides = array<i32>} : memref<1x64x32xf32, #tpu.memory_space<vmem>>, vector<1x4x32xf32>,
    %71 = vector.extract_strided_slice %9 {offsets = [0, 4], sizes = [4, 1], strides = [1, 1]} : vector<4x24xf32> to vector<4x1xf32>
    %72 = vector.extract_strided_slice %10 {offsets = [0, 0], sizes = [1, 32], strides = [1, 1]} : vector<5x32xf32> to vector<1x32xf32>
    %73 = vector.broadcast %71 : vector<4x1xf32> to vector<4x32xf32>
    %74 = vector.broadcast %72 : vector<1x32xf32> to vector<4x32xf32>
    %75 = arith.mulf %73, %74 : vector<4x32xf32>
    %76 = vector.extract_strided_slice %9 {offsets = [0, 5], sizes = [4, 1], strides = [1, 1]} : vector<4x24xf32> to vector<4x1xf32>
    %77 = vector.extract_strided_slice %10 {offsets = [1, 0], sizes = [1, 32], strides = [1, 1]} : vector<5x32xf32> to vector<1x32xf32>
    %78 = vector.broadcast %76 : vector<4x1xf32> to vector<4x32xf32>
    %79 = vector.broadcast %77 : vector<1x32xf32> to vector<4x32xf32>
    %80 = arith.mulf %78, %79 : vector<4x32xf32>
    %81 = arith.addf %75, %80 : vector<4x32xf32>
    %82 = vector.extract_strided_slice %9 {offsets = [0, 6], sizes = [4, 1], strides = [1, 1]} : vector<4x24xf32> to vector<4x1xf32>
    %83 = vector.extract_strided_slice %10 {offsets = [2, 0], sizes = [1, 32], strides = [1, 1]} : vector<5x32xf32> to vector<1x32xf32>
    %84 = vector.broadcast %82 : vector<4x1xf32> to vector<4x32xf32>
    %85 = vector.broadcast %83 : vector<1x32xf32> to vector<4x32xf32>
    %86 = arith.mulf %84, %85 : vector<4x32xf32>
    %87 = arith.addf %81, %86 : vector<4x32xf32>
    %88 = vector.extract_strided_slice %9 {offsets = [0, 7], sizes = [4, 1], strides = [1, 1]} : vector<4x24xf32> to vector<4x1xf32>
    %89 = vector.extract_strided_slice %10 {offsets = [3, 0], sizes = [1, 32], strides = [1, 1]} : vector<5x32xf32> to vector<1x32xf32>
    %90 = vector.broadcast %88 : vector<4x1xf32> to vector<4x32xf32>
    %91 = vector.broadcast %89 : vector<1x32xf32> to vector<4x32xf32>
    %92 = arith.mulf %90, %91 : vector<4x32xf32>
    %93 = arith.addf %87, %92 : vector<4x32xf32>
    %94 = vector.extract_strided_slice %9 {offsets = [0, 8], sizes = [4, 1], strides = [1, 1]} : vector<4x24xf32> to vector<4x1xf32>
    %95 = vector.extract_strided_slice %10 {offsets = [4, 0], sizes = [1, 32], strides = [1, 1]} : vector<5x32xf32> to vector<1x32xf32>
    %96 = vector.broadcast %94 : vector<4x1xf32> to vector<4x32xf32>
    %97 = vector.broadcast %95 : vector<1x32xf32> to vector<4x32xf32>
    %98 = arith.mulf %96, %97 : vector<4x32xf32>
    %99 = arith.addf %93, %98 : vector<4x32xf32>
    %100 = vector.broadcast %0 : vector<1x32xf32> to vector<4x32xf32>
    %101 = arith.addf %99, %100 : vector<4x32xf32>
    %cst_15 = arith.constant 0.000000e+00 : f32
    %102 = vector.broadcast %cst_15 : f32 to vector<4x32xf32>
    %103 = arith.maximumf %101, %102 : vector<4x32xf32>
    %c0_16 = arith.constant 0 : index
    %c18 = arith.constant 18 : index
    %c0_17 = arith.constant 0 : index
    %104 = vector.load %arg14[%c0_16, %c18, %c0_17] : memref<1x64x32xf32, #tpu.memory_space<vmem>>, vector<1x4x32xf32>
    %105 = vector.shape_cast %104 : vector<1x4x32xf32> to vector<4x32xf32>
    %106 = vector.shape_cast %103 : vector<4x32xf32> to vector<1x4x32xf32>
    tpu.vector_store %arg14[%c0_16, %c18, %c0_17], %106 {strides = array<i32>} : memref<1x64x32xf32, #tpu.memory_space<vmem>>, vector<1x4x32xf32>,
    %107 = vector.extract_strided_slice %9 {offsets = [0, 7], sizes = [4, 1], strides = [1, 1]} : vector<4x24xf32> to vector<4x1xf32>
    %108 = vector.extract_strided_slice %10 {offsets = [0, 0], sizes = [1, 32], strides = [1, 1]} : vector<5x32xf32> to vector<1x32xf32>
    %109 = vector.broadcast %107 : vector<4x1xf32> to vector<4x32xf32>
    %110 = vector.broadcast %108 : vector<1x32xf32> to vector<4x32xf32>
    %111 = arith.mulf %109, %110 : vector<4x32xf32>
    %112 = vector.extract_strided_slice %9 {offsets = [0, 8], sizes = [4, 1], strides = [1, 1]} : vector<4x24xf32> to vector<4x1xf32>
    %113 = vector.extract_strided_slice %10 {offsets = [1, 0], sizes = [1, 32], strides = [1, 1]} : vector<5x32xf32> to vector<1x32xf32>
    %114 = vector.broadcast %112 : vector<4x1xf32> to vector<4x32xf32>
    %115 = vector.broadcast %113 : vector<1x32xf32> to vector<4x32xf32>
    %116 = arith.mulf %114, %115 : vector<4x32xf32>
    %117 = arith.addf %111, %116 : vector<4x32xf32>
    %118 = vector.extract_strided_slice %9 {offsets = [0, 9], sizes = [4, 1], strides = [1, 1]} : vector<4x24xf32> to vector<4x1xf32>
    %119 = vector.extract_strided_slice %10 {offsets = [2, 0], sizes = [1, 32], strides = [1, 1]} : vector<5x32xf32> to vector<1x32xf32>
    %120 = vector.broadcast %118 : vector<4x1xf32> to vector<4x32xf32>
    %121 = vector.broadcast %119 : vector<1x32xf32> to vector<4x32xf32>
    %122 = arith.mulf %120, %121 : vector<4x32xf32>
    %123 = arith.addf %117, %122 : vector<4x32xf32>
    %124 = vector.extract_strided_slice %9 {offsets = [0, 10], sizes = [4, 1], strides = [1, 1]} : vector<4x24xf32> to vector<4x1xf32>
    %125 = vector.extract_strided_slice %10 {offsets = [3, 0], sizes = [1, 32], strides = [1, 1]} : vector<5x32xf32> to vector<1x32xf32>
    %126 = vector.broadcast %124 : vector<4x1xf32> to vector<4x32xf32>
    %127 = vector.broadcast %125 : vector<1x32xf32> to vector<4x32xf32>
    %128 = arith.mulf %126, %127 : vector<4x32xf32>
    %129 = arith.addf %123, %128 : vector<4x32xf32>
    %130 = vector.extract_strided_slice %9 {offsets = [0, 11], sizes = [4, 1], strides = [1, 1]} : vector<4x24xf32> to vector<4x1xf32>
    %131 = vector.extract_strided_slice %10 {offsets = [4, 0], sizes = [1, 32], strides = [1, 1]} : vector<5x32xf32> to vector<1x32xf32>
    %132 = vector.broadcast %130 : vector<4x1xf32> to vector<4x32xf32>
    %133 = vector.broadcast %131 : vector<1x32xf32> to vector<4x32xf32>
    %134 = arith.mulf %132, %133 : vector<4x32xf32>
    %135 = arith.addf %129, %134 : vector<4x32xf32>
    %136 = vector.broadcast %0 : vector<1x32xf32> to vector<4x32xf32>
    %137 = arith.addf %135, %136 : vector<4x32xf32>
    %cst_18 = arith.constant 0.000000e+00 : f32
    %138 = vector.broadcast %cst_18 : f32 to vector<4x32xf32>
    %139 = arith.maximumf %137, %138 : vector<4x32xf32>
    %c0_19 = arith.constant 0 : index
    %c26 = arith.constant 26 : index
    %c0_20 = arith.constant 0 : index
    %140 = vector.load %arg14[%c0_19, %c26, %c0_20] : memref<1x64x32xf32, #tpu.memory_space<vmem>>, vector<1x4x32xf32>
    %141 = vector.shape_cast %140 : vector<1x4x32xf32> to vector<4x32xf32>
    %142 = vector.shape_cast %139 : vector<4x32xf32> to vector<1x4x32xf32>
    tpu.vector_store %arg14[%c0_19, %c26, %c0_20], %142 {strides = array<i32>} : memref<1x64x32xf32, #tpu.memory_space<vmem>>, vector<1x4x32xf32>,
    %143 = vector.extract_strided_slice %9 {offsets = [0, 10], sizes = [4, 1], strides = [1, 1]} : vector<4x24xf32> to vector<4x1xf32>
    %144 = vector.extract_strided_slice %10 {offsets = [0, 0], sizes = [1, 32], strides = [1, 1]} : vector<5x32xf32> to vector<1x32xf32>
    %145 = vector.broadcast %143 : vector<4x1xf32> to vector<4x32xf32>
    %146 = vector.broadcast %144 : vector<1x32xf32> to vector<4x32xf32>
    %147 = arith.mulf %145, %146 : vector<4x32xf32>
    %148 = vector.extract_strided_slice %9 {offsets = [0, 11], sizes = [4, 1], strides = [1, 1]} : vector<4x24xf32> to vector<4x1xf32>
    %149 = vector.extract_strided_slice %10 {offsets = [1, 0], sizes = [1, 32], strides = [1, 1]} : vector<5x32xf32> to vector<1x32xf32>
    %150 = vector.broadcast %148 : vector<4x1xf32> to vector<4x32xf32>
    %151 = vector.broadcast %149 : vector<1x32xf32> to vector<4x32xf32>
    %152 = arith.mulf %150, %151 : vector<4x32xf32>
    %153 = arith.addf %147, %152 : vector<4x32xf32>
    %154 = vector.extract_strided_slice %9 {offsets = [0, 12], sizes = [4, 1], strides = [1, 1]} : vector<4x24xf32> to vector<4x1xf32>
    %155 = vector.extract_strided_slice %10 {offsets = [2, 0], sizes = [1, 32], strides = [1, 1]} : vector<5x32xf32> to vector<1x32xf32>
    %156 = vector.broadcast %154 : vector<4x1xf32> to vector<4x32xf32>
    %157 = vector.broadcast %155 : vector<1x32xf32> to vector<4x32xf32>
    %158 = arith.mulf %156, %157 : vector<4x32xf32>
    %159 = arith.addf %153, %158 : vector<4x32xf32>
    %160 = vector.extract_strided_slice %9 {offsets = [0, 13], sizes = [4, 1], strides = [1, 1]} : vector<4x24xf32> to vector<4x1xf32>
    %161 = vector.extract_strided_slice %10 {offsets = [3, 0], sizes = [1, 32], strides = [1, 1]} : vector<5x32xf32> to vector<1x32xf32>
    %162 = vector.broadcast %160 : vector<4x1xf32> to vector<4x32xf32>
    %163 = vector.broadcast %161 : vector<1x32xf32> to vector<4x32xf32>
    %164 = arith.mulf %162, %163 : vector<4x32xf32>
    %165 = arith.addf %159, %164 : vector<4x32xf32>
    %166 = vector.extract_strided_slice %9 {offsets = [0, 14], sizes = [4, 1], strides = [1, 1]} : vector<4x24xf32> to vector<4x1xf32>
    %167 = vector.extract_strided_slice %10 {offsets = [4, 0], sizes = [1, 32], strides = [1, 1]} : vector<5x32xf32> to vector<1x32xf32>
    %168 = vector.broadcast %166 : vector<4x1xf32> to vector<4x32xf32>
    %169 = vector.broadcast %167 : vector<1x32xf32> to vector<4x32xf32>
    %170 = arith.mulf %168, %169 : vector<4x32xf32>
    %171 = arith.addf %165, %170 : vector<4x32xf32>
    %172 = vector.broadcast %0 : vector<1x32xf32> to vector<4x32xf32>
    %173 = arith.addf %171, %172 : vector<4x32xf32>
    %cst_21 = arith.constant 0.000000e+00 : f32
    %174 = vector.broadcast %cst_21 : f32 to vector<4x32xf32>
    %175 = arith.maximumf %173, %174 : vector<4x32xf32>
    %c0_22 = arith.constant 0 : index
    %c34 = arith.constant 34 : index
    %c0_23 = arith.constant 0 : index
    %176 = vector.load %arg14[%c0_22, %c34, %c0_23] : memref<1x64x32xf32, #tpu.memory_space<vmem>>, vector<1x4x32xf32>
    %177 = vector.shape_cast %176 : vector<1x4x32xf32> to vector<4x32xf32>
    %178 = vector.shape_cast %175 : vector<4x32xf32> to vector<1x4x32xf32>
    tpu.vector_store %arg14[%c0_22, %c34, %c0_23], %178 {strides = array<i32>} : memref<1x64x32xf32, #tpu.memory_space<vmem>>, vector<1x4x32xf32>,
    %179 = vector.extract_strided_slice %9 {offsets = [0, 13], sizes = [4, 1], strides = [1, 1]} : vector<4x24xf32> to vector<4x1xf32>
    %180 = vector.extract_strided_slice %10 {offsets = [0, 0], sizes = [1, 32], strides = [1, 1]} : vector<5x32xf32> to vector<1x32xf32>
    %181 = vector.broadcast %179 : vector<4x1xf32> to vector<4x32xf32>
    %182 = vector.broadcast %180 : vector<1x32xf32> to vector<4x32xf32>
    %183 = arith.mulf %181, %182 : vector<4x32xf32>
    %184 = vector.extract_strided_slice %9 {offsets = [0, 14], sizes = [4, 1], strides = [1, 1]} : vector<4x24xf32> to vector<4x1xf32>
    %185 = vector.extract_strided_slice %10 {offsets = [1, 0], sizes = [1, 32], strides = [1, 1]} : vector<5x32xf32> to vector<1x32xf32>
    %186 = vector.broadcast %184 : vector<4x1xf32> to vector<4x32xf32>
    %187 = vector.broadcast %185 : vector<1x32xf32> to vector<4x32xf32>
    %188 = arith.mulf %186, %187 : vector<4x32xf32>
    %189 = arith.addf %183, %188 : vector<4x32xf32>
    %190 = vector.extract_strided_slice %9 {offsets = [0, 15], sizes = [4, 1], strides = [1, 1]} : vector<4x24xf32> to vector<4x1xf32>
    %191 = vector.extract_strided_slice %10 {offsets = [2, 0], sizes = [1, 32], strides = [1, 1]} : vector<5x32xf32> to vector<1x32xf32>
    %192 = vector.broadcast %190 : vector<4x1xf32> to vector<4x32xf32>
    %193 = vector.broadcast %191 : vector<1x32xf32> to vector<4x32xf32>
    %194 = arith.mulf %192, %193 : vector<4x32xf32>
    %195 = arith.addf %189, %194 : vector<4x32xf32>
    %196 = vector.extract_strided_slice %9 {offsets = [0, 16], sizes = [4, 1], strides = [1, 1]} : vector<4x24xf32> to vector<4x1xf32>
    %197 = vector.extract_strided_slice %10 {offsets = [3, 0], sizes = [1, 32], strides = [1, 1]} : vector<5x32xf32> to vector<1x32xf32>
    %198 = vector.broadcast %196 : vector<4x1xf32> to vector<4x32xf32>
    %199 = vector.broadcast %197 : vector<1x32xf32> to vector<4x32xf32>
    %200 = arith.mulf %198, %199 : vector<4x32xf32>
    %201 = arith.addf %195, %200 : vector<4x32xf32>
    %202 = vector.extract_strided_slice %9 {offsets = [0, 17], sizes = [4, 1], strides = [1, 1]} : vector<4x24xf32> to vector<4x1xf32>
    %203 = vector.extract_strided_slice %10 {offsets = [4, 0], sizes = [1, 32], strides = [1, 1]} : vector<5x32xf32> to vector<1x32xf32>
    %204 = vector.broadcast %202 : vector<4x1xf32> to vector<4x32xf32>
    %205 = vector.broadcast %203 : vector<1x32xf32> to vector<4x32xf32>
    %206 = arith.mulf %204, %205 : vector<4x32xf32>
    %207 = arith.addf %201, %206 : vector<4x32xf32>
    %208 = vector.broadcast %0 : vector<1x32xf32> to vector<4x32xf32>
    %209 = arith.addf %207, %208 : vector<4x32xf32>
    %cst_24 = arith.constant 0.000000e+00 : f32
    %210 = vector.broadcast %cst_24 : f32 to vector<4x32xf32>
    %211 = arith.maximumf %209, %210 : vector<4x32xf32>
    %c0_25 = arith.constant 0 : index
    %c42 = arith.constant 42 : index
    %c0_26 = arith.constant 0 : index
    %212 = vector.load %arg14[%c0_25, %c42, %c0_26] : memref<1x64x32xf32, #tpu.memory_space<vmem>>, vector<1x4x32xf32>
    %213 = vector.shape_cast %212 : vector<1x4x32xf32> to vector<4x32xf32>
    %214 = vector.shape_cast %211 : vector<4x32xf32> to vector<1x4x32xf32>
    tpu.vector_store %arg14[%c0_25, %c42, %c0_26], %214 {strides = array<i32>} : memref<1x64x32xf32, #tpu.memory_space<vmem>>, vector<1x4x32xf32>,
    %215 = vector.extract_strided_slice %9 {offsets = [0, 16], sizes = [4, 1], strides = [1, 1]} : vector<4x24xf32> to vector<4x1xf32>
    %216 = vector.extract_strided_slice %10 {offsets = [0, 0], sizes = [1, 32], strides = [1, 1]} : vector<5x32xf32> to vector<1x32xf32>
    %217 = vector.broadcast %215 : vector<4x1xf32> to vector<4x32xf32>
    %218 = vector.broadcast %216 : vector<1x32xf32> to vector<4x32xf32>
    %219 = arith.mulf %217, %218 : vector<4x32xf32>
    %220 = vector.extract_strided_slice %9 {offsets = [0, 17], sizes = [4, 1], strides = [1, 1]} : vector<4x24xf32> to vector<4x1xf32>
    %221 = vector.extract_strided_slice %10 {offsets = [1, 0], sizes = [1, 32], strides = [1, 1]} : vector<5x32xf32> to vector<1x32xf32>
    %222 = vector.broadcast %220 : vector<4x1xf32> to vector<4x32xf32>
    %223 = vector.broadcast %221 : vector<1x32xf32> to vector<4x32xf32>
    %224 = arith.mulf %222, %223 : vector<4x32xf32>
    %225 = arith.addf %219, %224 : vector<4x32xf32>
    %226 = vector.extract_strided_slice %9 {offsets = [0, 18], sizes = [4, 1], strides = [1, 1]} : vector<4x24xf32> to vector<4x1xf32>
    %227 = vector.extract_strided_slice %10 {offsets = [2, 0], sizes = [1, 32], strides = [1, 1]} : vector<5x32xf32> to vector<1x32xf32>
    %228 = vector.broadcast %226 : vector<4x1xf32> to vector<4x32xf32>
    %229 = vector.broadcast %227 : vector<1x32xf32> to vector<4x32xf32>
    %230 = arith.mulf %228, %229 : vector<4x32xf32>
    %231 = arith.addf %225, %230 : vector<4x32xf32>
    %232 = vector.extract_strided_slice %9 {offsets = [0, 19], sizes = [4, 1], strides = [1, 1]} : vector<4x24xf32> to vector<4x1xf32>
    %233 = vector.extract_strided_slice %10 {offsets = [3, 0], sizes = [1, 32], strides = [1, 1]} : vector<5x32xf32> to vector<1x32xf32>
    %234 = vector.broadcast %232 : vector<4x1xf32> to vector<4x32xf32>
    %235 = vector.broadcast %233 : vector<1x32xf32> to vector<4x32xf32>
    %236 = arith.mulf %234, %235 : vector<4x32xf32>
    %237 = arith.addf %231, %236 : vector<4x32xf32>
    %238 = vector.extract_strided_slice %9 {offsets = [0, 20], sizes = [4, 1], strides = [1, 1]} : vector<4x24xf32> to vector<4x1xf32>
    %239 = vector.extract_strided_slice %10 {offsets = [4, 0], sizes = [1, 32], strides = [1, 1]} : vector<5x32xf32> to vector<1x32xf32>
    %240 = vector.broadcast %238 : vector<4x1xf32> to vector<4x32xf32>
    %241 = vector.broadcast %239 : vector<1x32xf32> to vector<4x32xf32>
    %242 = arith.mulf %240, %241 : vector<4x32xf32>
    %243 = arith.addf %237, %242 : vector<4x32xf32>
    %244 = vector.broadcast %0 : vector<1x32xf32> to vector<4x32xf32>
    %245 = arith.addf %243, %244 : vector<4x32xf32>
    %cst_27 = arith.constant 0.000000e+00 : f32
    %246 = vector.broadcast %cst_27 : f32 to vector<4x32xf32>
    %247 = arith.maximumf %245, %246 : vector<4x32xf32>
    %c0_28 = arith.constant 0 : index
    %c50 = arith.constant 50 : index
    %c0_29 = arith.constant 0 : index
    %248 = vector.load %arg14[%c0_28, %c50, %c0_29] : memref<1x64x32xf32, #tpu.memory_space<vmem>>, vector<1x4x32xf32>
    %249 = vector.shape_cast %248 : vector<1x4x32xf32> to vector<4x32xf32>
    %250 = vector.shape_cast %247 : vector<4x32xf32> to vector<1x4x32xf32>
    tpu.vector_store %arg14[%c0_28, %c50, %c0_29], %250 {strides = array<i32>} : memref<1x64x32xf32, #tpu.memory_space<vmem>>, vector<1x4x32xf32>,
    %251 = vector.extract_strided_slice %9 {offsets = [0, 19], sizes = [4, 1], strides = [1, 1]} : vector<4x24xf32> to vector<4x1xf32>
    %252 = vector.extract_strided_slice %10 {offsets = [0, 0], sizes = [1, 32], strides = [1, 1]} : vector<5x32xf32> to vector<1x32xf32>
    %253 = vector.broadcast %251 : vector<4x1xf32> to vector<4x32xf32>
    %254 = vector.broadcast %252 : vector<1x32xf32> to vector<4x32xf32>
    %255 = arith.mulf %253, %254 : vector<4x32xf32>
    %256 = vector.extract_strided_slice %9 {offsets = [0, 20], sizes = [4, 1], strides = [1, 1]} : vector<4x24xf32> to vector<4x1xf32>
    %257 = vector.extract_strided_slice %10 {offsets = [1, 0], sizes = [1, 32], strides = [1, 1]} : vector<5x32xf32> to vector<1x32xf32>
    %258 = vector.broadcast %256 : vector<4x1xf32> to vector<4x32xf32>
    %259 = vector.broadcast %257 : vector<1x32xf32> to vector<4x32xf32>
    %260 = arith.mulf %258, %259 : vector<4x32xf32>
    %261 = arith.addf %255, %260 : vector<4x32xf32>
    %262 = vector.extract_strided_slice %9 {offsets = [0, 21], sizes = [4, 1], strides = [1, 1]} : vector<4x24xf32> to vector<4x1xf32>
    %263 = vector.extract_strided_slice %10 {offsets = [2, 0], sizes = [1, 32], strides = [1, 1]} : vector<5x32xf32> to vector<1x32xf32>
    %264 = vector.broadcast %262 : vector<4x1xf32> to vector<4x32xf32>
    %265 = vector.broadcast %263 : vector<1x32xf32> to vector<4x32xf32>
    %266 = arith.mulf %264, %265 : vector<4x32xf32>
    %267 = arith.addf %261, %266 : vector<4x32xf32>
    %268 = vector.extract_strided_slice %9 {offsets = [0, 22], sizes = [4, 1], strides = [1, 1]} : vector<4x24xf32> to vector<4x1xf32>
    %269 = vector.extract_strided_slice %10 {offsets = [3, 0], sizes = [1, 32], strides = [1, 1]} : vector<5x32xf32> to vector<1x32xf32>
    %270 = vector.broadcast %268 : vector<4x1xf32> to vector<4x32xf32>
    %271 = vector.broadcast %269 : vector<1x32xf32> to vector<4x32xf32>
    %272 = arith.mulf %270, %271 : vector<4x32xf32>
    %273 = arith.addf %267, %272 : vector<4x32xf32>
    %274 = vector.extract_strided_slice %9 {offsets = [0, 23], sizes = [4, 1], strides = [1, 1]} : vector<4x24xf32> to vector<4x1xf32>
    %275 = vector.extract_strided_slice %10 {offsets = [4, 0], sizes = [1, 32], strides = [1, 1]} : vector<5x32xf32> to vector<1x32xf32>
    %276 = vector.broadcast %274 : vector<4x1xf32> to vector<4x32xf32>
    %277 = vector.broadcast %275 : vector<1x32xf32> to vector<4x32xf32>
    %278 = arith.mulf %276, %277 : vector<4x32xf32>
    %279 = arith.addf %273, %278 : vector<4x32xf32>
    %280 = vector.broadcast %0 : vector<1x32xf32> to vector<4x32xf32>
    %281 = arith.addf %279, %280 : vector<4x32xf32>
    %cst_30 = arith.constant 0.000000e+00 : f32
    %282 = vector.broadcast %cst_30 : f32 to vector<4x32xf32>
    %283 = arith.maximumf %281, %282 : vector<4x32xf32>
    %c0_31 = arith.constant 0 : index
    %c58 = arith.constant 58 : index
    %c0_32 = arith.constant 0 : index
    %284 = vector.load %arg14[%c0_31, %c58, %c0_32] : memref<1x64x32xf32, #tpu.memory_space<vmem>>, vector<1x4x32xf32>
    %285 = vector.shape_cast %284 : vector<1x4x32xf32> to vector<4x32xf32>
    %286 = vector.shape_cast %283 : vector<4x32xf32> to vector<1x4x32xf32>
    tpu.vector_store %arg14[%c0_31, %c58, %c0_32], %286 {strides = array<i32>} : memref<1x64x32xf32, #tpu.memory_space<vmem>>, vector<1x4x32xf32>,
    %c0_33 = arith.constant 0 : index
    %c0_34 = arith.constant 0 : index
    %287 = vector.load %arg5[%c0_33, %c0_34] : memref<1x64xf32, #tpu.memory_space<vmem>>, vector<1x64xf32>
    %cst_35 = arith.constant 0.000000e+00 : f32
    %288 = vector.broadcast %cst_35 : f32 to vector<1x64xf32>
    %289 = arith.maximumf %287, %288 : vector<1x64xf32>
    %290 = vector.shape_cast %289 : vector<1x64xf32> to vector<1x64xf32>
    %291 = vector.broadcast %290 : vector<1x64xf32> to vector<36x64xf32>
    %c0_36 = arith.constant 0 : index
    %c0_37 = arith.constant 0 : index
    %c0_38 = arith.constant 0 : index
    %292 = vector.load %arg15[%c0_36, %c0_37, %c0_38] : memref<1x36x64xf32, #tpu.memory_space<vmem>>, vector<1x36x64xf32>
    %293 = vector.shape_cast %292 : vector<1x36x64xf32> to vector<36x64xf32>
    %294 = vector.shape_cast %291 : vector<36x64xf32> to vector<1x36x64xf32>
    tpu.vector_store %arg15[%c0_36, %c0_37, %c0_38], %294 {strides = array<i32>} : memref<1x36x64xf32, #tpu.memory_space<vmem>>, vector<1x36x64xf32>,
    %c0_39 = arith.constant 0 : index
    %c0_40 = arith.constant 0 : index
    %c0_41 = arith.constant 0 : index
    %295 = vector.load %arg14[%c0_39, %c0_40, %c0_41] : memref<1x64x32xf32, #tpu.memory_space<vmem>>, vector<1x8x32xf32>
    %296 = vector.shape_cast %295 : vector<1x8x32xf32> to vector<8x32xf32>
    %c64 = arith.constant 64 : index
    %c0_42 = arith.constant 0 : index
    %297 = vector.load %arg4[%c64, %c0_42] : memref<160x64xf32, #tpu.memory_space<vmem>>, vector<32x64xf32>
    %cst_43 = arith.constant dense<0.000000e+00> : vector<8x64xf32>
    %298 = tpu.matmul %296, %297, %cst_43 {dimension_numbers = #tpu.dot_dimension_numbers<[1], [0], [0], [1], [0, 0, 1, 1], [], []>} : vector<8x32xf32>, vector<32x64xf32>, vector<8x64xf32> -> vector<8x64xf32>
    %c0_44 = arith.constant 0 : index
    %c8 = arith.constant 8 : index
    %c0_45 = arith.constant 0 : index
    %299 = vector.load %arg14[%c0_44, %c8, %c0_45] : memref<1x64x32xf32, #tpu.memory_space<vmem>>, vector<1x8x32xf32>
    %300 = vector.shape_cast %299 : vector<1x8x32xf32> to vector<8x32xf32>
    %c96 = arith.constant 96 : index
    %c0_46 = arith.constant 0 : index
    %301 = vector.load %arg4[%c96, %c0_46] : memref<160x64xf32, #tpu.memory_space<vmem>>, vector<32x64xf32>
    %cst_47 = arith.constant dense<0.000000e+00> : vector<8x64xf32>
    %302 = tpu.matmul %300, %301, %cst_47 {dimension_numbers = #tpu.dot_dimension_numbers<[1], [0], [0], [1], [0, 0, 1, 1], [], []>} : vector<8x32xf32>, vector<32x64xf32>, vector<8x64xf32> -> vector<8x64xf32>
    %303 = arith.addf %298, %302 : vector<8x64xf32>
    %c0_48 = arith.constant 0 : index
    %c16 = arith.constant 16 : index
    %c0_49 = arith.constant 0 : index
    %304 = vector.load %arg14[%c0_48, %c16, %c0_49] : memref<1x64x32xf32, #tpu.memory_space<vmem>>, vector<1x8x32xf32>
    %305 = vector.shape_cast %304 : vector<1x8x32xf32> to vector<8x32xf32>
    %c128 = arith.constant 128 : index
    %c0_50 = arith.constant 0 : index
    %306 = vector.load %arg4[%c128, %c0_50] : memref<160x64xf32, #tpu.memory_space<vmem>>, vector<32x64xf32>
    %cst_51 = arith.constant dense<0.000000e+00> : vector<8x64xf32>
    %307 = tpu.matmul %305, %306, %cst_51 {dimension_numbers = #tpu.dot_dimension_numbers<[1], [0], [0], [1], [0, 0, 1, 1], [], []>} : vector<8x32xf32>, vector<32x64xf32>, vector<8x64xf32> -> vector<8x64xf32>
    %308 = arith.addf %303, %307 : vector<8x64xf32>
    %309 = vector.broadcast %287 : vector<1x64xf32> to vector<8x64xf32>
    %310 = arith.addf %308, %309 : vector<8x64xf32>
    %cst_52 = arith.constant 0.000000e+00 : f32
    %311 = vector.broadcast %cst_52 : f32 to vector<8x64xf32>
    %312 = arith.maximumf %310, %311 : vector<8x64xf32>
    %c0_53 = arith.constant 0 : index
    %c2_54 = arith.constant 2 : index
    %c0_55 = arith.constant 0 : index
    %313 = vector.load %arg15[%c0_53, %c2_54, %c0_55] : memref<1x36x64xf32, #tpu.memory_space<vmem>>, vector<1x8x64xf32>
    %314 = vector.shape_cast %313 : vector<1x8x64xf32> to vector<8x64xf32>
    %315 = vector.shape_cast %312 : vector<8x64xf32> to vector<1x8x64xf32>
    tpu.vector_store %arg15[%c0_53, %c2_54, %c0_55], %315 {strides = array<i32>} : memref<1x36x64xf32, #tpu.memory_space<vmem>>, vector<1x8x64xf32>,
    %c0_56 = arith.constant 0 : index
    %c8_57 = arith.constant 8 : index
    %c0_58 = arith.constant 0 : index
    %316 = vector.load %arg14[%c0_56, %c8_57, %c0_58] : memref<1x64x32xf32, #tpu.memory_space<vmem>>, vector<1x8x32xf32>
    %317 = vector.shape_cast %316 : vector<1x8x32xf32> to vector<8x32xf32>
    %c0_59 = arith.constant 0 : index
    %c0_60 = arith.constant 0 : index
    %318 = vector.load %arg4[%c0_59, %c0_60] : memref<160x64xf32, #tpu.memory_space<vmem>>, vector<32x64xf32>
    %cst_61 = arith.constant dense<0.000000e+00> : vector<8x64xf32>
    %319 = tpu.matmul %317, %318, %cst_61 {dimension_numbers = #tpu.dot_dimension_numbers<[1], [0], [0], [1], [0, 0, 1, 1], [], []>} : vector<8x32xf32>, vector<32x64xf32>, vector<8x64xf32> -> vector<8x64xf32>
    %c0_62 = arith.constant 0 : index
    %c16_63 = arith.constant 16 : index
    %c0_64 = arith.constant 0 : index
    %320 = vector.load %arg14[%c0_62, %c16_63, %c0_64] : memref<1x64x32xf32, #tpu.memory_space<vmem>>, vector<1x8x32xf32>
    %321 = vector.shape_cast %320 : vector<1x8x32xf32> to vector<8x32xf32>
    %c32 = arith.constant 32 : index
    %c0_65 = arith.constant 0 : index
    %322 = vector.load %arg4[%c32, %c0_65] : memref<160x64xf32, #tpu.memory_space<vmem>>, vector<32x64xf32>
    %cst_66 = arith.constant dense<0.000000e+00> : vector<8x64xf32>
    %323 = tpu.matmul %321, %322, %cst_66 {dimension_numbers = #tpu.dot_dimension_numbers<[1], [0], [0], [1], [0, 0, 1, 1], [], []>} : vector<8x32xf32>, vector<32x64xf32>, vector<8x64xf32> -> vector<8x64xf32>
    %324 = arith.addf %319, %323 : vector<8x64xf32>
    %c0_67 = arith.constant 0 : index
    %c24 = arith.constant 24 : index
    %c0_68 = arith.constant 0 : index
    %325 = vector.load %arg14[%c0_67, %c24, %c0_68] : memref<1x64x32xf32, #tpu.memory_space<vmem>>, vector<1x8x32xf32>
    %326 = vector.shape_cast %325 : vector<1x8x32xf32> to vector<8x32xf32>
    %c64_69 = arith.constant 64 : index
    %c0_70 = arith.constant 0 : index
    %327 = vector.load %arg4[%c64_69, %c0_70] : memref<160x64xf32, #tpu.memory_space<vmem>>, vector<32x64xf32>
    %cst_71 = arith.constant dense<0.000000e+00> : vector<8x64xf32>
    %328 = tpu.matmul %326, %327, %cst_71 {dimension_numbers = #tpu.dot_dimension_numbers<[1], [0], [0], [1], [0, 0, 1, 1], [], []>} : vector<8x32xf32>, vector<32x64xf32>, vector<8x64xf32> -> vector<8x64xf32>
    %329 = arith.addf %324, %328 : vector<8x64xf32>
    %c0_72 = arith.constant 0 : index
    %c32_73 = arith.constant 32 : index
    %c0_74 = arith.constant 0 : index
    %330 = vector.load %arg14[%c0_72, %c32_73, %c0_74] : memref<1x64x32xf32, #tpu.memory_space<vmem>>, vector<1x8x32xf32>
    %331 = vector.shape_cast %330 : vector<1x8x32xf32> to vector<8x32xf32>
    %c96_75 = arith.constant 96 : index
    %c0_76 = arith.constant 0 : index
    %332 = vector.load %arg4[%c96_75, %c0_76] : memref<160x64xf32, #tpu.memory_space<vmem>>, vector<32x64xf32>
    %cst_77 = arith.constant dense<0.000000e+00> : vector<8x64xf32>
    %333 = tpu.matmul %331, %332, %cst_77 {dimension_numbers = #tpu.dot_dimension_numbers<[1], [0], [0], [1], [0, 0, 1, 1], [], []>} : vector<8x32xf32>, vector<32x64xf32>, vector<8x64xf32> -> vector<8x64xf32>
    %334 = arith.addf %329, %333 : vector<8x64xf32>
    %c0_78 = arith.constant 0 : index
    %c40 = arith.constant 40 : index
    %c0_79 = arith.constant 0 : index
    %335 = vector.load %arg14[%c0_78, %c40, %c0_79] : memref<1x64x32xf32, #tpu.memory_space<vmem>>, vector<1x8x32xf32>
    %336 = vector.shape_cast %335 : vector<1x8x32xf32> to vector<8x32xf32>
    %c128_80 = arith.constant 128 : index
    %c0_81 = arith.constant 0 : index
    %337 = vector.load %arg4[%c128_80, %c0_81] : memref<160x64xf32, #tpu.memory_space<vmem>>, vector<32x64xf32>
    %cst_82 = arith.constant dense<0.000000e+00> : vector<8x64xf32>
    %338 = tpu.matmul %336, %337, %cst_82 {dimension_numbers = #tpu.dot_dimension_numbers<[1], [0], [0], [1], [0, 0, 1, 1], [], []>} : vector<8x32xf32>, vector<32x64xf32>, vector<8x64xf32> -> vector<8x64xf32>
    %339 = arith.addf %334, %338 : vector<8x64xf32>
    %340 = vector.broadcast %287 : vector<1x64xf32> to vector<8x64xf32>
    %341 = arith.addf %339, %340 : vector<8x64xf32>
    %cst_83 = arith.constant 0.000000e+00 : f32
    %342 = vector.broadcast %cst_83 : f32 to vector<8x64xf32>
    %343 = arith.maximumf %341, %342 : vector<8x64xf32>
    %c0_84 = arith.constant 0 : index
    %c14 = arith.constant 14 : index
    %c0_85 = arith.constant 0 : index
    %344 = vector.load %arg15[%c0_84, %c14, %c0_85] : memref<1x36x64xf32, #tpu.memory_space<vmem>>, vector<1x8x64xf32>
    %345 = vector.shape_cast %344 : vector<1x8x64xf32> to vector<8x64xf32>
    %346 = vector.shape_cast %343 : vector<8x64xf32> to vector<1x8x64xf32>
    tpu.vector_store %arg15[%c0_84, %c14, %c0_85], %346 {strides = array<i32>} : memref<1x36x64xf32, #tpu.memory_space<vmem>>, vector<1x8x64xf32>,
    %c0_86 = arith.constant 0 : index
    %c32_87 = arith.constant 32 : index
    %c0_88 = arith.constant 0 : index
    %347 = vector.load %arg14[%c0_86, %c32_87, %c0_88] : memref<1x64x32xf32, #tpu.memory_space<vmem>>, vector<1x8x32xf32>
    %348 = vector.shape_cast %347 : vector<1x8x32xf32> to vector<8x32xf32>
    %c0_89 = arith.constant 0 : index
    %c0_90 = arith.constant 0 : index
    %349 = vector.load %arg4[%c0_89, %c0_90] : memref<160x64xf32, #tpu.memory_space<vmem>>, vector<32x64xf32>
    %cst_91 = arith.constant dense<0.000000e+00> : vector<8x64xf32>
    %350 = tpu.matmul %348, %349, %cst_91 {dimension_numbers = #tpu.dot_dimension_numbers<[1], [0], [0], [1], [0, 0, 1, 1], [], []>} : vector<8x32xf32>, vector<32x64xf32>, vector<8x64xf32> -> vector<8x64xf32>
    %c0_92 = arith.constant 0 : index
    %c40_93 = arith.constant 40 : index
    %c0_94 = arith.constant 0 : index
    %351 = vector.load %arg14[%c0_92, %c40_93, %c0_94] : memref<1x64x32xf32, #tpu.memory_space<vmem>>, vector<1x8x32xf32>
    %352 = vector.shape_cast %351 : vector<1x8x32xf32> to vector<8x32xf32>
    %c32_95 = arith.constant 32 : index
    %c0_96 = arith.constant 0 : index
    %353 = vector.load %arg4[%c32_95, %c0_96] : memref<160x64xf32, #tpu.memory_space<vmem>>, vector<32x64xf32>
    %cst_97 = arith.constant dense<0.000000e+00> : vector<8x64xf32>
    %354 = tpu.matmul %352, %353, %cst_97 {dimension_numbers = #tpu.dot_dimension_numbers<[1], [0], [0], [1], [0, 0, 1, 1], [], []>} : vector<8x32xf32>, vector<32x64xf32>, vector<8x64xf32> -> vector<8x64xf32>
    %355 = arith.addf %350, %354 : vector<8x64xf32>
    %c0_98 = arith.constant 0 : index
    %c48 = arith.constant 48 : index
    %c0_99 = arith.constant 0 : index
    %356 = vector.load %arg14[%c0_98, %c48, %c0_99] : memref<1x64x32xf32, #tpu.memory_space<vmem>>, vector<1x8x32xf32>
    %357 = vector.shape_cast %356 : vector<1x8x32xf32> to vector<8x32xf32>
    %c64_100 = arith.constant 64 : index
    %c0_101 = arith.constant 0 : index
    %358 = vector.load %arg4[%c64_100, %c0_101] : memref<160x64xf32, #tpu.memory_space<vmem>>, vector<32x64xf32>
    %cst_102 = arith.constant dense<0.000000e+00> : vector<8x64xf32>
    %359 = tpu.matmul %357, %358, %cst_102 {dimension_numbers = #tpu.dot_dimension_numbers<[1], [0], [0], [1], [0, 0, 1, 1], [], []>} : vector<8x32xf32>, vector<32x64xf32>, vector<8x64xf32> -> vector<8x64xf32>
    %360 = arith.addf %355, %359 : vector<8x64xf32>
    %c0_103 = arith.constant 0 : index
    %c56 = arith.constant 56 : index
    %c0_104 = arith.constant 0 : index
    %361 = vector.load %arg14[%c0_103, %c56, %c0_104] : memref<1x64x32xf32, #tpu.memory_space<vmem>>, vector<1x8x32xf32>
    %362 = vector.shape_cast %361 : vector<1x8x32xf32> to vector<8x32xf32>
    %c96_105 = arith.constant 96 : index
    %c0_106 = arith.constant 0 : index
    %363 = vector.load %arg4[%c96_105, %c0_106] : memref<160x64xf32, #tpu.memory_space<vmem>>, vector<32x64xf32>
    %cst_107 = arith.constant dense<0.000000e+00> : vector<8x64xf32>
    %364 = tpu.matmul %362, %363, %cst_107 {dimension_numbers = #tpu.dot_dimension_numbers<[1], [0], [0], [1], [0, 0, 1, 1], [], []>} : vector<8x32xf32>, vector<32x64xf32>, vector<8x64xf32> -> vector<8x64xf32>
    %365 = arith.addf %360, %364 : vector<8x64xf32>
    %366 = vector.broadcast %287 : vector<1x64xf32> to vector<8x64xf32>
    %367 = arith.addf %365, %366 : vector<8x64xf32>
    %cst_108 = arith.constant 0.000000e+00 : f32
    %368 = vector.broadcast %cst_108 : f32 to vector<8x64xf32>
    %369 = arith.maximumf %367, %368 : vector<8x64xf32>
    %c0_109 = arith.constant 0 : index
    %c26_110 = arith.constant 26 : index
    %c0_111 = arith.constant 0 : index
    %370 = vector.load %arg15[%c0_109, %c26_110, %c0_111] : memref<1x36x64xf32, #tpu.memory_space<vmem>>, vector<1x8x64xf32>
    %371 = vector.shape_cast %370 : vector<1x8x64xf32> to vector<8x64xf32>
    %372 = vector.shape_cast %369 : vector<8x64xf32> to vector<1x8x64xf32>
    tpu.vector_store %arg15[%c0_109, %c26_110, %c0_111], %372 {strides = array<i32>} : memref<1x36x64xf32, #tpu.memory_space<vmem>>, vector<1x8x64xf32>,
    %c0_112 = arith.constant 0 : index
    %c0_113 = arith.constant 0 : index
    %373 = vector.load %arg7[%c0_112, %c0_113] : memref<1x128xf32, #tpu.memory_space<vmem>>, vector<1x128xf32>
    %cst_114 = arith.constant 0.000000e+00 : f32
    %374 = vector.broadcast %cst_114 : f32 to vector<1x128xf32>
    %375 = arith.maximumf %373, %374 : vector<1x128xf32>
    %376 = vector.shape_cast %375 : vector<1x128xf32> to vector<1x128xf32>
    %377 = vector.broadcast %376 : vector<1x128xf32> to vector<16x128xf32>
    %c0_115 = arith.constant 0 : index
    %c0_116 = arith.constant 0 : index
    %c0_117 = arith.constant 0 : index
    %378 = vector.load %arg16[%c0_115, %c0_116, %c0_117] : memref<1x16x128xf32, #tpu.memory_space<vmem>>, vector<1x16x128xf32>
    %379 = vector.shape_cast %378 : vector<1x16x128xf32> to vector<16x128xf32>
    %380 = vector.shape_cast %377 : vector<16x128xf32> to vector<1x16x128xf32>
    tpu.vector_store %arg16[%c0_115, %c0_116, %c0_117], %380 {strides = array<i32>} : memref<1x16x128xf32, #tpu.memory_space<vmem>>, vector<1x16x128xf32>,
    %c0_118 = arith.constant 0 : index
    %c0_119 = arith.constant 0 : index
    %c0_120 = arith.constant 0 : index
    %381 = vector.load %arg15[%c0_118, %c0_119, %c0_120] : memref<1x36x64xf32, #tpu.memory_space<vmem>>, vector<1x12x64xf32>
    %382 = vector.shape_cast %381 : vector<1x12x64xf32> to vector<12x64xf32>
    %c0_121 = arith.constant 0 : index
    %c0_122 = arith.constant 0 : index
    %383 = vector.load %arg6[%c0_121, %c0_122] : memref<192x128xf32, #tpu.memory_space<vmem>>, vector<64x128xf32>
    %cst_123 = arith.constant dense<0.000000e+00> : vector<12x128xf32>
    %384 = tpu.matmul %382, %383, %cst_123 {dimension_numbers = #tpu.dot_dimension_numbers<[1], [0], [0], [1], [0, 0, 1, 1], [], []>} : vector<12x64xf32>, vector<64x128xf32>, vector<12x128xf32> -> vector<12x128xf32>
    %c0_124 = arith.constant 0 : index
    %c12 = arith.constant 12 : index
    %c0_125 = arith.constant 0 : index
    %385 = vector.load %arg15[%c0_124, %c12, %c0_125] : memref<1x36x64xf32, #tpu.memory_space<vmem>>, vector<1x12x64xf32>
    %386 = vector.shape_cast %385 : vector<1x12x64xf32> to vector<12x64xf32>
    %c64_126 = arith.constant 64 : index
    %c0_127 = arith.constant 0 : index
    %387 = vector.load %arg6[%c64_126, %c0_127] : memref<192x128xf32, #tpu.memory_space<vmem>>, vector<64x128xf32>
    %cst_128 = arith.constant dense<0.000000e+00> : vector<12x128xf32>
    %388 = tpu.matmul %386, %387, %cst_128 {dimension_numbers = #tpu.dot_dimension_numbers<[1], [0], [0], [1], [0, 0, 1, 1], [], []>} : vector<12x64xf32>, vector<64x128xf32>, vector<12x128xf32> -> vector<12x128xf32>
    %389 = arith.addf %384, %388 : vector<12x128xf32>
    %c0_129 = arith.constant 0 : index
    %c24_130 = arith.constant 24 : index
    %c0_131 = arith.constant 0 : index
    %390 = vector.load %arg15[%c0_129, %c24_130, %c0_131] : memref<1x36x64xf32, #tpu.memory_space<vmem>>, vector<1x12x64xf32>
    %391 = vector.shape_cast %390 : vector<1x12x64xf32> to vector<12x64xf32>
    %c128_132 = arith.constant 128 : index
    %c0_133 = arith.constant 0 : index
    %392 = vector.load %arg6[%c128_132, %c0_133] : memref<192x128xf32, #tpu.memory_space<vmem>>, vector<64x128xf32>
    %cst_134 = arith.constant dense<0.000000e+00> : vector<12x128xf32>
    %393 = tpu.matmul %391, %392, %cst_134 {dimension_numbers = #tpu.dot_dimension_numbers<[1], [0], [0], [1], [0, 0, 1, 1], [], []>} : vector<12x64xf32>, vector<64x128xf32>, vector<12x128xf32> -> vector<12x128xf32>
    %394 = arith.addf %389, %393 : vector<12x128xf32>
    %395 = vector.broadcast %373 : vector<1x128xf32> to vector<12x128xf32>
    %396 = arith.addf %394, %395 : vector<12x128xf32>
    %cst_135 = arith.constant 0.000000e+00 : f32
    %397 = vector.broadcast %cst_135 : f32 to vector<12x128xf32>
    %398 = arith.maximumf %396, %397 : vector<12x128xf32>
    %c0_136 = arith.constant 0 : index
    %c2_137 = arith.constant 2 : index
    %c0_138 = arith.constant 0 : index
    %399 = vector.load %arg16[%c0_136, %c2_137, %c0_138] : memref<1x16x128xf32, #tpu.memory_space<vmem>>, vector<1x12x128xf32>
    %400 = vector.shape_cast %399 : vector<1x12x128xf32> to vector<12x128xf32>
    %401 = vector.shape_cast %398 : vector<12x128xf32> to vector<1x12x128xf32>
    tpu.vector_store %arg16[%c0_136, %c2_137, %c0_138], %401 {strides = array<i32>} : memref<1x16x128xf32, #tpu.memory_space<vmem>>, vector<1x12x128xf32>,
    %c0_139 = arith.constant 0 : index
    %c0_140 = arith.constant 0 : index
    %402 = vector.load %arg9[%c0_139, %c0_140] : memref<1x256xf32, #tpu.memory_space<vmem>>, vector<1x256xf32>
    %cst_141 = arith.constant 0.000000e+00 : f32
    %403 = vector.broadcast %cst_141 : f32 to vector<1x256xf32>
    %404 = arith.maximumf %402, %403 : vector<1x256xf32>
    %405 = vector.shape_cast %404 : vector<1x256xf32> to vector<1x256xf32>
    %406 = vector.broadcast %405 : vector<1x256xf32> to vector<20x256xf32>
    %c0_142 = arith.constant 0 : index
    %c0_143 = arith.constant 0 : index
    %c0_144 = arith.constant 0 : index
    %407 = vector.load %arg17[%c0_142, %c0_143, %c0_144] : memref<1x20x256xf32, #tpu.memory_space<vmem>>, vector<1x20x256xf32>
    %408 = vector.shape_cast %407 : vector<1x20x256xf32> to vector<20x256xf32>
    %409 = vector.shape_cast %406 : vector<20x256xf32> to vector<1x20x256xf32>
    tpu.vector_store %arg17[%c0_142, %c0_143, %c0_144], %409 {strides = array<i32>} : memref<1x20x256xf32, #tpu.memory_space<vmem>>, vector<1x20x256xf32>,
    %c0_145 = arith.constant 0 : index
    %c0_146 = arith.constant 0 : index
    %c0_147 = arith.constant 0 : index
    %410 = vector.load %arg16[%c0_145, %c0_146, %c0_147] : memref<1x16x128xf32, #tpu.memory_space<vmem>>, vector<1x16x128xf32>
    %411 = vector.shape_cast %410 : vector<1x16x128xf32> to vector<16x128xf32>
    %c0_148 = arith.constant 0 : index
    %c0_149 = arith.constant 0 : index
    %412 = vector.load %arg8[%c0_148, %c0_149] : memref<128x256xf32, #tpu.memory_space<vmem>>, vector<128x256xf32>
    %cst_150 = arith.constant dense<0.000000e+00> : vector<16x256xf32>
    %413 = tpu.matmul %411, %412, %cst_150 {dimension_numbers = #tpu.dot_dimension_numbers<[1], [0], [0], [1], [0, 0, 1, 1], [], []>} : vector<16x128xf32>, vector<128x256xf32>, vector<16x256xf32> -> vector<16x256xf32>
    %414 = vector.broadcast %402 : vector<1x256xf32> to vector<16x256xf32>
    %415 = arith.addf %413, %414 : vector<16x256xf32>
    %cst_151 = arith.constant 0.000000e+00 : f32
    %416 = vector.broadcast %cst_151 : f32 to vector<16x256xf32>
    %417 = arith.maximumf %415, %416 : vector<16x256xf32>
    %c0_152 = arith.constant 0 : index
    %c2_153 = arith.constant 2 : index
    %c0_154 = arith.constant 0 : index
    %418 = vector.load %arg17[%c0_152, %c2_153, %c0_154] : memref<1x20x256xf32, #tpu.memory_space<vmem>>, vector<1x16x256xf32>
    %419 = vector.shape_cast %418 : vector<1x16x256xf32> to vector<16x256xf32>
    %420 = vector.shape_cast %417 : vector<16x256xf32> to vector<1x16x256xf32>
    tpu.vector_store %arg17[%c0_152, %c2_153, %c0_154], %420 {strides = array<i32>} : memref<1x20x256xf32, #tpu.memory_space<vmem>>, vector<1x16x256xf32>,
    %c0_155 = arith.constant 0 : index
    %c0_156 = arith.constant 0 : index
    %421 = vector.load %arg11[%c0_155, %c0_156] : memref<1x1024xf32, #tpu.memory_space<vmem>>, vector<1x1024xf32>
    %422 = vector.shape_cast %421 : vector<1x1024xf32> to vector<1x1024xf32>
    %423 = vector.broadcast %422 : vector<1x1024xf32> to vector<24x1024xf32>
    %c0_157 = arith.constant 0 : index
    %c0_158 = arith.constant 0 : index
    %c0_159 = arith.constant 0 : index
    %424 = vector.load %arg18[%c0_157, %c0_158, %c0_159] : memref<1x24x1024xf32, #tpu.memory_space<vmem>>, vector<1x24x1024xf32>
    %425 = vector.shape_cast %424 : vector<1x24x1024xf32> to vector<24x1024xf32>
    %426 = vector.shape_cast %423 : vector<24x1024xf32> to vector<1x24x1024xf32>
    tpu.vector_store %arg18[%c0_157, %c0_158, %c0_159], %426 {strides = array<i32>} : memref<1x24x1024xf32, #tpu.memory_space<vmem>>, vector<1x24x1024xf32>,
    %c0_160 = arith.constant 0 : index
    %c0_161 = arith.constant 0 : index
    %c0_162 = arith.constant 0 : index
    %427 = vector.load %arg17[%c0_160, %c0_161, %c0_162] : memref<1x20x256xf32, #tpu.memory_space<vmem>>, vector<1x20x256xf32>
    %428 = vector.shape_cast %427 : vector<1x20x256xf32> to vector<20x256xf32>
    %c0_163 = arith.constant 0 : index
    %c0_164 = arith.constant 0 : index
    %429 = vector.load %arg10[%c0_163, %c0_164] : memref<256x1024xf32, #tpu.memory_space<vmem>>, vector<256x1024xf32>
    %cst_165 = arith.constant dense<0.000000e+00> : vector<20x1024xf32>
    %430 = tpu.matmul %428, %429, %cst_165 {dimension_numbers = #tpu.dot_dimension_numbers<[1], [0], [0], [1], [0, 0, 1, 1], [], []>} : vector<20x256xf32>, vector<256x1024xf32>, vector<20x1024xf32> -> vector<20x1024xf32>
    %431 = vector.broadcast %421 : vector<1x1024xf32> to vector<20x1024xf32>
    %432 = arith.addf %430, %431 : vector<20x1024xf32>
    %c0_166 = arith.constant 0 : index
    %c2_167 = arith.constant 2 : index
    %c0_168 = arith.constant 0 : index
    %433 = vector.load %arg18[%c0_166, %c2_167, %c0_168] : memref<1x24x1024xf32, #tpu.memory_space<vmem>>, vector<1x20x1024xf32>
    %434 = vector.shape_cast %433 : vector<1x20x1024xf32> to vector<20x1024xf32>
    %435 = vector.shape_cast %432 : vector<20x1024xf32> to vector<1x20x1024xf32>
    tpu.vector_store %arg18[%c0_166, %c2_167, %c0_168], %435 {strides = array<i32>} : memref<1x24x1024xf32, #tpu.memory_space<vmem>>, vector<1x20x1024xf32>,
    %c0_169 = arith.constant 0 : index
    %c0_170 = arith.constant 0 : index
    %436 = vector.load %arg13[%c0_169, %c0_170] : memref<1x1xf32, #tpu.memory_space<vmem>>, vector<1x1xf32>
    %437 = vector.shape_cast %436 : vector<1x1xf32> to vector<1x1xf32>
    %438 = vector.broadcast %437 : vector<1x1xf32> to vector<26x1xf32>
    %c0_171 = arith.constant 0 : index
    %c0_172 = arith.constant 0 : index
    %c0_173 = arith.constant 0 : index
    %439 = vector.load %arg19[%c0_171, %c0_172, %c0_173] : memref<1x26x1xf32, #tpu.memory_space<vmem>>, vector<1x26x1xf32>
    %440 = vector.shape_cast %439 : vector<1x26x1xf32> to vector<26x1xf32>
    %441 = vector.shape_cast %438 : vector<26x1xf32> to vector<1x26x1xf32>
    tpu.vector_store %arg19[%c0_171, %c0_172, %c0_173], %441 {strides = array<i32>} : memref<1x26x1xf32, #tpu.memory_space<vmem>>, vector<1x26x1xf32>,
    %c0_174 = arith.constant 0 : index
    %c0_175 = arith.constant 0 : index
    %c0_176 = arith.constant 0 : index
    %442 = vector.load %arg18[%c0_174, %c0_175, %c0_176] : memref<1x24x1024xf32, #tpu.memory_space<vmem>>, vector<1x24x1024xf32>
    %443 = vector.shape_cast %442 : vector<1x24x1024xf32> to vector<24x1024xf32>
    %cst_177 = arith.constant 0.000000e+00 : f32
    %444 = vector.broadcast %cst_177 : f32 to vector<24x1024xf32>
    %445 = arith.maximumf %443, %444 : vector<24x1024xf32>
    %c0_178 = arith.constant 0 : index
    %c0_179 = arith.constant 0 : index
    %446 = vector.load %arg12[%c0_178, %c0_179] : memref<1x1024xf32, #tpu.memory_space<vmem>>, vector<1x1024xf32>
    %447 = vector.broadcast %446 : vector<1x1024xf32> to vector<24x1024xf32>
    %448 = arith.mulf %445, %447 : vector<24x1024xf32>
    %cst_180 = arith.constant dense<0.000000e+00> : vector<24xf32>
    %449 = vector.multi_reduction <add>, %448, %cst_180 [1] : vector<24x1024xf32> to vector<24xf32>
    %450 = vector.shape_cast %449 : vector<24xf32> to vector<24x1xf32>
    %451 = vector.broadcast %436 : vector<1x1xf32> to vector<24x1xf32>
    %452 = arith.addf %450, %451 : vector<24x1xf32>
    %c0_181 = arith.constant 0 : index
    %c1 = arith.constant 1 : index
    %c0_182 = arith.constant 0 : index
    %453 = vector.load %arg19[%c0_181, %c1, %c0_182] : memref<1x26x1xf32, #tpu.memory_space<vmem>>, vector<1x24x1xf32>
    %454 = vector.shape_cast %453 : vector<1x24x1xf32> to vector<24x1xf32>
    %455 = vector.shape_cast %452 : vector<24x1xf32> to vector<1x24x1xf32>
    tpu.vector_store %arg19[%c0_181, %c1, %c0_182], %455 {strides = array<i32>} : memref<1x26x1xf32, #tpu.memory_space<vmem>>, vector<1x24x1xf32>,
    return
  }
  func.func @transform_0(%arg0: i32) -> (i32, i32, i32) {
    %c0_i32 = arith.constant 0 : i32
    %c0_i32_0 = arith.constant 0 : i32
    %c0_i32_1 = arith.constant 0 : i32
    return %arg0, %c0_i32, %c0_i32_0 : i32, i32, i32
  }
  func.func @transform_1(%arg0: i32) -> (i32, i32) {
    %c0_i32 = arith.constant 0 : i32
    %c0_i32_0 = arith.constant 0 : i32
    %c0_i32_1 = arith.constant 0 : i32
    return %c0_i32, %c0_i32_0 : i32, i32
  }
  func.func @transform_2(%arg0: i32) -> (i32, i32) {
    %c0_i32 = arith.constant 0 : i32
    %c0_i32_0 = arith.constant 0 : i32
    %c0_i32_1 = arith.constant 0 : i32
    return %c0_i32, %c0_i32_0 : i32, i32
  }
  func.func @transform_3(%arg0: i32) -> (i32, i32) {
    %c0_i32 = arith.constant 0 : i32
    %c0_i32_0 = arith.constant 0 : i32
    %c0_i32_1 = arith.constant 0 : i32
    return %c0_i32, %c0_i32_0 : i32, i32
  }
  func.func @transform_4(%arg0: i32) -> (i32, i32) {
    %c0_i32 = arith.constant 0 : i32
    %c0_i32_0 = arith.constant 0 : i32
    %c0_i32_1 = arith.constant 0 : i32
    return %c0_i32, %c0_i32_0 : i32, i32
  }
  func.func @transform_5(%arg0: i32) -> (i32, i32) {
    %c0_i32 = arith.constant 0 : i32
    %c0_i32_0 = arith.constant 0 : i32
    %c0_i32_1 = arith.constant 0 : i32
    return %c0_i32, %c0_i32_0 : i32, i32
  }
  func.func @transform_6(%arg0: i32) -> (i32, i32) {
    %c0_i32 = arith.constant 0 : i32
    %c0_i32_0 = arith.constant 0 : i32
    %c0_i32_1 = arith.constant 0 : i32
    return %c0_i32, %c0_i32_0 : i32, i32
  }
  func.func @transform_7(%arg0: i32) -> (i32, i32) {
    %c0_i32 = arith.constant 0 : i32
    %c0_i32_0 = arith.constant 0 : i32
    %c0_i32_1 = arith.constant 0 : i32
    return %c0_i32, %c0_i32_0 : i32, i32
  }
  func.func @transform_8(%arg0: i32) -> (i32, i32) {
    %c0_i32 = arith.constant 0 : i32
    %c0_i32_0 = arith.constant 0 : i32
    %c0_i32_1 = arith.constant 0 : i32
    return %c0_i32, %c0_i32_0 : i32, i32
  }
  func.func @transform_9(%arg0: i32) -> (i32, i32) {
    %c0_i32 = arith.constant 0 : i32
    %c0_i32_0 = arith.constant 0 : i32
    %c0_i32_1 = arith.constant 0 : i32
    return %c0_i32, %c0_i32_0 : i32, i32
  }
  func.func @transform_10(%arg0: i32) -> (i32, i32) {
    %c0_i32 = arith.constant 0 : i32
    %c0_i32_0 = arith.constant 0 : i32
    %c0_i32_1 = arith.constant 0 : i32
    return %c0_i32, %c0_i32_0 : i32, i32
  }
  func.func @transform_11(%arg0: i32) -> (i32, i32) {
    %c0_i32 = arith.constant 0 : i32
    %c0_i32_0 = arith.constant 0 : i32
    %c0_i32_1 = arith.constant 0 : i32
    return %c0_i32, %c0_i32_0 : i32, i32
  }
  func.func @transform_12(%arg0: i32) -> (i32, i32) {
    %c0_i32 = arith.constant 0 : i32
    %c0_i32_0 = arith.constant 0 : i32
    %c0_i32_1 = arith.constant 0 : i32
    return %c0_i32, %c0_i32_0 : i32, i32
  }
  func.func @transform_13(%arg0: i32) -> (i32, i32, i32) {
    %c0_i32 = arith.constant 0 : i32
    %c0_i32_0 = arith.constant 0 : i32
    %c0_i32_1 = arith.constant 0 : i32
    return %arg0, %c0_i32, %c0_i32_0 : i32, i32, i32
  }
  func.func @transform_14(%arg0: i32) -> (i32, i32, i32) {
    %c0_i32 = arith.constant 0 : i32
    %c0_i32_0 = arith.constant 0 : i32
    %c0_i32_1 = arith.constant 0 : i32
    return %arg0, %c0_i32, %c0_i32_0 : i32, i32, i32
  }
  func.func @transform_15(%arg0: i32) -> (i32, i32, i32) {
    %c0_i32 = arith.constant 0 : i32
    %c0_i32_0 = arith.constant 0 : i32
    %c0_i32_1 = arith.constant 0 : i32
    return %arg0, %c0_i32, %c0_i32_0 : i32, i32, i32
  }
  func.func @transform_16(%arg0: i32) -> (i32, i32, i32) {
    %c0_i32 = arith.constant 0 : i32
    %c0_i32_0 = arith.constant 0 : i32
    %c0_i32_1 = arith.constant 0 : i32
    return %arg0, %c0_i32, %c0_i32_0 : i32, i32, i32
  }
  func.func @transform_17(%arg0: i32) -> (i32, i32, i32) {
    %c0_i32 = arith.constant 0 : i32
    %c0_i32_0 = arith.constant 0 : i32
    %c0_i32_1 = arith.constant 0 : i32
    return %arg0, %c0_i32, %c0_i32_0 : i32, i32, i32
  }
  func.func @transform_18(%arg0: i32) -> (i32, i32, i32) {
    %c0_i32 = arith.constant 0 : i32
    %c0_i32_0 = arith.constant 0 : i32
    %c0_i32_1 = arith.constant 0 : i32
    return %arg0, %c0_i32, %c0_i32_0 : i32, i32, i32
  }
}

</mosaic_0001>

<llo_original>
// kernel: tpu_custom_call.1
$region0: #{tpu_custom_call.1}
  #allocation0 [shape = 'u32[]', space=smem, size = 0x4, offset = 0x4, fixed_abs, tag = 'smem constant byte address 0x4 - core index']
  #allocation1 [shape = 'u32[144,128]{1,0:T(1,128)}', space=vmem, size = 0x12000, scoped, tag = 'internal scratch']
  #allocation2 [shape = 'f32[1,1]{1,0:T(1,128)S(1)}', space=vmem, size = 0x200, scoped, tag = 'scoped memory for tpu_custom_call.1']
  %s0 = inlined_call_operand.vmem [shape: f32[2,4,24], index: 0, kind: input, shape index: {}]
  %s1 = inlined_call_operand.vmem [shape: f32[5,32], index: 1, kind: input, shape index: {}]
  %s2 = inlined_call_operand.vmem [shape: f32[1,32], index: 2, kind: input, shape index: {}]
  %s3 = inlined_call_operand.vmem [shape: f32[160,64], index: 3, kind: input, shape index: {}]
  %s4 = inlined_call_operand.vmem [shape: f32[1,64], index: 4, kind: input, shape index: {}]
  %s5 = inlined_call_operand.hbm [shape: f32[192,128], index: 5, kind: input, shape index: {}]
  %s6 = inlined_call_operand.vmem [shape: f32[1,128], index: 6, kind: input, shape index: {}]
  %s7 = inlined_call_operand.vmem [shape: f32[128,256], index: 7, kind: input, shape index: {}]
  %s8 = inlined_call_operand.vmem [shape: f32[1,256], index: 8, kind: input, shape index: {}]
  %s9 = inlined_call_operand.hbm [shape: f32[256,1024], index: 9, kind: input, shape index: {}]
  %s10 = inlined_call_operand.vmem [shape: f32[1,1024], index: 10, kind: input, shape index: {}]
  %s11 = inlined_call_operand.vmem [shape: f32[1,1024], index: 11, kind: input, shape index: {}]
  %s12 = inlined_call_operand.<no memory space> [shape: f32[1,1], index: 12, kind: input, shape index: {}]
  %s13 = inlined_call_operand.vmem [shape: f32[2,64,32], index: 13, kind: output, shape index: {0}]
  %s14 = inlined_call_operand.vmem [shape: f32[2,36,64], index: 14, kind: output, shape index: {1}]
  %s15 = inlined_call_operand.hbm [shape: f32[2,16,128], index: 15, kind: output, shape index: {2}]
  %s16 = inlined_call_operand.vmem [shape: f32[2,20,256], index: 16, kind: output, shape index: {3}]
  %s17 = inlined_call_operand.hbm [shape: f32[2,24,1024], index: 17, kind: output, shape index: {4}]
  %s18 = inlined_call_operand.vmem [shape: f32[2,26,1], index: 18, kind: output, shape index: {5}]
  %19 = xla_tuple %s13, %s14, %s15, %s16, %s17, %s18
  %s20 = sld [smem:[#allocation0]]
  $region133: #{tpu_custom_call.1} parent=0
    _
  %s22 = ssub.s32 1, %s20
  %s23 = scalar_select 0, %s22, %s20
  %v24 = vstv %s12
  %25 = vst [vmem:[#allocation2] sm:$0x1] %v24
  $region1: #{tpu_custom_call.1} parent=0
    #allocation3 [shape = 'u8[98304]{0}', space=vmem, size = 0x18000, scoped, tag = 'input window, operand 5, single buffered']
    #allocation4 [shape = 's32[2]{0}', space=sflag, size = 0x8, scoped, tag = 'scoped memory for tpu_custom_call.1']
    #allocation5 [shape = 's32[2]{0}', space=sflag, size = 0x8, scoped, tag = 'scoped memory for tpu_custom_call.1']
    #allocation6 [shape = 'u8[1048576]{0}', space=vmem, size = 0x100000, scoped, tag = 'input window, operand 9, single buffered']
    #allocation7 [shape = 's32[1]{0}', space=sflag, size = 0x4, scoped, tag = 'scoped memory for tpu_custom_call.1']
    #allocation8 [shape = 'u8[16384]{0}', space=vmem, size = 0x4000, scoped, tag = 'output window, operand 2']
    #allocation9 [shape = 'u8[196608]{0}', space=vmem, size = 0x30000, scoped, tag = 'output window, operand 4']
    #allocation10 [shape = 's32[2]{0}', space=sflag, size = 0x8, scoped, tag = 'scoped memory for tpu_custom_call.1']
    %26 = vsyncpa [#allocation4], 0
    %27 = vsyncpa [#allocation7], 0
    %28 = vsyncpa [#allocation5], 0
    %s29 = scalar_lea.sflag [#allocation5], 1
    %30 = vsyncpa %s29, 0
    %31 = vsyncpa [#allocation10], 0
    %s32 = scalar_lea.sflag [#allocation10], 1
    %33 = vsyncpa %s32, 0
    loop: start=0, step=1, limit=4
    $region2: #{tpu_custom_call.1} parent=1 // loop_pre_header
      _
    $region3: #{tpu_custom_call.1} parent=1 // loop_header
      %s35 = sphi 0, %s39
      %p36 = scmp.ge.s32.totalorder %s35, 4
      %s45 = sphi 0, %s47
      %s48 = sphi 0, %s45
      %s49 = sphi 0, %s48
      %s65 = sphi 0, %s49
      %s69 = sphi 0, %s69
      %s71 = sphi 0, %s69
      %s72 = sphi 0, %s71
      %s86 = sphi 0, %s72
      %s90 = sphi 0, %s90
      %s92 = sphi 0, %s90
      %s93 = sphi 0, %s92
      %s107 = sphi 0, %s93
      %s111 = sphi 0, %s111
      %s113 = sphi 0, %s111
      %s114 = sphi 0, %s113
      %s128 = sphi 0, %s114
      %s132 = sphi 0, %s132
      %s134 = sphi 0, %s132
      %s135 = sphi 0, %s134
      %s149 = sphi 0, %s135
      %s153 = sphi 0, %s153
      %s155 = sphi 0, %s153
      %s156 = sphi 0, %s155
      %s170 = sphi 0, %s156
      %s174 = sphi 0, %s174
      %s176 = sphi 0, %s174
      %s177 = sphi 0, %s176
      %s191 = sphi 0, %s177
      %s195 = sphi 0, %s195
      %s197 = sphi 0, %s195
      %s198 = sphi 0, %s197
      %s212 = sphi 0, %s198
      %s216 = sphi 0, %s216
      %s218 = sphi 0, %s216
      %s219 = sphi 0, %s218
      %s233 = sphi 0, %s219
      %s237 = sphi 0, %s237
      %s239 = sphi 0, %s237
      %s240 = sphi 0, %s239
      %s254 = sphi 0, %s240
      %s258 = sphi 0, %s258
      %s260 = sphi 0, %s258
      %s261 = sphi 0, %s260
      %s275 = sphi 0, %s261
      %s279 = sphi 0, %s279
      %s281 = sphi 0, %s279
      %s282 = sphi 0, %s281
      %s296 = sphi 0, %s282
      %s300 = sphi 0, %s300
      %s302 = sphi 0, %s300
      %s303 = sphi 0, %s302
      %s317 = sphi 0, %s303
      %s323 = sphi 0, %s325
      %s326 = sphi 0, %s323
      %s327 = sphi 0, %s326
      %s343 = sphi 0, %s327
      %s349 = sphi 0, %s351
      %s352 = sphi 0, %s349
      %s353 = sphi 0, %s352
      %s369 = sphi 0, %s353
      %s375 = sphi 0, %s377
      %s378 = sphi 0, %s375
      %s379 = sphi 0, %s378
      %s395 = sphi 0, %s379
      %s401 = sphi 0, %s403
      %s404 = sphi 0, %s401
      %s405 = sphi 0, %s404
      %s421 = sphi 0, %s405
      %s427 = sphi 0, %s429
      %s430 = sphi 0, %s427
      %s431 = sphi 0, %s430
      %s447 = sphi 0, %s431
      %s453 = sphi 0, %s455
      %s456 = sphi 0, %s453
      %s457 = sphi 0, %s456
      %s473 = sphi 0, %s457
    $region4: #{tpu_custom_call.1} parent=1 // loop_header_branch
      %38 = sbr.rel (%p36) target = $region8
    $region5: #{tpu_custom_call.1} parent=1 // loop_body
      %s40 = ssub.s32 %s35, 1
      %s41 = ssub.s32 %s35, 2
      %s42 = sadd.s32 %s35, 1
      %s43 = ssub.s32 %s35, %s42
      %p44 = scmp.eq.s32.totalorder %s43, 0
      %s46 = sadd.s32 %s45, 1
      %s47 = scalar_select %p44, %s45, %s46
      %p50 = pneg %p44
      %p51 = scmp.eq.s32.totalorder %s35, 1
      %p52 = por %p50, %p51
      %p53 = scmp.ne.s32.totalorder %s45, %s48
      %p54 = scmp.eq.s32.totalorder %s35, 0
      %p55 = por %p53, %p54
      %p56 = scmp.ne.s32.totalorder %s45, %s48
      %p57 = scmp.eq.s32.totalorder %s40, 1
      %p58 = por %p56, %p57
      %p59 = scmp.ne.s32.totalorder %s48, %s49
      %p60 = scmp.eq.s32.totalorder %s40, 0
      %p61 = por %p59, %p60
      %p62 = scmp.ne.s32.totalorder %s48, %s49
      %p63 = scmp.eq.s32.totalorder %s41, 1
      %p64 = por %p62, %p63
      %p66 = scmp.ne.s32.totalorder %s49, %s65
      %p67 = scmp.eq.s32.totalorder %s41, 0
      %p68 = por %p66, %p67
      %s70 = sadd.s32 %s69, 1
      %p73 = scmp.eq.s32.totalorder %s35, 1
      %p74 = scmp.ne.s32.totalorder %s69, %s71
      %p75 = scmp.eq.s32.totalorder %s35, 0
      %p76 = por %p74, %p75
      %p77 = scmp.ne.s32.totalorder %s69, %s71
      %p78 = scmp.eq.s32.totalorder %s40, 1
      %p79 = por %p77, %p78
      %p80 = scmp.ne.s32.totalorder %s71, %s72
      %p81 = scmp.eq.s32.totalorder %s40, 0
      %p82 = por %p80, %p81
      %p83 = scmp.ne.s32.totalorder %s71, %s72
      %p84 = scmp.eq.s32.totalorder %s41, 1
      %p85 = por %p83, %p84
      %p87 = scmp.ne.s32.totalorder %s72, %s86
      %p88 = scmp.eq.s32.totalorder %s41, 0
      %p89 = por %p87, %p88
      %s91 = sadd.s32 %s90, 1
      %p94 = scmp.eq.s32.totalorder %s35, 1
      %p95 = scmp.ne.s32.totalorder %s90, %s92
      %p96 = scmp.eq.s32.totalorder %s35, 0
      %p97 = por %p95, %p96
      %p98 = scmp.ne.s32.totalorder %s90, %s92
      %p99 = scmp.eq.s32.totalorder %s40, 1
      %p100 = por %p98, %p99
      %p101 = scmp.ne.s32.totalorder %s92, %s93
      %p102 = scmp.eq.s32.totalorder %s40, 0
      %p103 = por %p101, %p102
      %p104 = scmp.ne.s32.totalorder %s92, %s93
      %p105 = scmp.eq.s32.totalorder %s41, 1
      %p106 = por %p104, %p105
      %p108 = scmp.ne.s32.totalorder %s93, %s107
      %p109 = scmp.eq.s32.totalorder %s41, 0
      %p110 = por %p108, %p109
      %s112 = sadd.s32 %s111, 1
      %p115 = scmp.eq.s32.totalorder %s35, 1
      %p116 = scmp.ne.s32.totalorder %s111, %s113
      %p117 = scmp.eq.s32.totalorder %s35, 0
      %p118 = por %p116, %p117
      %p119 = scmp.ne.s32.totalorder %s111, %s113
      %p120 = scmp.eq.s32.totalorder %s40, 1
      %p121 = por %p119, %p120
      %p122 = scmp.ne.s32.totalorder %s113, %s114
      %p123 = scmp.eq.s32.totalorder %s40, 0
      %p124 = por %p122, %p123
      %p125 = scmp.ne.s32.totalorder %s113, %s114
      %p126 = scmp.eq.s32.totalorder %s41, 1
      %p127 = por %p125, %p126
      %p129 = scmp.ne.s32.totalorder %s114, %s128
      %p130 = scmp.eq.s32.totalorder %s41, 0
      %p131 = por %p129, %p130
      %s133 = sadd.s32 %s132, 1
      %p136 = scmp.eq.s32.totalorder %s35, 1
      %p137 = scmp.ne.s32.totalorder %s132, %s134
      %p138 = scmp.eq.s32.totalorder %s35, 0
      %p139 = por %p137, %p138
      %p140 = scmp.ne.s32.totalorder %s132, %s134
      %p141 = scmp.eq.s32.totalorder %s40, 1
      %p142 = por %p140, %p141
      %p143 = scmp.ne.s32.totalorder %s134, %s135
      %p144 = scmp.eq.s32.totalorder %s40, 0
      %p145 = por %p143, %p144
      %p146 = scmp.ne.s32.totalorder %s134, %s135
      %p147 = scmp.eq.s32.totalorder %s41, 1
      %p148 = por %p146, %p147
      %p150 = scmp.ne.s32.totalorder %s135, %s149
      %p151 = scmp.eq.s32.totalorder %s41, 0
      %p152 = por %p150, %p151
      %s154 = sadd.s32 %s153, 1
      %p157 = scmp.eq.s32.totalorder %s35, 1
      %p158 = scmp.ne.s32.totalorder %s153, %s155
      %p159 = scmp.eq.s32.totalorder %s35, 0
      %p160 = por %p158, %p159
      %p161 = scmp.ne.s32.totalorder %s153, %s155
      %p162 = scmp.eq.s32.totalorder %s40, 1
      %p163 = por %p161, %p162
      %p164 = scmp.ne.s32.totalorder %s155, %s156
      %p165 = scmp.eq.s32.totalorder %s40, 0
      %p166 = por %p164, %p165
      %p167 = scmp.ne.s32.totalorder %s155, %s156
      %p168 = scmp.eq.s32.totalorder %s41, 1
      %p169 = por %p167, %p168
      %p171 = scmp.ne.s32.totalorder %s156, %s170
      %p172 = scmp.eq.s32.totalorder %s41, 0
      %p173 = por %p171, %p172
      %s175 = sadd.s32 %s174, 1
      %p178 = scmp.eq.s32.totalorder %s35, 1
      %p179 = scmp.ne.s32.totalorder %s174, %s176
      %p180 = scmp.eq.s32.totalorder %s35, 0
      %p181 = por %p179, %p180
      %p182 = scmp.ne.s32.totalorder %s174, %s176
      %p183 = scmp.eq.s32.totalorder %s40, 1
      %p184 = por %p182, %p183
      %p185 = scmp.ne.s32.totalorder %s176, %s177
      %p186 = scmp.eq.s32.totalorder %s40, 0
      %p187 = por %p185, %p186
      %p188 = scmp.ne.s32.totalorder %s176, %s177
      %p189 = scmp.eq.s32.totalorder %s41, 1
      %p190 = por %p188, %p189
      %p192 = scmp.ne.s32.totalorder %s177, %s191
      %p193 = scmp.eq.s32.totalorder %s41, 0
      %p194 = por %p192, %p193
      %s196 = sadd.s32 %s195, 1
      %p199 = scmp.eq.s32.totalorder %s35, 1
      %p200 = scmp.ne.s32.totalorder %s195, %s197
      %p201 = scmp.eq.s32.totalorder %s35, 0
      %p202 = por %p200, %p201
      %p203 = scmp.ne.s32.totalorder %s195, %s197
      %p204 = scmp.eq.s32.totalorder %s40, 1
      %p205 = por %p203, %p204
      %p206 = scmp.ne.s32.totalorder %s197, %s198
      %p207 = scmp.eq.s32.totalorder %s40, 0
      %p208 = por %p206, %p207
      %p209 = scmp.ne.s32.totalorder %s197, %s198
      %p210 = scmp.eq.s32.totalorder %s41, 1
      %p211 = por %p209, %p210
      %p213 = scmp.ne.s32.totalorder %s198, %s212
      %p214 = scmp.eq.s32.totalorder %s41, 0
      %p215 = por %p213, %p214
      %s217 = sadd.s32 %s216, 1
      %p220 = scmp.eq.s32.totalorder %s35, 1
      %p221 = scmp.ne.s32.totalorder %s216, %s218
      %p222 = scmp.eq.s32.totalorder %s35, 0
      %p223 = por %p221, %p222
      %p224 = scmp.ne.s32.totalorder %s216, %s218
      %p225 = scmp.eq.s32.totalorder %s40, 1
      %p226 = por %p224, %p225
      %p227 = scmp.ne.s32.totalorder %s218, %s219
      %p228 = scmp.eq.s32.totalorder %s40, 0
      %p229 = por %p227, %p228
      %p230 = scmp.ne.s32.totalorder %s218, %s219
      %p231 = scmp.eq.s32.totalorder %s41, 1
      %p232 = por %p230, %p231
      %p234 = scmp.ne.s32.totalorder %s219, %s233
      %p235 = scmp.eq.s32.totalorder %s41, 0
      %p236 = por %p234, %p235
      %s238 = sadd.s32 %s237, 1
      %p241 = scmp.eq.s32.totalorder %s35, 1
      %p242 = scmp.ne.s32.totalorder %s237, %s239
      %p243 = scmp.eq.s32.totalorder %s35, 0
      %p244 = por %p242, %p243
      %p245 = scmp.ne.s32.totalorder %s237, %s239
      %p246 = scmp.eq.s32.totalorder %s40, 1
      %p247 = por %p245, %p246
      %p248 = scmp.ne.s32.totalorder %s239, %s240
      %p249 = scmp.eq.s32.totalorder %s40, 0
      %p250 = por %p248, %p249
      %p251 = scmp.ne.s32.totalorder %s239, %s240
      %p252 = scmp.eq.s32.totalorder %s41, 1
      %p253 = por %p251, %p252
      %p255 = scmp.ne.s32.totalorder %s240, %s254
      %p256 = scmp.eq.s32.totalorder %s41, 0
      %p257 = por %p255, %p256
      %s259 = sadd.s32 %s258, 1
      %p262 = scmp.eq.s32.totalorder %s35, 1
      %p263 = scmp.ne.s32.totalorder %s258, %s260
      %p264 = scmp.eq.s32.totalorder %s35, 0
      %p265 = por %p263, %p264
      %p266 = scmp.ne.s32.totalorder %s258, %s260
      %p267 = scmp.eq.s32.totalorder %s40, 1
      %p268 = por %p266, %p267
      %p269 = scmp.ne.s32.totalorder %s260, %s261
      %p270 = scmp.eq.s32.totalorder %s40, 0
      %p271 = por %p269, %p270
      %p272 = scmp.ne.s32.totalorder %s260, %s261
      %p273 = scmp.eq.s32.totalorder %s41, 1
      %p274 = por %p272, %p273
      %p276 = scmp.ne.s32.totalorder %s261, %s275
      %p277 = scmp.eq.s32.totalorder %s41, 0
      %p278 = por %p276, %p277
      %s280 = sadd.s32 %s279, 1
      %p283 = scmp.eq.s32.totalorder %s35, 1
      %p284 = scmp.ne.s32.totalorder %s279, %s281
      %p285 = scmp.eq.s32.totalorder %s35, 0
      %p286 = por %p284, %p285
      %p287 = scmp.ne.s32.totalorder %s279, %s281
      %p288 = scmp.eq.s32.totalorder %s40, 1
      %p289 = por %p287, %p288
      %p290 = scmp.ne.s32.totalorder %s281, %s282
      %p291 = scmp.eq.s32.totalorder %s40, 0
      %p292 = por %p290, %p291
      %p293 = scmp.ne.s32.totalorder %s281, %s282
      %p294 = scmp.eq.s32.totalorder %s41, 1
      %p295 = por %p293, %p294
      %p297 = scmp.ne.s32.totalorder %s282, %s296
      %p298 = scmp.eq.s32.totalorder %s41, 0
      %p299 = por %p297, %p298
      %s301 = sadd.s32 %s300, 1
      %p304 = scmp.eq.s32.totalorder %s35, 1
      %p305 = scmp.ne.s32.totalorder %s300, %s302
      %p306 = scmp.eq.s32.totalorder %s35, 0
      %p307 = por %p305, %p306
      %p308 = scmp.ne.s32.totalorder %s300, %s302
      %p309 = scmp.eq.s32.totalorder %s40, 1
      %p310 = por %p308, %p309
      %p311 = scmp.ne.s32.totalorder %s302, %s303
      %p312 = scmp.eq.s32.totalorder %s40, 0
      %p313 = por %p311, %p312
      %p314 = scmp.ne.s32.totalorder %s302, %s303
      %p315 = scmp.eq.s32.totalorder %s41, 1
      %p316 = por %p314, %p315
      %p318 = scmp.ne.s32.totalorder %s303, %s317
      %p319 = scmp.eq.s32.totalorder %s41, 0
      %p320 = por %p318, %p319
      %s321 = ssub.s32 %s35, %s42
      %p322 = scmp.eq.s32.totalorder %s321, 0
      %s324 = sadd.s32 %s323, 1
      %s325 = scalar_select %p322, %s323, %s324
      %p328 = pneg %p322
      %p329 = scmp.eq.s32.totalorder %s35, 1
      %p330 = por %p328, %p329
      %p331 = scmp.ne.s32.totalorder %s323, %s326
      %p332 = scmp.eq.s32.totalorder %s35, 0
      %p333 = por %p331, %p332
      %p334 = scmp.ne.s32.totalorder %s323, %s326
      %p335 = scmp.eq.s32.totalorder %s40, 1
      %p336 = por %p334, %p335
      %p337 = scmp.ne.s32.totalorder %s326, %s327
      %p338 = scmp.eq.s32.totalorder %s40, 0
      %p339 = por %p337, %p338
      %p340 = scmp.ne.s32.totalorder %s326, %s327
      %p341 = scmp.eq.s32.totalorder %s41, 1
      %p342 = por %p340, %p341
      %p344 = scmp.ne.s32.totalorder %s327, %s343
      %p345 = scmp.eq.s32.totalorder %s41, 0
      %p346 = por %p344, %p345
      %s347 = ssub.s32 %s35, %s42
      %p348 = scmp.eq.s32.totalorder %s347, 0
      %s350 = sadd.s32 %s349, 1
      %s351 = scalar_select %p348, %s349, %s350
      %p354 = pneg %p348
      %p355 = scmp.eq.s32.totalorder %s35, 1
      %p356 = por %p354, %p355
      %p357 = scmp.ne.s32.totalorder %s349, %s352
      %p358 = scmp.eq.s32.totalorder %s35, 0
      %p359 = por %p357, %p358
      %p360 = scmp.ne.s32.totalorder %s349, %s352
      %p361 = scmp.eq.s32.totalorder %s40, 1
      %p362 = por %p360, %p361
      %p363 = scmp.ne.s32.totalorder %s352, %s353
      %p364 = scmp.eq.s32.totalorder %s40, 0
      %p365 = por %p363, %p364
      %p366 = scmp.ne.s32.totalorder %s352, %s353
      %p367 = scmp.eq.s32.totalorder %s41, 1
      %p368 = por %p366, %p367
      %p370 = scmp.ne.s32.totalorder %s353, %s369
      %p371 = scmp.eq.s32.totalorder %s41, 0
      %p372 = por %p370, %p371
      %s373 = ssub.s32 %s35, %s42
      %p374 = scmp.eq.s32.totalorder %s373, 0
      %s376 = sadd.s32 %s375, 1
      %s377 = scalar_select %p374, %s375, %s376
      %p380 = pneg %p374
      %p381 = scmp.eq.s32.totalorder %s35, 1
      %p382 = por %p380, %p381
      %p383 = scmp.ne.s32.totalorder %s375, %s378
      %p384 = scmp.eq.s32.totalorder %s35, 0
      %p385 = por %p383, %p384
      %p386 = scmp.ne.s32.totalorder %s375, %s378
      %p387 = scmp.eq.s32.totalorder %s40, 1
      %p388 = por %p386, %p387
      %p389 = scmp.ne.s32.totalorder %s378, %s379
      %p390 = scmp.eq.s32.totalorder %s40, 0
      %p391 = por %p389, %p390
      %p392 = scmp.ne.s32.totalorder %s378, %s379
      %p393 = scmp.eq.s32.totalorder %s41, 1
      %p394 = por %p392, %p393
      %p396 = scmp.ne.s32.totalorder %s379, %s395
      %p397 = scmp.eq.s32.totalorder %s41, 0
      %p398 = por %p396, %p397
      %s399 = ssub.s32 %s35, %s42
      %p400 = scmp.eq.s32.totalorder %s399, 0
      %s402 = sadd.s32 %s401, 1
      %s403 = scalar_select %p400, %s401, %s402
      %p406 = pneg %p400
      %p407 = scmp.eq.s32.totalorder %s35, 1
      %p408 = por %p406, %p407
      %p409 = scmp.ne.s32.totalorder %s401, %s404
      %p410 = scmp.eq.s32.totalorder %s35, 0
      %p411 = por %p409, %p410
      %p412 = scmp.ne.s32.totalorder %s401, %s404
      %p413 = scmp.eq.s32.totalorder %s40, 1
      %p414 = por %p412, %p413
      %p415 = scmp.ne.s32.totalorder %s404, %s405
      %p416 = scmp.eq.s32.totalorder %s40, 0
      %p417 = por %p415, %p416
      %p418 = scmp.ne.s32.totalorder %s404, %s405
      %p419 = scmp.eq.s32.totalorder %s41, 1
      %p420 = por %p418, %p419
      %p422 = scmp.ne.s32.totalorder %s405, %s421
      %p423 = scmp.eq.s32.totalorder %s41, 0
      %p424 = por %p422, %p423
      %s425 = ssub.s32 %s35, %s42
      %p426 = scmp.eq.s32.totalorder %s425, 0
      %s428 = sadd.s32 %s427, 1
      %s429 = scalar_select %p426, %s427, %s428
      %p432 = pneg %p426
      %p433 = scmp.eq.s32.totalorder %s35, 1
      %p434 = por %p432, %p433
      %p435 = scmp.ne.s32.totalorder %s427, %s430
      %p436 = scmp.eq.s32.totalorder %s35, 0
      %p437 = por %p435, %p436
      %p438 = scmp.ne.s32.totalorder %s427, %s430
      %p439 = scmp.eq.s32.totalorder %s40, 1
      %p440 = por %p438, %p439
      %p441 = scmp.ne.s32.totalorder %s430, %s431
      %p442 = scmp.eq.s32.totalorder %s40, 0
      %p443 = por %p441, %p442
      %p444 = scmp.ne.s32.totalorder %s430, %s431
      %p445 = scmp.eq.s32.totalorder %s41, 1
      %p446 = por %p444, %p445
      %p448 = scmp.ne.s32.totalorder %s431, %s447
      %p449 = scmp.eq.s32.totalorder %s41, 0
      %p450 = por %p448, %p449
      %s451 = ssub.s32 %s35, %s42
      %p452 = scmp.eq.s32.totalorder %s451, 0
      %s454 = sadd.s32 %s453, 1
      %s455 = scalar_select %p452, %s453, %s454
      %p458 = pneg %p452
      %p459 = scmp.eq.s32.totalorder %s35, 1
      %p460 = por %p458, %p459
      %p461 = scmp.ne.s32.totalorder %s453, %s456
      %p462 = scmp.eq.s32.totalorder %s35, 0
      %p463 = por %p461, %p462
      %p464 = scmp.ne.s32.totalorder %s453, %s456
      %p465 = scmp.eq.s32.totalorder %s40, 1
      %p466 = por %p464, %p465
      %p467 = scmp.ne.s32.totalorder %s456, %s457
      %p468 = scmp.eq.s32.totalorder %s40, 0
      %p469 = por %p467, %p468
      %p470 = scmp.ne.s32.totalorder %s456, %s457
      %p471 = scmp.eq.s32.totalorder %s41, 1
      %p472 = por %p470, %p471
      %p474 = scmp.ne.s32.totalorder %s457, %s473
      %p475 = scmp.eq.s32.totalorder %s41, 0
      %p476 = por %p474, %p475
      %p477 = scmp.le.s32.totalorder 1, %s35
      %p478 = scmp.lt.s32.totalorder %s35, 3
      %p479 = pnand %p477, %p478
      %p480 = pneg %p479
      // Predicated region
      $region9: #{tpu_custom_call.1} parent=5 // pred_check
        _
      $region10: #{tpu_custom_call.1} parent=5 // pred_check_branch
        %482 = sbr.rel (%p479) target = $region12
      $region11: #{tpu_custom_call.1} parent=5 // pred_region
        %s483 = ssub.s32 %s35, 1
        // Predicated region
        $region13: #{tpu_custom_call.1} parent=11 // pred_check
          %p484 = pneg %p82
        $region14: #{tpu_custom_call.1} parent=11 // pred_check_branch
          %486 = sbr.rel (%p484) target = $region16
        $region15: #{tpu_custom_call.1} parent=11 // pred_region
          _
        $region16: #{tpu_custom_call.1} parent=11 // pred_fallthru
          _
        // Predicated region
        $region17: #{tpu_custom_call.1} parent=11 // pred_check
          %p487 = pneg %p103
        $region18: #{tpu_custom_call.1} parent=11 // pred_check_branch
          %489 = sbr.rel (%p487) target = $region20
        $region19: #{tpu_custom_call.1} parent=11 // pred_region
          _
        $region20: #{tpu_custom_call.1} parent=11 // pred_fallthru
          _
        // Predicated region
        $region21: #{tpu_custom_call.1} parent=11 // pred_check
          %p490 = pneg %p124
        $region22: #{tpu_custom_call.1} parent=11 // pred_check_branch
          %492 = sbr.rel (%p490) target = $region24
        $region23: #{tpu_custom_call.1} parent=11 // pred_region
          _
        $region24: #{tpu_custom_call.1} parent=11 // pred_fallthru
          _
        // Predicated region
        $region25: #{tpu_custom_call.1} parent=11 // pred_check
          %p493 = pneg %p145
        $region26: #{tpu_custom_call.1} parent=11 // pred_check_branch
          %495 = sbr.rel (%p493) target = $region28
        $region27: #{tpu_custom_call.1} parent=11 // pred_region
          _
        $region28: #{tpu_custom_call.1} parent=11 // pred_fallthru
          _
        // Predicated region
        $region29: #{tpu_custom_call.1} parent=11 // pred_check
          %p496 = pneg %p166
        $region30: #{tpu_custom_call.1} parent=11 // pred_check_branch
          %498 = sbr.rel (%p496) target = $region32
        $region31: #{tpu_custom_call.1} parent=11 // pred_region
          %s500 = ssub.s32 3072, 3072
          %501 = vsyncadd [#allocation4], %s500
          %s502 = sshll.u32 [#allocation3], 4
          %s503 = int_to_ptr.vmem [resolvable:$true] %s502
          %508 = dma.hbm_to_vmem [thread:$0]  %s5, 3072, %s503, [#allocation4], 128, 128, 8
        $region32: #{tpu_custom_call.1} parent=11 // pred_fallthru
          _
        // Predicated region
        $region33: #{tpu_custom_call.1} parent=11 // pred_check
          %p509 = pneg %p187
        $region34: #{tpu_custom_call.1} parent=11 // pred_check_branch
          %511 = sbr.rel (%p509) target = $region36
        $region35: #{tpu_custom_call.1} parent=11 // pred_region
          _
        $region36: #{tpu_custom_call.1} parent=11 // pred_fallthru
          _
        // Predicated region
        $region37: #{tpu_custom_call.1} parent=11 // pred_check
          %p512 = pneg %p208
        $region38: #{tpu_custom_call.1} parent=11 // pred_check_branch
          %514 = sbr.rel (%p512) target = $region40
        $region39: #{tpu_custom_call.1} parent=11 // pred_region
          _
        $region40: #{tpu_custom_call.1} parent=11 // pred_fallthru
          _
        // Predicated region
        $region41: #{tpu_custom_call.1} parent=11 // pred_check
          %p515 = pneg %p229
        $region42: #{tpu_custom_call.1} parent=11 // pred_check_branch
          %517 = sbr.rel (%p515) target = $region44
        $region43: #{tpu_custom_call.1} parent=11 // pred_region
          _
        $region44: #{tpu_custom_call.1} parent=11 // pred_fallthru
          _
        // Predicated region
        $region45: #{tpu_custom_call.1} parent=11 // pred_check
          %p518 = pneg %p250
        $region46: #{tpu_custom_call.1} parent=11 // pred_check_branch
          %520 = sbr.rel (%p518) target = $region48
        $region47: #{tpu_custom_call.1} parent=11 // pred_region
          %s522 = ssub.s32 32768, 32768
          %523 = vsyncadd [#allocation7], %s522
          %s524 = sshll.u32 [#allocation6], 4
          %s525 = int_to_ptr.vmem [resolvable:$true] %s524
          %530 = dma.hbm_to_vmem [thread:$0]  %s9, 32768, %s525, [#allocation7], 1024, 1024, 64
        $region48: #{tpu_custom_call.1} parent=11 // pred_fallthru
          _
        // Predicated region
        $region49: #{tpu_custom_call.1} parent=11 // pred_check
          %p531 = pneg %p271
        $region50: #{tpu_custom_call.1} parent=11 // pred_check_branch
          %533 = sbr.rel (%p531) target = $region52
        $region51: #{tpu_custom_call.1} parent=11 // pred_region
          _
        $region52: #{tpu_custom_call.1} parent=11 // pred_fallthru
          _
        // Predicated region
        $region53: #{tpu_custom_call.1} parent=11 // pred_check
          %p534 = pneg %p292
        $region54: #{tpu_custom_call.1} parent=11 // pred_check_branch
          %536 = sbr.rel (%p534) target = $region56
        $region55: #{tpu_custom_call.1} parent=11 // pred_region
          _
        $region56: #{tpu_custom_call.1} parent=11 // pred_fallthru
          _
        // Predicated region
        $region57: #{tpu_custom_call.1} parent=11 // pred_check
          %p537 = pneg %p313
        $region58: #{tpu_custom_call.1} parent=11 // pred_check_branch
          %539 = sbr.rel (%p537) target = $region60
        $region59: #{tpu_custom_call.1} parent=11 // pred_region
          _
        $region60: #{tpu_custom_call.1} parent=11 // pred_fallthru
          _
      $region12: #{tpu_custom_call.1} parent=5 // pred_fallthru
        _
      %p540 = scmp.lt.s32.totalorder %s35, 2
      // Predicated region
      $region61: #{tpu_custom_call.1} parent=5 // pred_check
        %p541 = pneg %p540
      $region62: #{tpu_custom_call.1} parent=5 // pred_check_branch
        %543 = sbr.rel (%p541) target = $region64
      $region63: #{tpu_custom_call.1} parent=5 // pred_region
        // Predicated region
        $region65: #{tpu_custom_call.1} parent=63 // pred_check
          %p544 = pneg %p55
        $region66: #{tpu_custom_call.1} parent=63 // pred_check_branch
          %546 = sbr.rel (%p544) target = $region68
        $region67: #{tpu_custom_call.1} parent=63 // pred_region
          %p547 = scmp.lt.s32.totalorder %s35, 1
          %s548 = scalar_select %p547, %s35, 1
          %s549 = smul.addr %s548, 4
          %s550 = scalar_lea.vmem %s0, %s549
        $region68: #{tpu_custom_call.1} parent=63 // pred_fallthru
          _
      $region64: #{tpu_custom_call.1} parent=5 // pred_fallthru
        _
      %p551 = scmp.le.s32.totalorder 1, %s35
      %p552 = scmp.lt.s32.totalorder %s35, 3
      %p553 = pnand %p551, %p552
      %p554 = pneg %p553
      // Predicated region
      $region69: #{tpu_custom_call.1} parent=5 // pred_check
        _
      $region70: #{tpu_custom_call.1} parent=5 // pred_check_branch
        %556 = sbr.rel (%p553) target = $region72
      $region71: #{tpu_custom_call.1} parent=5 // pred_region
        %s557 = ssub.s32 %s35, 1
        // Predicated region
        $region73: #{tpu_custom_call.1} parent=71 // pred_check
          %p558 = pneg %p166
        $region74: #{tpu_custom_call.1} parent=71 // pred_check_branch
          %560 = sbr.rel (%p558) target = $region76
        $region75: #{tpu_custom_call.1} parent=71 // pred_region
          %561 = dma.done [#allocation4], 3072
        $region76: #{tpu_custom_call.1} parent=71 // pred_fallthru
          _
        // Predicated region
        $region77: #{tpu_custom_call.1} parent=71 // pred_check
          %p562 = pneg %p250
        $region78: #{tpu_custom_call.1} parent=71 // pred_check_branch
          %564 = sbr.rel (%p562) target = $region80
        $region79: #{tpu_custom_call.1} parent=71 // pred_region
          %565 = dma.done [#allocation7], 32768
        $region80: #{tpu_custom_call.1} parent=71 // pred_fallthru
          _
        %p566 = scmp.lt.s32.totalorder %s40, 1
        %s567 = scalar_select %p566, %s40, 1
        %s568 = smul.addr %s567, 4
        %s569 = scalar_lea.vmem %s0, %s568
        %p570 = pneg %p61
        %p571 = pneg %p58
        %p572 = pneg %p82
        %p573 = pneg %p79
        %p574 = pneg %p103
        %p575 = pneg %p100
        %p576 = pneg %p124
        %p577 = pneg %p121
        %p578 = pneg %p145
        %p579 = pneg %p142
        %p580 = pneg %p166
        %p581 = pneg %p163
        %p582 = pneg %p187
        %p583 = pneg %p184
        %p584 = pneg %p208
        %p585 = pneg %p205
        %p586 = pneg %p229
        %p587 = pneg %p226
        %p588 = pneg %p250
        %p589 = pneg %p247
        %p590 = pneg %p271
        %p591 = pneg %p268
        %p592 = pneg %p292
        %p593 = pneg %p289
        %p594 = pneg %p313
        %p595 = pneg %p310
        %p596 = pneg %p339
        %p597 = pneg %p336
        %p598 = scmp.lt.s32.totalorder %s40, 1
        %s599 = scalar_select %p598, %s40, 1
        %s600 = smul.addr %s599, 8
        %s601 = smul.addr %s600, 8
        %s602 = scalar_lea.vmem %s13, %s601
        %p603 = pneg %p365
        %p604 = pneg %p362
        %p605 = scmp.lt.s32.totalorder %s40, 1
        %s606 = scalar_select %p605, %s40, 1
        %s607 = smul.addr %s606, 5
        %s608 = smul.addr %s607, 8
        %s609 = scalar_lea.vmem %s14, %s608
        %p610 = pneg %p391
        %p611 = pneg %p388
        %s612 = sand.u32 %s378, 1
        %s613 = scalar_lea.sflag [#allocation5], %s612
        %s614 = sand.u32 %s378, 1
        %s615 = smul.addr %s614, 16
        %s616 = scalar_lea.vmem [#allocation8], %s615
        %p617 = pneg %p417
        %p618 = pneg %p414
        %p619 = scmp.lt.s32.totalorder %s40, 1
        %s620 = scalar_select %p619, %s40, 1
        %s621 = smul.addr %s620, 6
        %s622 = smul.addr %s621, 8
        %s623 = scalar_lea.vmem %s16, %s622
        %p624 = pneg %p443
        %p625 = pneg %p440
        %s626 = sand.u32 %s430, 1
        %s627 = scalar_lea.sflag [#allocation10], %s626
        %s628 = sand.u32 %s430, 1
        %s629 = smul.addr %s628, 192
        %s630 = scalar_lea.vmem [#allocation9], %s629
        %p631 = pneg %p469
        %p632 = pneg %p466
        %p633 = scmp.lt.s32.totalorder %s40, 1
        %s634 = scalar_select %p633, %s40, 1
        %s635 = smul.addr %s634, 4
        %s636 = smul.addr %s635, 8
        %s637 = scalar_lea.vmem %s18, %s636
        %p638 = scmp.lt.s32.totalorder %s40, 1
        %s639 = scalar_select %p638, %s40, 1
        %s640 = smul.addr %s639, 4
        %s641 = scalar_lea.vmem %s0, %s640
        %p642 = scmp.lt.s32.totalorder %s40, 1
        %s643 = scalar_select %p642, %s40, 1
        %s644 = smul.addr %s643, 8
        %s645 = smul.addr %s644, 8
        %s646 = scalar_lea.vmem %s13, %s645
        %p647 = scmp.lt.s32.totalorder %s40, 1
        %s648 = scalar_select %p647, %s40, 1
        %s649 = smul.addr %s648, 5
        %s650 = smul.addr %s649, 8
        %s651 = scalar_lea.vmem %s14, %s650
        %p652 = scmp.lt.s32.totalorder %s40, 1
        %s653 = scalar_select %p652, %s40, 1
        %s654 = smul.addr %s653, 6
        %s655 = smul.addr %s654, 8
        %s656 = scalar_lea.vmem %s16, %s655
        %p657 = scmp.lt.s32.totalorder %s40, 1
        %s658 = scalar_select %p657, %s40, 1
        %s659 = smul.addr %s658, 4
        %s660 = smul.addr %s659, 8
        %s661 = scalar_lea.vmem %s18, %s660
        %v662 = vld [vmem:[%s2] sm:$0x1]
        %v663 = vmax.f32 %v662, 0.0
        %v665 = vlaneseq
        %v666 = vshrl.u32 %v665, 7
        %v667 = vsub.s32 0, %v666
        %v668 = vrot.slane %v663, %v667
        %vm670 = vcmask 261120
        %671 = vst.msk [vmem:[%s646] sm:$0xff] %vm670, %v668
        %672 = vst.msk [vmem:[%s646 + $0x8] sm:$0xff] %vm670, %v668
        %673 = vst.msk [vmem:[%s646 + $0x10] sm:$0xff] %vm670, %v668
        %674 = vst.msk [vmem:[%s646 + $0x18] sm:$0xff] %vm670, %v668
        %675 = vst.msk [vmem:[%s646 + $0x20] sm:$0xff] %vm670, %v668
        %676 = vst.msk [vmem:[%s646 + $0x28] sm:$0xff] %vm670, %v668
        %677 = vst.msk [vmem:[%s646 + $0x30] sm:$0xff] %vm670, %v668
        %678 = vst.msk [vmem:[%s646 + $0x38] sm:$0xff] %vm670, %v668
        %v679 = vld [vmem:[%s641] sm:$0xf]
        %v680 = vld [vmem:[%s1] sm:$0x1f]
        %682 = vset.pattern.permute.xlu0 0
        %683 = vperm.xlu0 %682, %v679
        %v684 = vpop.permute.xlu0 %683
        %v686 = vlaneseq
        %v687 = vshrl.u32 %v686, 7
        %v688 = vsub.s32 2, %v687
        %v689 = vrot.slane %v680, %v688
        %v690 = vmul.f32 %v684, %v689
        %691 = vset.pattern.permute.xlu0 1
        %692 = vperm.xlu0 %691, %v679
        %v693 = vpop.permute.xlu0 %692
        %v695 = vlaneseq
        %v696 = vshrl.u32 %v695, 7
        %v697 = vsub.s32 3, %v696
        %v698 = vrot.slane %v680, %v697
        %v699 = vmul.f32 %v693, %v698
        %v700 = vadd.f32 %v690, %v699
        %701 = vset.pattern.permute.xlu0 2
        %702 = vperm.xlu0 %701, %v679
        %v703 = vpop.permute.xlu0 %702
        %v705 = vlaneseq
        %v706 = vshrl.u32 %v705, 7
        %v707 = vsub.s32 4, %v706
        %v708 = vrot.slane %v680, %v707
        %v709 = vmul.f32 %v703, %v708
        %v710 = vadd.f32 %v700, %v709
        %v712 = vlaneseq
        %v713 = vshrl.u32 %v712, 7
        %v714 = vsub.s32 0, %v713
        %v715 = vrot.slane %v662, %v714
        %v717 = vadd.f32 %v710, %v715
        %v718 = vmax.f32 %v717, 0.0
        %vm719 = vcmask 257024
        %720 = vst.msk [vmem:[%s646 + $0x2] sm:$0xf] %vm719, %v718
        %v721 = vlaneseq
        %v722 = vshrl.u32 %v721, 7
        %v723 = vsub.s32 0, %v722
        %v724 = vrot.slane %v680, %v723
        %v725 = vmul.f32 %v693, %v724
        %v726 = vlaneseq
        %v727 = vshrl.u32 %v726, 7
        %v728 = vsub.s32 1, %v727
        %v729 = vrot.slane %v680, %v728
        %v730 = vmul.f32 %v703, %v729
        %v731 = vadd.f32 %v725, %v730
        %732 = vset.pattern.permute.xlu0 3
        %733 = vperm.xlu0 %732, %v679
        %v734 = vpop.permute.xlu0 %733
        %v736 = vmul.f32 %v734, %v689
        %v737 = vadd.f32 %v731, %v736
        %738 = vset.pattern.permute.xlu0 4
        %739 = vperm.xlu0 %738, %v679
        %v740 = vpop.permute.xlu0 %739
        %v742 = vmul.f32 %v740, %v698
        %v743 = vadd.f32 %v737, %v742
        %744 = vset.pattern.permute.xlu0 5
        %745 = vperm.xlu0 %744, %v679
        %v746 = vpop.permute.xlu0 %745
        %v748 = vmul.f32 %v746, %v708
        %v749 = vadd.f32 %v743, %v748
        %v750 = vadd.f32 %v749, %v715
        %v751 = vmax.f32 %v750, 0.0
        %752 = vst.msk [vmem:[%s646 + $0xa] sm:$0xf] %vm719, %v751
        %v753 = vmul.f32 %v740, %v724
        %v754 = vmul.f32 %v746, %v729
        %v755 = vadd.f32 %v753, %v754
        %756 = vset.pattern.permute.xlu0 6
        %757 = vperm.xlu0 %756, %v679
        %v758 = vpop.permute.xlu0 %757
        %v760 = vmul.f32 %v758, %v689
        %v761 = vadd.f32 %v755, %v760
        %762 = vset.pattern.permute.xlu0 7
        %763 = vperm.xlu0 %762, %v679
        %v764 = vpop.permute.xlu0 %763
        %v766 = vmul.f32 %v764, %v698
        %v767 = vadd.f32 %v761, %v766
        %768 = vset.pattern.permute.xlu0 8
        %769 = vperm.xlu0 %768, %v679
        %v770 = vpop.permute.xlu0 %769
        %v772 = vmul.f32 %v770, %v708
        %v773 = vadd.f32 %v767, %v772
        %v774 = vadd.f32 %v773, %v715
        %v775 = vmax.f32 %v774, 0.0
        %776 = vst.msk [vmem:[%s646 + $0x12] sm:$0xf] %vm719, %v775
        %v777 = vmul.f32 %v764, %v724
        %v778 = vmul.f32 %v770, %v729
        %v779 = vadd.f32 %v777, %v778
        %780 = vset.pattern.permute.xlu0 9
        %781 = vperm.xlu0 %780, %v679
        %v782 = vpop.permute.xlu0 %781
        %v784 = vmul.f32 %v782, %v689
        %v785 = vadd.f32 %v779, %v784
        %786 = vset.pattern.permute.xlu0 10
        %787 = vperm.xlu0 %786, %v679
        %v788 = vpop.permute.xlu0 %787
        %v790 = vmul.f32 %v788, %v698
        %v791 = vadd.f32 %v785, %v790
        %792 = vset.pattern.permute.xlu0 11
        %793 = vperm.xlu0 %792, %v679
        %v794 = vpop.permute.xlu0 %793
        %v796 = vmul.f32 %v794, %v708
        %v797 = vadd.f32 %v791, %v796
        %v798 = vadd.f32 %v797, %v715
        %v799 = vmax.f32 %v798, 0.0
        %800 = vst.msk [vmem:[%s646 + $0x1a] sm:$0xf] %vm719, %v799
        %v801 = vmul.f32 %v788, %v724
        %v802 = vmul.f32 %v794, %v729
        %v803 = vadd.f32 %v801, %v802
        %804 = vset.pattern.permute.xlu0 12
        %805 = vperm.xlu0 %804, %v679
        %v806 = vpop.permute.xlu0 %805
        %v808 = vmul.f32 %v806, %v689
        %v809 = vadd.f32 %v803, %v808
        %810 = vset.pattern.permute.xlu0 13
        %811 = vperm.xlu0 %810, %v679
        %v812 = vpop.permute.xlu0 %811
        %v814 = vmul.f32 %v812, %v698
        %v815 = vadd.f32 %v809, %v814
        %816 = vset.pattern.permute.xlu0 14
        %817 = vperm.xlu0 %816, %v679
        %v818 = vpop.permute.xlu0 %817
        %v820 = vmul.f32 %v818, %v708
        %v821 = vadd.f32 %v815, %v820
        %v822 = vadd.f32 %v821, %v715
        %v823 = vmax.f32 %v822, 0.0
        %824 = vst.msk [vmem:[%s646 + $0x22] sm:$0xf] %vm719, %v823
        %v825 = vmul.f32 %v812, %v724
        %v826 = vmul.f32 %v818, %v729
        %v827 = vadd.f32 %v825, %v826
        %828 = vset.pattern.permute.xlu0 15
        %829 = vperm.xlu0 %828, %v679
        %v830 = vpop.permute.xlu0 %829
        %v832 = vmul.f32 %v830, %v689
        %v833 = vadd.f32 %v827, %v832
        %834 = vset.pattern.permute.xlu0 16
        %835 = vperm.xlu0 %834, %v679
        %v836 = vpop.permute.xlu0 %835
        %v838 = vmul.f32 %v836, %v698
        %v839 = vadd.f32 %v833, %v838
        %840 = vset.pattern.permute.xlu0 17
        %841 = vperm.xlu0 %840, %v679
        %v842 = vpop.permute.xlu0 %841
        %v844 = vmul.f32 %v842, %v708
        %v845 = vadd.f32 %v839, %v844
        %v846 = vadd.f32 %v845, %v715
        %v847 = vmax.f32 %v846, 0.0
        %848 = vst.msk [vmem:[%s646 + $0x2a] sm:$0xf] %vm719, %v847
        %v849 = vmul.f32 %v836, %v724
        %v850 = vmul.f32 %v842, %v729
        %v851 = vadd.f32 %v849, %v850
        %852 = vset.pattern.permute.xlu0 18
        %853 = vperm.xlu0 %852, %v679
        %v854 = vpop.permute.xlu0 %853
        %v856 = vmul.f32 %v854, %v689
        %v857 = vadd.f32 %v851, %v856
        %858 = vset.pattern.permute.xlu0 19
        %859 = vperm.xlu0 %858, %v679
        %v860 = vpop.permute.xlu0 %859
        %v862 = vmul.f32 %v860, %v698
        %v863 = vadd.f32 %v857, %v862
        %864 = vset.pattern.permute.xlu0 20
        %865 = vperm.xlu0 %864, %v679
        %v866 = vpop.permute.xlu0 %865
        %v868 = vmul.f32 %v866, %v708
        %v869 = vadd.f32 %v863, %v868
        %v870 = vadd.f32 %v869, %v715
        %v871 = vmax.f32 %v870, 0.0
        %872 = vst.msk [vmem:[%s646 + $0x32] sm:$0xf] %vm719, %v871
        %v873 = vmul.f32 %v860, %v724
        %v874 = vmul.f32 %v866, %v729
        %v875 = vadd.f32 %v873, %v874
        %876 = vset.pattern.permute.xlu0 21
        %877 = vperm.xlu0 %876, %v679
        %v878 = vpop.permute.xlu0 %877
        %v880 = vmul.f32 %v878, %v689
        %v881 = vadd.f32 %v875, %v880
        %882 = vset.pattern.permute.xlu0 22
        %883 = vperm.xlu0 %882, %v679
        %v884 = vpop.permute.xlu0 %883
        %v886 = vmul.f32 %v884, %v698
        %v887 = vadd.f32 %v881, %v886
        %888 = vset.pattern.permute.xlu0 23
        %889 = vperm.xlu0 %888, %v679
        %v890 = vpop.permute.xlu0 %889
        %v892 = vmul.f32 %v890, %v708
        %v893 = vadd.f32 %v887, %v892
        %v894 = vadd.f32 %v893, %v715
        %v895 = vmax.f32 %v894, 0.0
        %896 = vst.msk [vmem:[%s646 + $0x3a] sm:$0xf] %vm719, %v895
        %v897 = vld [vmem:[%s4] sm:$0x1]
        %v898 = vmax.f32 %v897, 0.0
        %v900 = vlaneseq
        %v901 = vshrl.u32 %v900, 7
        %v902 = vsub.s32 0, %v901
        %v903 = vrot.slane %v898, %v902
        %vm905 = vcmask 523264
        %906 = vst.msk [vmem:[%s651] sm:$0xff] %vm905, %v903
        %907 = vst.msk [vmem:[%s651 + $0x8] sm:$0xff] %vm905, %v903
        %908 = vst.msk [vmem:[%s651 + $0x10] sm:$0xff] %vm905, %v903
        %909 = vst.msk [vmem:[%s651 + $0x18] sm:$0xff] %vm905, %v903
        %vm910 = vcmask 519168
        %911 = vst.msk [vmem:[%s651 + $0x20] sm:$0xf] %vm910, %v903
        %v912 = vld [vmem:[%s646] sm:$0xff]
        %v913 = vld [vmem:[%s3 + $0x40] sm:$0xff]
        %v914 = vld [vmem:[%s3 + $0x48] sm:$0xff]
        %v915 = vld [vmem:[%s3 + $0x50] sm:$0xff]
        %v916 = vld [vmem:[%s3 + $0x58] sm:$0xff]
        %v917 = vld [vmem:[%s646 + $0x8] sm:$0xff]
        %v918 = vld [vmem:[%s3 + $0x60] sm:$0xff]
        %v919 = vld [vmem:[%s3 + $0x68] sm:$0xff]
        %v920 = vld [vmem:[%s3 + $0x70] sm:$0xff]
        %v921 = vld [vmem:[%s3 + $0x78] sm:$0xff]
        %v923 = vsel %vm670, %v917, 0
        %925 = vmatprep.subr.mxu0 0.0
        %926 = vmatpush1.msra.mxu0 %v918
        %927 = vmatprep.subr.mxu0 0.0
        %928 = vmatpush1.msra.mxu0 %v919
        %929 = vmatprep.subr.mxu0 0.0
        %930 = vmatpush1.msra.mxu0 %v920
        %931 = vmatprep.subr.mxu0 0.0
        %932 = vmatpush1.msra.mxu0 %v921
        %933 = vmatprep.subr.mxu0 0.0
        %934 = vmatpush1.msra.mxu0 0.0
        %935 = vmatprep.subr.mxu0 0.0
        %936 = vmatpush1.msra.mxu0 0.0
        %937 = vmatprep.subr.mxu0 0.0
        %938 = vmatpush1.msra.mxu0 0.0
        %939 = vmatprep.subr.mxu0 0.0
        %940 = vmatpush1.msra.mxu0 0.0
        %941 = vmatprep.subr.mxu0 0.0
        %942 = vmatpush1.msra.mxu0 0.0
        %943 = vmatprep.subr.mxu0 0.0
        %944 = vmatpush1.msra.mxu0 0.0
        %945 = vmatprep.subr.mxu0 0.0
        %946 = vmatpush1.msra.mxu0 0.0
        %947 = vmatprep.subr.mxu0 0.0
        %948 = vmatpush1.msra.mxu0 0.0
        %949 = vmatprep.subr.mxu0 0.0
        %950 = vmatpush1.msra.mxu0 0.0
        %951 = vmatprep.subr.mxu0 0.0
        %952 = vmatpush1.msra.mxu0 0.0
        %953 = vmatprep.subr.mxu0 0.0
        %954 = vmatpush1.msra.mxu0 0.0
        %955 = vmatprep.subr.mxu0 0.0
        %956 = vmatpush1.msra.mxu0 0.0
        %957 = vmatprep.subr.mxu0 0.0
        %958 = vmatpush1.msra.mxu0 0.0
        %959 = vmatprep.subr.mxu0 0.0
        %960 = vmatpush1.msra.mxu0 0.0
        %961 = vmatprep.subr.mxu0 0.0
        %962 = vmatpush1.msra.mxu0 0.0
        %963 = vmatprep.subr.mxu0 0.0
        %964 = vmatpush1.msra.mxu0 0.0
        %965 = vmatprep.subr.mxu0 0.0
        %966 = vmatpush1.msra.mxu0 0.0
        %967 = vmatprep.subr.mxu0 0.0
        %968 = vmatpush1.msra.mxu0 0.0
        %969 = vmatprep.subr.mxu0 0.0
        %970 = vmatpush1.msra.mxu0 0.0
        %971 = vmatprep.subr.mxu0 0.0
        %972 = vmatpush1.msra.mxu0 0.0
        %973 = vmatprep.subr.mxu0 0.0
        %974 = vmatpush1.msra.mxu0 0.0
        %975 = vmatprep.subr.mxu0 0.0
        %976 = vmatpush1.msra.mxu0 0.0
        %977 = vmatprep.subr.mxu0 0.0
        %978 = vmatpush1.msra.mxu0 0.0
        %979 = vmatprep.subr.mxu0 0.0
        %980 = vmatpush1.msra.mxu0 0.0
        %981 = vmatprep.subr.mxu0 0.0
        %982 = vmatpush1.msra.mxu0 0.0
        %983 = vmatprep.subr.mxu0 0.0
        %984 = vmatpush1.msra.mxu0 0.0
        %985 = vmatprep.subr.mxu0 0.0
        %986 = vmatpush1.msra.mxu0 0.0
        %987 = vmatprep.subr.mxu0 0.0
        %988 = vmatpush1.msra.mxu0 0.0
        %989 = vmatprep.mubr.f32.mxu0 0.0
        %990 = vmatmul.mubr.f32.gmra.mrb[0].mxu0 %v923
        %v991 = vpop.f32.mrb[0].mxu0
        %v992 = vadd.f32 0.0, %v991
        %v993 = vpop.f32.mrb[0].mxu0
        %994 = vdwg.mxu0
        %v996 = vsel %vm670, %v912, 0
        %998 = vmatprep.subr.mxu0 0.0
        %999 = vmatpush1.msra.mxu0 %v913
        %1000 = vmatprep.subr.mxu0 0.0
        %1001 = vmatpush1.msra.mxu0 %v914
        %1002 = vmatprep.subr.mxu0 0.0
        %1003 = vmatpush1.msra.mxu0 %v915
        %1004 = vmatprep.subr.mxu0 0.0
        %1005 = vmatpush1.msra.mxu0 %v916
        %1006 = vmatprep.subr.mxu0 0.0
        %1007 = vmatpush1.msra.mxu0 0.0
        %1008 = vmatprep.subr.mxu0 0.0
        %1009 = vmatpush1.msra.mxu0 0.0
        %1010 = vmatprep.subr.mxu0 0.0
        %1011 = vmatpush1.msra.mxu0 0.0
        %1012 = vmatprep.subr.mxu0 0.0
        %1013 = vmatpush1.msra.mxu0 0.0
        %1014 = vmatprep.subr.mxu0 0.0
        %1015 = vmatpush1.msra.mxu0 0.0
        %1016 = vmatprep.subr.mxu0 0.0
        %1017 = vmatpush1.msra.mxu0 0.0
        %1018 = vmatprep.subr.mxu0 0.0
        %1019 = vmatpush1.msra.mxu0 0.0
        %1020 = vmatprep.subr.mxu0 0.0
        %1021 = vmatpush1.msra.mxu0 0.0
        %1022 = vmatprep.subr.mxu0 0.0
        %1023 = vmatpush1.msra.mxu0 0.0
        %1024 = vmatprep.subr.mxu0 0.0
        %1025 = vmatpush1.msra.mxu0 0.0
        %1026 = vmatprep.subr.mxu0 0.0
        %1027 = vmatpush1.msra.mxu0 0.0
        %1028 = vmatprep.subr.mxu0 0.0
        %1029 = vmatpush1.msra.mxu0 0.0
        %1030 = vmatprep.subr.mxu0 0.0
        %1031 = vmatpush1.msra.mxu0 0.0
        %1032 = vmatprep.subr.mxu0 0.0
        %1033 = vmatpush1.msra.mxu0 0.0
        %1034 = vmatprep.subr.mxu0 0.0
        %1035 = vmatpush1.msra.mxu0 0.0
        %1036 = vmatprep.subr.mxu0 0.0
        %1037 = vmatpush1.msra.mxu0 0.0
        %1038 = vmatprep.subr.mxu0 0.0
        %1039 = vmatpush1.msra.mxu0 0.0
        %1040 = vmatprep.subr.mxu0 0.0
        %1041 = vmatpush1.msra.mxu0 0.0
        %1042 = vmatprep.subr.mxu0 0.0
        %1043 = vmatpush1.msra.mxu0 0.0
        %1044 = vmatprep.subr.mxu0 0.0
        %1045 = vmatpush1.msra.mxu0 0.0
        %1046 = vmatprep.subr.mxu0 0.0
        %1047 = vmatpush1.msra.mxu0 0.0
        %1048 = vmatprep.subr.mxu0 0.0
        %1049 = vmatpush1.msra.mxu0 0.0
        %1050 = vmatprep.subr.mxu0 0.0
        %1051 = vmatpush1.msra.mxu0 0.0
        %1052 = vmatprep.subr.mxu0 0.0
        %1053 = vmatpush1.msra.mxu0 0.0
        %1054 = vmatprep.subr.mxu0 0.0
        %1055 = vmatpush1.msra.mxu0 0.0
        %1056 = vmatprep.subr.mxu0 0.0
        %1057 = vmatpush1.msra.mxu0 0.0
        %1058 = vmatprep.subr.mxu0 0.0
        %1059 = vmatpush1.msra.mxu0 0.0
        %1060 = vmatprep.subr.mxu0 0.0
        %1061 = vmatpush1.msra.mxu0 0.0
        %1062 = vmatprep.mubr.f32.mxu0 0.0
        %1063 = vmatmul.mubr.f32.gmra.mrb[0].mxu0 %v996
        %v1064 = vpop.f32.mrb[0].mxu0
        %v1065 = vadd.f32 %v992, %v1064
        %v1066 = vpop.f32.mrb[0].mxu0
        %1067 = vdwg.mxu0
        %v1068 = vld [vmem:[%s646 + $0x10] sm:$0xff]
        %v1069 = vld [vmem:[%s3 + $0x80] sm:$0xff]
        %v1070 = vld [vmem:[%s3 + $0x88] sm:$0xff]
        %v1071 = vld [vmem:[%s3 + $0x90] sm:$0xff]
        %v1072 = vld [vmem:[%s3 + $0x98] sm:$0xff]
        %v1074 = vsel %vm670, %v1068, 0
        %1076 = vmatprep.subr.mxu0 0.0
        %1077 = vmatpush1.msra.mxu0 %v1069
        %1078 = vmatprep.subr.mxu0 0.0
        %1079 = vmatpush1.msra.mxu0 %v1070
        %1080 = vmatprep.subr.mxu0 0.0
        %1081 = vmatpush1.msra.mxu0 %v1071
        %1082 = vmatprep.subr.mxu0 0.0
        %1083 = vmatpush1.msra.mxu0 %v1072
        %1084 = vmatprep.subr.mxu0 0.0
        %1085 = vmatpush1.msra.mxu0 0.0
        %1086 = vmatprep.subr.mxu0 0.0
        %1087 = vmatpush1.msra.mxu0 0.0
        %1088 = vmatprep.subr.mxu0 0.0
        %1089 = vmatpush1.msra.mxu0 0.0
        %1090 = vmatprep.subr.mxu0 0.0
        %1091 = vmatpush1.msra.mxu0 0.0
        %1092 = vmatprep.subr.mxu0 0.0
        %1093 = vmatpush1.msra.mxu0 0.0
        %1094 = vmatprep.subr.mxu0 0.0
        %1095 = vmatpush1.msra.mxu0 0.0
        %1096 = vmatprep.subr.mxu0 0.0
        %1097 = vmatpush1.msra.mxu0 0.0
        %1098 = vmatprep.subr.mxu0 0.0
        %1099 = vmatpush1.msra.mxu0 0.0
        %1100 = vmatprep.subr.mxu0 0.0
        %1101 = vmatpush1.msra.mxu0 0.0
        %1102 = vmatprep.subr.mxu0 0.0
        %1103 = vmatpush1.msra.mxu0 0.0
        %1104 = vmatprep.subr.mxu0 0.0
        %1105 = vmatpush1.msra.mxu0 0.0
        %1106 = vmatprep.subr.mxu0 0.0
        %1107 = vmatpush1.msra.mxu0 0.0
        %1108 = vmatprep.subr.mxu0 0.0
        %1109 = vmatpush1.msra.mxu0 0.0
        %1110 = vmatprep.subr.mxu0 0.0
        %1111 = vmatpush1.msra.mxu0 0.0
        %1112 = vmatprep.subr.mxu0 0.0
        %1113 = vmatpush1.msra.mxu0 0.0
        %1114 = vmatprep.subr.mxu0 0.0
        %1115 = vmatpush1.msra.mxu0 0.0
        %1116 = vmatprep.subr.mxu0 0.0
        %1117 = vmatpush1.msra.mxu0 0.0
        %1118 = vmatprep.subr.mxu0 0.0
        %1119 = vmatpush1.msra.mxu0 0.0
        %1120 = vmatprep.subr.mxu0 0.0
        %1121 = vmatpush1.msra.mxu0 0.0
        %1122 = vmatprep.subr.mxu0 0.0
        %1123 = vmatpush1.msra.mxu0 0.0
        %1124 = vmatprep.subr.mxu0 0.0
        %1125 = vmatpush1.msra.mxu0 0.0
        %1126 = vmatprep.subr.mxu0 0.0
        %1127 = vmatpush1.msra.mxu0 0.0
        %1128 = vmatprep.subr.mxu0 0.0
        %1129 = vmatpush1.msra.mxu0 0.0
        %1130 = vmatprep.subr.mxu0 0.0
        %1131 = vmatpush1.msra.mxu0 0.0
        %1132 = vmatprep.subr.mxu0 0.0
        %1133 = vmatpush1.msra.mxu0 0.0
        %1134 = vmatprep.subr.mxu0 0.0
        %1135 = vmatpush1.msra.mxu0 0.0
        %1136 = vmatprep.subr.mxu0 0.0
        %1137 = vmatpush1.msra.mxu0 0.0
        %1138 = vmatprep.subr.mxu0 0.0
        %1139 = vmatpush1.msra.mxu0 0.0
        %1140 = vmatprep.mubr.f32.mxu0 0.0
        %1141 = vmatmul.mubr.f32.gmra.mrb[0].mxu0 %v1074
        %v1142 = vpop.f32.mrb[0].mxu0
        %v1143 = vadd.f32 0.0, %v1142
        %v1144 = vpop.f32.mrb[0].mxu0
        %1145 = vdwg.mxu0
        %v1146 = vadd.f32 %v1065, %v1143
        %v1148 = vlaneseq
        %v1149 = vshrl.u32 %v1148, 7
        %v1150 = vsub.s32 0, %v1149
        %v1151 = vrot.slane %v897, %v1150
        %v1153 = vadd.f32 %v1146, %v1151
        %v1154 = vmax.f32 %v1153, 0.0
        %1155 = vst.msk [vmem:[%s651 + $0x2] sm:$0xff] %vm905, %v1154
        %v1156 = vld [vmem:[%s646 + $0x8] sm:$0xff]
        %v1157 = vld [vmem:[%s3] sm:$0xff]
        %v1158 = vld [vmem:[%s3 + $0x8] sm:$0xff]
        %v1159 = vld [vmem:[%s3 + $0x10] sm:$0xff]
        %v1160 = vld [vmem:[%s3 + $0x18] sm:$0xff]
        %v1161 = vld [vmem:[%s646 + $0x10] sm:$0xff]
        %v1162 = vld [vmem:[%s3 + $0x20] sm:$0xff]
        %v1163 = vld [vmem:[%s3 + $0x28] sm:$0xff]
        %v1164 = vld [vmem:[%s3 + $0x30] sm:$0xff]
        %v1165 = vld [vmem:[%s3 + $0x38] sm:$0xff]
        %v1167 = vsel %vm670, %v1161, 0
        %1169 = vmatprep.subr.mxu0 0.0
        %1170 = vmatpush1.msra.mxu0 %v1162
        %1171 = vmatprep.subr.mxu0 0.0
        %1172 = vmatpush1.msra.mxu0 %v1163
        %1173 = vmatprep.subr.mxu0 0.0
        %1174 = vmatpush1.msra.mxu0 %v1164
        %1175 = vmatprep.subr.mxu0 0.0
        %1176 = vmatpush1.msra.mxu0 %v1165
        %1177 = vmatprep.subr.mxu0 0.0
        %1178 = vmatpush1.msra.mxu0 0.0
        %1179 = vmatprep.subr.mxu0 0.0
        %1180 = vmatpush1.msra.mxu0 0.0
        %1181 = vmatprep.subr.mxu0 0.0
        %1182 = vmatpush1.msra.mxu0 0.0
        %1183 = vmatprep.subr.mxu0 0.0
        %1184 = vmatpush1.msra.mxu0 0.0
        %1185 = vmatprep.subr.mxu0 0.0
        %1186 = vmatpush1.msra.mxu0 0.0
        %1187 = vmatprep.subr.mxu0 0.0
        %1188 = vmatpush1.msra.mxu0 0.0
        %1189 = vmatprep.subr.mxu0 0.0
        %1190 = vmatpush1.msra.mxu0 0.0
        %1191 = vmatprep.subr.mxu0 0.0
        %1192 = vmatpush1.msra.mxu0 0.0
        %1193 = vmatprep.subr.mxu0 0.0
        %1194 = vmatpush1.msra.mxu0 0.0
        %1195 = vmatprep.subr.mxu0 0.0
        %1196 = vmatpush1.msra.mxu0 0.0
        %1197 = vmatprep.subr.mxu0 0.0
        %1198 = vmatpush1.msra.mxu0 0.0
        %1199 = vmatprep.subr.mxu0 0.0
        %1200 = vmatpush1.msra.mxu0 0.0
        %1201 = vmatprep.subr.mxu0 0.0
        %1202 = vmatpush1.msra.mxu0 0.0
        %1203 = vmatprep.subr.mxu0 0.0
        %1204 = vmatpush1.msra.mxu0 0.0
        %1205 = vmatprep.subr.mxu0 0.0
        %1206 = vmatpush1.msra.mxu0 0.0
        %1207 = vmatprep.subr.mxu0 0.0
        %1208 = vmatpush1.msra.mxu0 0.0
        %1209 = vmatprep.subr.mxu0 0.0
        %1210 = vmatpush1.msra.mxu0 0.0
        %1211 = vmatprep.subr.mxu0 0.0
        %1212 = vmatpush1.msra.mxu0 0.0
        %1213 = vmatprep.subr.mxu0 0.0
        %1214 = vmatpush1.msra.mxu0 0.0
        %1215 = vmatprep.subr.mxu0 0.0
        %1216 = vmatpush1.msra.mxu0 0.0
        %1217 = vmatprep.subr.mxu0 0.0
        %1218 = vmatpush1.msra.mxu0 0.0
        %1219 = vmatprep.subr.mxu0 0.0
        %1220 = vmatpush1.msra.mxu0 0.0
        %1221 = vmatprep.subr.mxu0 0.0
        %1222 = vmatpush1.msra.mxu0 0.0
        %1223 = vmatprep.subr.mxu0 0.0
        %1224 = vmatpush1.msra.mxu0 0.0
        %1225 = vmatprep.subr.mxu0 0.0
        %1226 = vmatpush1.msra.mxu0 0.0
        %1227 = vmatprep.subr.mxu0 0.0
        %1228 = vmatpush1.msra.mxu0 0.0
        %1229 = vmatprep.subr.mxu0 0.0
        %1230 = vmatpush1.msra.mxu0 0.0
        %1231 = vmatprep.subr.mxu0 0.0
        %1232 = vmatpush1.msra.mxu0 0.0
        %1233 = vmatprep.mubr.f32.mxu0 0.0
        %1234 = vmatmul.mubr.f32.gmra.mrb[0].mxu0 %v1167
        %v1235 = vpop.f32.mrb[0].mxu0
        %v1236 = vadd.f32 0.0, %v1235
        %v1237 = vpop.f32.mrb[0].mxu0
        %1238 = vdwg.mxu0
        %v1240 = vsel %vm670, %v1156, 0
        %1242 = vmatprep.subr.mxu0 0.0
        %1243 = vmatpush1.msra.mxu0 %v1157
        %1244 = vmatprep.subr.mxu0 0.0
        %1245 = vmatpush1.msra.mxu0 %v1158
        %1246 = vmatprep.subr.mxu0 0.0
        %1247 = vmatpush1.msra.mxu0 %v1159
        %1248 = vmatprep.subr.mxu0 0.0
        %1249 = vmatpush1.msra.mxu0 %v1160
        %1250 = vmatprep.subr.mxu0 0.0
        %1251 = vmatpush1.msra.mxu0 0.0
        %1252 = vmatprep.subr.mxu0 0.0
        %1253 = vmatpush1.msra.mxu0 0.0
        %1254 = vmatprep.subr.mxu0 0.0
        %1255 = vmatpush1.msra.mxu0 0.0
        %1256 = vmatprep.subr.mxu0 0.0
        %1257 = vmatpush1.msra.mxu0 0.0
        %1258 = vmatprep.subr.mxu0 0.0
        %1259 = vmatpush1.msra.mxu0 0.0
        %1260 = vmatprep.subr.mxu0 0.0
        %1261 = vmatpush1.msra.mxu0 0.0
        %1262 = vmatprep.subr.mxu0 0.0
        %1263 = vmatpush1.msra.mxu0 0.0
        %1264 = vmatprep.subr.mxu0 0.0
        %1265 = vmatpush1.msra.mxu0 0.0
        %1266 = vmatprep.subr.mxu0 0.0
        %1267 = vmatpush1.msra.mxu0 0.0
        %1268 = vmatprep.subr.mxu0 0.0
        %1269 = vmatpush1.msra.mxu0 0.0
        %1270 = vmatprep.subr.mxu0 0.0
        %1271 = vmatpush1.msra.mxu0 0.0
        %1272 = vmatprep.subr.mxu0 0.0
        %1273 = vmatpush1.msra.mxu0 0.0
        %1274 = vmatprep.subr.mxu0 0.0
        %1275 = vmatpush1.msra.mxu0 0.0
        %1276 = vmatprep.subr.mxu0 0.0
        %1277 = vmatpush1.msra.mxu0 0.0
        %1278 = vmatprep.subr.mxu0 0.0
        %1279 = vmatpush1.msra.mxu0 0.0
        %1280 = vmatprep.subr.mxu0 0.0
        %1281 = vmatpush1.msra.mxu0 0.0
        %1282 = vmatprep.subr.mxu0 0.0
        %1283 = vmatpush1.msra.mxu0 0.0
        %1284 = vmatprep.subr.mxu0 0.0
        %1285 = vmatpush1.msra.mxu0 0.0
        %1286 = vmatprep.subr.mxu0 0.0
        %1287 = vmatpush1.msra.mxu0 0.0
        %1288 = vmatprep.subr.mxu0 0.0
        %1289 = vmatpush1.msra.mxu0 0.0
        %1290 = vmatprep.subr.mxu0 0.0
        %1291 = vmatpush1.msra.mxu0 0.0
        %1292 = vmatprep.subr.mxu0 0.0
        %1293 = vmatpush1.msra.mxu0 0.0
        %1294 = vmatprep.subr.mxu0 0.0
        %1295 = vmatpush1.msra.mxu0 0.0
        %1296 = vmatprep.subr.mxu0 0.0
        %1297 = vmatpush1.msra.mxu0 0.0
        %1298 = vmatprep.subr.mxu0 0.0
        %1299 = vmatpush1.msra.mxu0 0.0
        %1300 = vmatprep.subr.mxu0 0.0
        %1301 = vmatpush1.msra.mxu0 0.0
        %1302 = vmatprep.subr.mxu0 0.0
        %1303 = vmatpush1.msra.mxu0 0.0
        %1304 = vmatprep.subr.mxu0 0.0
        %1305 = vmatpush1.msra.mxu0 0.0
        %1306 = vmatprep.mubr.f32.mxu0 0.0
        %1307 = vmatmul.mubr.f32.gmra.mrb[0].mxu0 %v1240
        %v1308 = vpop.f32.mrb[0].mxu0
        %v1309 = vadd.f32 %v1236, %v1308
        %v1310 = vpop.f32.mrb[0].mxu0
        %1311 = vdwg.mxu0
        %v1312 = vld [vmem:[%s646 + $0x18] sm:$0xff]
        %v1313 = vld [vmem:[%s3 + $0x40] sm:$0xff]
        %v1314 = vld [vmem:[%s3 + $0x48] sm:$0xff]
        %v1315 = vld [vmem:[%s3 + $0x50] sm:$0xff]
        %v1316 = vld [vmem:[%s3 + $0x58] sm:$0xff]
        %v1318 = vsel %vm670, %v1312, 0
        %1320 = vmatprep.subr.mxu0 0.0
        %1321 = vmatpush1.msra.mxu0 %v1313
        %1322 = vmatprep.subr.mxu0 0.0
        %1323 = vmatpush1.msra.mxu0 %v1314
        %1324 = vmatprep.subr.mxu0 0.0
        %1325 = vmatpush1.msra.mxu0 %v1315
        %1326 = vmatprep.subr.mxu0 0.0
        %1327 = vmatpush1.msra.mxu0 %v1316
        %1328 = vmatprep.subr.mxu0 0.0
        %1329 = vmatpush1.msra.mxu0 0.0
        %1330 = vmatprep.subr.mxu0 0.0
        %1331 = vmatpush1.msra.mxu0 0.0
        %1332 = vmatprep.subr.mxu0 0.0
        %1333 = vmatpush1.msra.mxu0 0.0
        %1334 = vmatprep.subr.mxu0 0.0
        %1335 = vmatpush1.msra.mxu0 0.0
        %1336 = vmatprep.subr.mxu0 0.0
        %1337 = vmatpush1.msra.mxu0 0.0
        %1338 = vmatprep.subr.mxu0 0.0
        %1339 = vmatpush1.msra.mxu0 0.0
        %1340 = vmatprep.subr.mxu0 0.0
        %1341 = vmatpush1.msra.mxu0 0.0
        %1342 = vmatprep.subr.mxu0 0.0
        %1343 = vmatpush1.msra.mxu0 0.0
        %1344 = vmatprep.subr.mxu0 0.0
        %1345 = vmatpush1.msra.mxu0 0.0
        %1346 = vmatprep.subr.mxu0 0.0
        %1347 = vmatpush1.msra.mxu0 0.0
        %1348 = vmatprep.subr.mxu0 0.0
        %1349 = vmatpush1.msra.mxu0 0.0
        %1350 = vmatprep.subr.mxu0 0.0
        %1351 = vmatpush1.msra.mxu0 0.0
        %1352 = vmatprep.subr.mxu0 0.0
        %1353 = vmatpush1.msra.mxu0 0.0
        %1354 = vmatprep.subr.mxu0 0.0
        %1355 = vmatpush1.msra.mxu0 0.0
        %1356 = vmatprep.subr.mxu0 0.0
        %1357 = vmatpush1.msra.mxu0 0.0
        %1358 = vmatprep.subr.mxu0 0.0
        %1359 = vmatpush1.msra.mxu0 0.0
        %1360 = vmatprep.subr.mxu0 0.0
        %1361 = vmatpush1.msra.mxu0 0.0
        %1362 = vmatprep.subr.mxu0 0.0
        %1363 = vmatpush1.msra.mxu0 0.0
        %1364 = vmatprep.subr.mxu0 0.0
        %1365 = vmatpush1.msra.mxu0 0.0
        %1366 = vmatprep.subr.mxu0 0.0
        %1367 = vmatpush1.msra.mxu0 0.0
        %1368 = vmatprep.subr.mxu0 0.0
        %1369 = vmatpush1.msra.mxu0 0.0
        %1370 = vmatprep.subr.mxu0 0.0
        %1371 = vmatpush1.msra.mxu0 0.0
        %1372 = vmatprep.subr.mxu0 0.0
        %1373 = vmatpush1.msra.mxu0 0.0
        %1374 = vmatprep.subr.mxu0 0.0
        %1375 = vmatpush1.msra.mxu0 0.0
        %1376 = vmatprep.subr.mxu0 0.0
        %1377 = vmatpush1.msra.mxu0 0.0
        %1378 = vmatprep.subr.mxu0 0.0
        %1379 = vmatpush1.msra.mxu0 0.0
        %1380 = vmatprep.subr.mxu0 0.0
        %1381 = vmatpush1.msra.mxu0 0.0
        %1382 = vmatprep.subr.mxu0 0.0
        %1383 = vmatpush1.msra.mxu0 0.0
        %1384 = vmatprep.mubr.f32.mxu0 0.0
        %1385 = vmatmul.mubr.f32.gmra.mrb[0].mxu0 %v1318
        %v1386 = vpop.f32.mrb[0].mxu0
        %v1387 = vadd.f32 0.0, %v1386
        %v1388 = vpop.f32.mrb[0].mxu0
        %1389 = vdwg.mxu0
        %v1390 = vadd.f32 %v1309, %v1387
        %v1391 = vld [vmem:[%s646 + $0x20] sm:$0xff]
        %v1392 = vld [vmem:[%s3 + $0x60] sm:$0xff]
        %v1393 = vld [vmem:[%s3 + $0x68] sm:$0xff]
        %v1394 = vld [vmem:[%s3 + $0x70] sm:$0xff]
        %v1395 = vld [vmem:[%s3 + $0x78] sm:$0xff]
        %v1397 = vsel %vm670, %v1391, 0
        %1399 = vmatprep.subr.mxu0 0.0
        %1400 = vmatpush1.msra.mxu0 %v1392
        %1401 = vmatprep.subr.mxu0 0.0
        %1402 = vmatpush1.msra.mxu0 %v1393
        %1403 = vmatprep.subr.mxu0 0.0
        %1404 = vmatpush1.msra.mxu0 %v1394
        %1405 = vmatprep.subr.mxu0 0.0
        %1406 = vmatpush1.msra.mxu0 %v1395
        %1407 = vmatprep.subr.mxu0 0.0
        %1408 = vmatpush1.msra.mxu0 0.0
        %1409 = vmatprep.subr.mxu0 0.0
        %1410 = vmatpush1.msra.mxu0 0.0
        %1411 = vmatprep.subr.mxu0 0.0
        %1412 = vmatpush1.msra.mxu0 0.0
        %1413 = vmatprep.subr.mxu0 0.0
        %1414 = vmatpush1.msra.mxu0 0.0
        %1415 = vmatprep.subr.mxu0 0.0
        %1416 = vmatpush1.msra.mxu0 0.0
        %1417 = vmatprep.subr.mxu0 0.0
        %1418 = vmatpush1.msra.mxu0 0.0
        %1419 = vmatprep.subr.mxu0 0.0
        %1420 = vmatpush1.msra.mxu0 0.0
        %1421 = vmatprep.subr.mxu0 0.0
        %1422 = vmatpush1.msra.mxu0 0.0
        %1423 = vmatprep.subr.mxu0 0.0
        %1424 = vmatpush1.msra.mxu0 0.0
        %1425 = vmatprep.subr.mxu0 0.0
        %1426 = vmatpush1.msra.mxu0 0.0
        %1427 = vmatprep.subr.mxu0 0.0
        %1428 = vmatpush1.msra.mxu0 0.0
        %1429 = vmatprep.subr.mxu0 0.0
        %1430 = vmatpush1.msra.mxu0 0.0
        %1431 = vmatprep.subr.mxu0 0.0
        %1432 = vmatpush1.msra.mxu0 0.0
        %1433 = vmatprep.subr.mxu0 0.0
        %1434 = vmatpush1.msra.mxu0 0.0
        %1435 = vmatprep.subr.mxu0 0.0
        %1436 = vmatpush1.msra.mxu0 0.0
        %1437 = vmatprep.subr.mxu0 0.0
        %1438 = vmatpush1.msra.mxu0 0.0
        %1439 = vmatprep.subr.mxu0 0.0
        %1440 = vmatpush1.msra.mxu0 0.0
        %1441 = vmatprep.subr.mxu0 0.0
        %1442 = vmatpush1.msra.mxu0 0.0
        %1443 = vmatprep.subr.mxu0 0.0
        %1444 = vmatpush1.msra.mxu0 0.0
        %1445 = vmatprep.subr.mxu0 0.0
        %1446 = vmatpush1.msra.mxu0 0.0
        %1447 = vmatprep.subr.mxu0 0.0
        %1448 = vmatpush1.msra.mxu0 0.0
        %1449 = vmatprep.subr.mxu0 0.0
        %1450 = vmatpush1.msra.mxu0 0.0
        %1451 = vmatprep.subr.mxu0 0.0
        %1452 = vmatpush1.msra.mxu0 0.0
        %1453 = vmatprep.subr.mxu0 0.0
        %1454 = vmatpush1.msra.mxu0 0.0
        %1455 = vmatprep.subr.mxu0 0.0
        %1456 = vmatpush1.msra.mxu0 0.0
        %1457 = vmatprep.subr.mxu0 0.0
        %1458 = vmatpush1.msra.mxu0 0.0
        %1459 = vmatprep.subr.mxu0 0.0
        %1460 = vmatpush1.msra.mxu0 0.0
        %1461 = vmatprep.subr.mxu0 0.0
        %1462 = vmatpush1.msra.mxu0 0.0
        %1463 = vmatprep.mubr.f32.mxu0 0.0
        %1464 = vmatmul.mubr.f32.gmra.mrb[0].mxu0 %v1397
        %v1465 = vpop.f32.mrb[0].mxu0
        %v1466 = vadd.f32 0.0, %v1465
        %v1467 = vpop.f32.mrb[0].mxu0
        %1468 = vdwg.mxu0
        %v1469 = vadd.f32 %v1390, %v1466
        %v1470 = vld [vmem:[%s646 + $0x28] sm:$0xff]
        %v1471 = vld [vmem:[%s3 + $0x80] sm:$0xff]
        %v1472 = vld [vmem:[%s3 + $0x88] sm:$0xff]
        %v1473 = vld [vmem:[%s3 + $0x90] sm:$0xff]
        %v1474 = vld [vmem:[%s3 + $0x98] sm:$0xff]
        %v1476 = vsel %vm670, %v1470, 0
        %1478 = vmatprep.subr.mxu0 0.0
        %1479 = vmatpush1.msra.mxu0 %v1471
        %1480 = vmatprep.subr.mxu0 0.0
        %1481 = vmatpush1.msra.mxu0 %v1472
        %1482 = vmatprep.subr.mxu0 0.0
        %1483 = vmatpush1.msra.mxu0 %v1473
        %1484 = vmatprep.subr.mxu0 0.0
        %1485 = vmatpush1.msra.mxu0 %v1474
        %1486 = vmatprep.subr.mxu0 0.0
        %1487 = vmatpush1.msra.mxu0 0.0
        %1488 = vmatprep.subr.mxu0 0.0
        %1489 = vmatpush1.msra.mxu0 0.0
        %1490 = vmatprep.subr.mxu0 0.0
        %1491 = vmatpush1.msra.mxu0 0.0
        %1492 = vmatprep.subr.mxu0 0.0
        %1493 = vmatpush1.msra.mxu0 0.0
        %1494 = vmatprep.subr.mxu0 0.0
        %1495 = vmatpush1.msra.mxu0 0.0
        %1496 = vmatprep.subr.mxu0 0.0
        %1497 = vmatpush1.msra.mxu0 0.0
        %1498 = vmatprep.subr.mxu0 0.0
        %1499 = vmatpush1.msra.mxu0 0.0
        %1500 = vmatprep.subr.mxu0 0.0
        %1501 = vmatpush1.msra.mxu0 0.0
        %1502 = vmatprep.subr.mxu0 0.0
        %1503 = vmatpush1.msra.mxu0 0.0
        %1504 = vmatprep.subr.mxu0 0.0
        %1505 = vmatpush1.msra.mxu0 0.0
        %1506 = vmatprep.subr.mxu0 0.0
        %1507 = vmatpush1.msra.mxu0 0.0
        %1508 = vmatprep.subr.mxu0 0.0
        %1509 = vmatpush1.msra.mxu0 0.0
        %1510 = vmatprep.subr.mxu0 0.0
        %1511 = vmatpush1.msra.mxu0 0.0
        %1512 = vmatprep.subr.mxu0 0.0
        %1513 = vmatpush1.msra.mxu0 0.0
        %1514 = vmatprep.subr.mxu0 0.0
        %1515 = vmatpush1.msra.mxu0 0.0
        %1516 = vmatprep.subr.mxu0 0.0
        %1517 = vmatpush1.msra.mxu0 0.0
        %1518 = vmatprep.subr.mxu0 0.0
        %1519 = vmatpush1.msra.mxu0 0.0
        %1520 = vmatprep.subr.mxu0 0.0
        %1521 = vmatpush1.msra.mxu0 0.0
        %1522 = vmatprep.subr.mxu0 0.0
        %1523 = vmatpush1.msra.mxu0 0.0
        %1524 = vmatprep.subr.mxu0 0.0
        %1525 = vmatpush1.msra.mxu0 0.0
        %1526 = vmatprep.subr.mxu0 0.0
        %1527 = vmatpush1.msra.mxu0 0.0
        %1528 = vmatprep.subr.mxu0 0.0
        %1529 = vmatpush1.msra.mxu0 0.0
        %1530 = vmatprep.subr.mxu0 0.0
        %1531 = vmatpush1.msra.mxu0 0.0
        %1532 = vmatprep.subr.mxu0 0.0
        %1533 = vmatpush1.msra.mxu0 0.0
        %1534 = vmatprep.subr.mxu0 0.0
        %1535 = vmatpush1.msra.mxu0 0.0
        %1536 = vmatprep.subr.mxu0 0.0
        %1537 = vmatpush1.msra.mxu0 0.0
        %1538 = vmatprep.subr.mxu0 0.0
        %1539 = vmatpush1.msra.mxu0 0.0
        %1540 = vmatprep.subr.mxu0 0.0
        %1541 = vmatpush1.msra.mxu0 0.0
        %1542 = vmatprep.mubr.f32.mxu0 0.0
        %1543 = vmatmul.mubr.f32.gmra.mrb[0].mxu0 %v1476
        %v1544 = vpop.f32.mrb[0].mxu0
        %v1545 = vadd.f32 0.0, %v1544
        %v1546 = vpop.f32.mrb[0].mxu0
        %1547 = vdwg.mxu0
        %v1548 = vadd.f32 %v1469, %v1545
        %v1549 = vadd.f32 %v1548, %v1151
        %v1550 = vmax.f32 %v1549, 0.0
        %1551 = vst.msk [vmem:[%s651 + $0xe] sm:$0xff] %vm905, %v1550
        %v1552 = vld [vmem:[%s646 + $0x20] sm:$0xff]
        %v1553 = vld [vmem:[%s3] sm:$0xff]
        %v1554 = vld [vmem:[%s3 + $0x8] sm:$0xff]
        %v1555 = vld [vmem:[%s3 + $0x10] sm:$0xff]
        %v1556 = vld [vmem:[%s3 + $0x18] sm:$0xff]
        %v1557 = vld [vmem:[%s646 + $0x28] sm:$0xff]
        %v1558 = vld [vmem:[%s3 + $0x20] sm:$0xff]
        %v1559 = vld [vmem:[%s3 + $0x28] sm:$0xff]
        %v1560 = vld [vmem:[%s3 + $0x30] sm:$0xff]
        %v1561 = vld [vmem:[%s3 + $0x38] sm:$0xff]
        %v1563 = vsel %vm670, %v1557, 0
        %1565 = vmatprep.subr.mxu0 0.0
        %1566 = vmatpush1.msra.mxu0 %v1558
        %1567 = vmatprep.subr.mxu0 0.0
        %1568 = vmatpush1.msra.mxu0 %v1559
        %1569 = vmatprep.subr.mxu0 0.0
        %1570 = vmatpush1.msra.mxu0 %v1560
        %1571 = vmatprep.subr.mxu0 0.0
        %1572 = vmatpush1.msra.mxu0 %v1561
        %1573 = vmatprep.subr.mxu0 0.0
        %1574 = vmatpush1.msra.mxu0 0.0
        %1575 = vmatprep.subr.mxu0 0.0
        %1576 = vmatpush1.msra.mxu0 0.0
        %1577 = vmatprep.subr.mxu0 0.0
        %1578 = vmatpush1.msra.mxu0 0.0
        %1579 = vmatprep.subr.mxu0 0.0
        %1580 = vmatpush1.msra.mxu0 0.0
        %1581 = vmatprep.subr.mxu0 0.0
        %1582 = vmatpush1.msra.mxu0 0.0
        %1583 = vmatprep.subr.mxu0 0.0
        %1584 = vmatpush1.msra.mxu0 0.0
        %1585 = vmatprep.subr.mxu0 0.0
        %1586 = vmatpush1.msra.mxu0 0.0
        %1587 = vmatprep.subr.mxu0 0.0
        %1588 = vmatpush1.msra.mxu0 0.0
        %1589 = vmatprep.subr.mxu0 0.0
        %1590 = vmatpush1.msra.mxu0 0.0
        %1591 = vmatprep.subr.mxu0 0.0
        %1592 = vmatpush1.msra.mxu0 0.0
        %1593 = vmatprep.subr.mxu0 0.0
        %1594 = vmatpush1.msra.mxu0 0.0
        %1595 = vmatprep.subr.mxu0 0.0
        %1596 = vmatpush1.msra.mxu0 0.0
        %1597 = vmatprep.subr.mxu0 0.0
        %1598 = vmatpush1.msra.mxu0 0.0
        %1599 = vmatprep.subr.mxu0 0.0
        %1600 = vmatpush1.msra.mxu0 0.0
        %1601 = vmatprep.subr.mxu0 0.0
        %1602 = vmatpush1.msra.mxu0 0.0
        %1603 = vmatprep.subr.mxu0 0.0
        %1604 = vmatpush1.msra.mxu0 0.0
        %1605 = vmatprep.subr.mxu0 0.0
        %1606 = vmatpush1.msra.mxu0 0.0
        %1607 = vmatprep.subr.mxu0 0.0
        %1608 = vmatpush1.msra.mxu0 0.0
        %1609 = vmatprep.subr.mxu0 0.0
        %1610 = vmatpush1.msra.mxu0 0.0
        %1611 = vmatprep.subr.mxu0 0.0
        %1612 = vmatpush1.msra.mxu0 0.0
        %1613 = vmatprep.subr.mxu0 0.0
        %1614 = vmatpush1.msra.mxu0 0.0
        %1615 = vmatprep.subr.mxu0 0.0
        %1616 = vmatpush1.msra.mxu0 0.0
        %1617 = vmatprep.subr.mxu0 0.0
        %1618 = vmatpush1.msra.mxu0 0.0
        %1619 = vmatprep.subr.mxu0 0.0
        %1620 = vmatpush1.msra.mxu0 0.0
        %1621 = vmatprep.subr.mxu0 0.0
        %1622 = vmatpush1.msra.mxu0 0.0
        %1623 = vmatprep.subr.mxu0 0.0
        %1624 = vmatpush1.msra.mxu0 0.0
        %1625 = vmatprep.subr.mxu0 0.0
        %1626 = vmatpush1.msra.mxu0 0.0
        %1627 = vmatprep.subr.mxu0 0.0
        %1628 = vmatpush1.msra.mxu0 0.0
        %1629 = vmatprep.mubr.f32.mxu0 0.0
        %1630 = vmatmul.mubr.f32.gmra.mrb[0].mxu0 %v1563
        %v1631 = vpop.f32.mrb[0].mxu0
        %v1632 = vadd.f32 0.0, %v1631
        %v1633 = vpop.f32.mrb[0].mxu0
        %1634 = vdwg.mxu0
        %v1636 = vsel %vm670, %v1552, 0
        %1638 = vmatprep.subr.mxu0 0.0
        %1639 = vmatpush1.msra.mxu0 %v1553
        %1640 = vmatprep.subr.mxu0 0.0
        %1641 = vmatpush1.msra.mxu0 %v1554
        %1642 = vmatprep.subr.mxu0 0.0
        %1643 = vmatpush1.msra.mxu0 %v1555
        %1644 = vmatprep.subr.mxu0 0.0
        %1645 = vmatpush1.msra.mxu0 %v1556
        %1646 = vmatprep.subr.mxu0 0.0
        %1647 = vmatpush1.msra.mxu0 0.0
        %1648 = vmatprep.subr.mxu0 0.0
        %1649 = vmatpush1.msra.mxu0 0.0
        %1650 = vmatprep.subr.mxu0 0.0
        %1651 = vmatpush1.msra.mxu0 0.0
        %1652 = vmatprep.subr.mxu0 0.0
        %1653 = vmatpush1.msra.mxu0 0.0
        %1654 = vmatprep.subr.mxu0 0.0
        %1655 = vmatpush1.msra.mxu0 0.0
        %1656 = vmatprep.subr.mxu0 0.0
        %1657 = vmatpush1.msra.mxu0 0.0
        %1658 = vmatprep.subr.mxu0 0.0
        %1659 = vmatpush1.msra.mxu0 0.0
        %1660 = vmatprep.subr.mxu0 0.0
        %1661 = vmatpush1.msra.mxu0 0.0
        %1662 = vmatprep.subr.mxu0 0.0
        %1663 = vmatpush1.msra.mxu0 0.0
        %1664 = vmatprep.subr.mxu0 0.0
        %1665 = vmatpush1.msra.mxu0 0.0
        %1666 = vmatprep.subr.mxu0 0.0
        %1667 = vmatpush1.msra.mxu0 0.0
        %1668 = vmatprep.subr.mxu0 0.0
        %1669 = vmatpush1.msra.mxu0 0.0
        %1670 = vmatprep.subr.mxu0 0.0
        %1671 = vmatpush1.msra.mxu0 0.0
        %1672 = vmatprep.subr.mxu0 0.0
        %1673 = vmatpush1.msra.mxu0 0.0
        %1674 = vmatprep.subr.mxu0 0.0
        %1675 = vmatpush1.msra.mxu0 0.0
        %1676 = vmatprep.subr.mxu0 0.0
        %1677 = vmatpush1.msra.mxu0 0.0
        %1678 = vmatprep.subr.mxu0 0.0
        %1679 = vmatpush1.msra.mxu0 0.0
        %1680 = vmatprep.subr.mxu0 0.0
        %1681 = vmatpush1.msra.mxu0 0.0
        %1682 = vmatprep.subr.mxu0 0.0
        %1683 = vmatpush1.msra.mxu0 0.0
        %1684 = vmatprep.subr.mxu0 0.0
        %1685 = vmatpush1.msra.mxu0 0.0
        %1686 = vmatprep.subr.mxu0 0.0
        %1687 = vmatpush1.msra.mxu0 0.0
        %1688 = vmatprep.subr.mxu0 0.0
        %1689 = vmatpush1.msra.mxu0 0.0
        %1690 = vmatprep.subr.mxu0 0.0
        %1691 = vmatpush1.msra.mxu0 0.0
        %1692 = vmatprep.subr.mxu0 0.0
        %1693 = vmatpush1.msra.mxu0 0.0
        %1694 = vmatprep.subr.mxu0 0.0
        %1695 = vmatpush1.msra.mxu0 0.0
        %1696 = vmatprep.subr.mxu0 0.0
        %1697 = vmatpush1.msra.mxu0 0.0
        %1698 = vmatprep.subr.mxu0 0.0
        %1699 = vmatpush1.msra.mxu0 0.0
        %1700 = vmatprep.subr.mxu0 0.0
        %1701 = vmatpush1.msra.mxu0 0.0
        %1702 = vmatprep.mubr.f32.mxu0 0.0
        %1703 = vmatmul.mubr.f32.gmra.mrb[0].mxu0 %v1636
        %v1704 = vpop.f32.mrb[0].mxu0
        %v1705 = vadd.f32 %v1632, %v1704
        %v1706 = vpop.f32.mrb[0].mxu0
        %1707 = vdwg.mxu0
        %v1708 = vld [vmem:[%s646 + $0x30] sm:$0xff]
        %v1709 = vld [vmem:[%s3 + $0x40] sm:$0xff]
        %v1710 = vld [vmem:[%s3 + $0x48] sm:$0xff]
        %v1711 = vld [vmem:[%s3 + $0x50] sm:$0xff]
        %v1712 = vld [vmem:[%s3 + $0x58] sm:$0xff]
        %v1714 = vsel %vm670, %v1708, 0
        %1716 = vmatprep.subr.mxu0 0.0
        %1717 = vmatpush1.msra.mxu0 %v1709
        %1718 = vmatprep.subr.mxu0 0.0
        %1719 = vmatpush1.msra.mxu0 %v1710
        %1720 = vmatprep.subr.mxu0 0.0
        %1721 = vmatpush1.msra.mxu0 %v1711
        %1722 = vmatprep.subr.mxu0 0.0
        %1723 = vmatpush1.msra.mxu0 %v1712
        %1724 = vmatprep.subr.mxu0 0.0
        %1725 = vmatpush1.msra.mxu0 0.0
        %1726 = vmatprep.subr.mxu0 0.0
        %1727 = vmatpush1.msra.mxu0 0.0
        %1728 = vmatprep.subr.mxu0 0.0
        %1729 = vmatpush1.msra.mxu0 0.0
        %1730 = vmatprep.subr.mxu0 0.0
        %1731 = vmatpush1.msra.mxu0 0.0
        %1732 = vmatprep.subr.mxu0 0.0
        %1733 = vmatpush1.msra.mxu0 0.0
        %1734 = vmatprep.subr.mxu0 0.0
        %1735 = vmatpush1.msra.mxu0 0.0
        %1736 = vmatprep.subr.mxu0 0.0
        %1737 = vmatpush1.msra.mxu0 0.0
        %1738 = vmatprep.subr.mxu0 0.0
        %1739 = vmatpush1.msra.mxu0 0.0
        %1740 = vmatprep.subr.mxu0 0.0
        %1741 = vmatpush1.msra.mxu0 0.0
        %1742 = vmatprep.subr.mxu0 0.0
        %1743 = vmatpush1.msra.mxu0 0.0
        %1744 = vmatprep.subr.mxu0 0.0
        %1745 = vmatpush1.msra.mxu0 0.0
        %1746 = vmatprep.subr.mxu0 0.0
        %1747 = vmatpush1.msra.mxu0 0.0
        %1748 = vmatprep.subr.mxu0 0.0
        %1749 = vmatpush1.msra.mxu0 0.0
        %1750 = vmatprep.subr.mxu0 0.0
        %1751 = vmatpush1.msra.mxu0 0.0
        %1752 = vmatprep.subr.mxu0 0.0
        %1753 = vmatpush1.msra.mxu0 0.0
        %1754 = vmatprep.subr.mxu0 0.0
        %1755 = vmatpush1.msra.mxu0 0.0
        %1756 = vmatprep.subr.mxu0 0.0
        %1757 = vmatpush1.msra.mxu0 0.0
        %1758 = vmatprep.subr.mxu0 0.0
        %1759 = vmatpush1.msra.mxu0 0.0
        %1760 = vmatprep.subr.mxu0 0.0
        %1761 = vmatpush1.msra.mxu0 0.0
        %1762 = vmatprep.subr.mxu0 0.0
        %1763 = vmatpush1.msra.mxu0 0.0
        %1764 = vmatprep.subr.mxu0 0.0
        %1765 = vmatpush1.msra.mxu0 0.0
        %1766 = vmatprep.subr.mxu0 0.0
        %1767 = vmatpush1.msra.mxu0 0.0
        %1768 = vmatprep.subr.mxu0 0.0
        %1769 = vmatpush1.msra.mxu0 0.0
        %1770 = vmatprep.subr.mxu0 0.0
        %1771 = vmatpush1.msra.mxu0 0.0
        %1772 = vmatprep.subr.mxu0 0.0
        %1773 = vmatpush1.msra.mxu0 0.0
        %1774 = vmatprep.subr.mxu0 0.0
        %1775 = vmatpush1.msra.mxu0 0.0
        %1776 = vmatprep.subr.mxu0 0.0
        %1777 = vmatpush1.msra.mxu0 0.0
        %1778 = vmatprep.subr.mxu0 0.0
        %1779 = vmatpush1.msra.mxu0 0.0
        %1780 = vmatprep.mubr.f32.mxu0 0.0
        %1781 = vmatmul.mubr.f32.gmra.mrb[0].mxu0 %v1714
        %v1782 = vpop.f32.mrb[0].mxu0
        %v1783 = vadd.f32 0.0, %v1782
        %v1784 = vpop.f32.mrb[0].mxu0
        %1785 = vdwg.mxu0
        %v1786 = vadd.f32 %v1705, %v1783
        %v1787 = vld [vmem:[%s646 + $0x38] sm:$0xff]
        %v1788 = vld [vmem:[%s3 + $0x60] sm:$0xff]
        %v1789 = vld [vmem:[%s3 + $0x68] sm:$0xff]
        %v1790 = vld [vmem:[%s3 + $0x70] sm:$0xff]
        %v1791 = vld [vmem:[%s3 + $0x78] sm:$0xff]
        %v1793 = vsel %vm670, %v1787, 0
        %1795 = vmatprep.subr.mxu0 0.0
        %1796 = vmatpush1.msra.mxu0 %v1788
        %1797 = vmatprep.subr.mxu0 0.0
        %1798 = vmatpush1.msra.mxu0 %v1789
        %1799 = vmatprep.subr.mxu0 0.0
        %1800 = vmatpush1.msra.mxu0 %v1790
        %1801 = vmatprep.subr.mxu0 0.0
        %1802 = vmatpush1.msra.mxu0 %v1791
        %1803 = vmatprep.subr.mxu0 0.0
        %1804 = vmatpush1.msra.mxu0 0.0
        %1805 = vmatprep.subr.mxu0 0.0
        %1806 = vmatpush1.msra.mxu0 0.0
        %1807 = vmatprep.subr.mxu0 0.0
        %1808 = vmatpush1.msra.mxu0 0.0
        %1809 = vmatprep.subr.mxu0 0.0
        %1810 = vmatpush1.msra.mxu0 0.0
        %1811 = vmatprep.subr.mxu0 0.0
        %1812 = vmatpush1.msra.mxu0 0.0
        %1813 = vmatprep.subr.mxu0 0.0
        %1814 = vmatpush1.msra.mxu0 0.0
        %1815 = vmatprep.subr.mxu0 0.0
        %1816 = vmatpush1.msra.mxu0 0.0
        %1817 = vmatprep.subr.mxu0 0.0
        %1818 = vmatpush1.msra.mxu0 0.0
        %1819 = vmatprep.subr.mxu0 0.0
        %1820 = vmatpush1.msra.mxu0 0.0
        %1821 = vmatprep.subr.mxu0 0.0
        %1822 = vmatpush1.msra.mxu0 0.0
        %1823 = vmatprep.subr.mxu0 0.0
        %1824 = vmatpush1.msra.mxu0 0.0
        %1825 = vmatprep.subr.mxu0 0.0
        %1826 = vmatpush1.msra.mxu0 0.0
        %1827 = vmatprep.subr.mxu0 0.0
        %1828 = vmatpush1.msra.mxu0 0.0
        %1829 = vmatprep.subr.mxu0 0.0
        %1830 = vmatpush1.msra.mxu0 0.0
        %1831 = vmatprep.subr.mxu0 0.0
        %1832 = vmatpush1.msra.mxu0 0.0
        %1833 = vmatprep.subr.mxu0 0.0
        %1834 = vmatpush1.msra.mxu0 0.0
        %1835 = vmatprep.subr.mxu0 0.0
        %1836 = vmatpush1.msra.mxu0 0.0
        %1837 = vmatprep.subr.mxu0 0.0
        %1838 = vmatpush1.msra.mxu0 0.0
        %1839 = vmatprep.subr.mxu0 0.0
        %1840 = vmatpush1.msra.mxu0 0.0
        %1841 = vmatprep.subr.mxu0 0.0
        %1842 = vmatpush1.msra.mxu0 0.0
        %1843 = vmatprep.subr.mxu0 0.0
        %1844 = vmatpush1.msra.mxu0 0.0
        %1845 = vmatprep.subr.mxu0 0.0
        %1846 = vmatpush1.msra.mxu0 0.0
        %1847 = vmatprep.subr.mxu0 0.0
        %1848 = vmatpush1.msra.mxu0 0.0
        %1849 = vmatprep.subr.mxu0 0.0
        %1850 = vmatpush1.msra.mxu0 0.0
        %1851 = vmatprep.subr.mxu0 0.0
        %1852 = vmatpush1.msra.mxu0 0.0
        %1853 = vmatprep.subr.mxu0 0.0
        %1854 = vmatpush1.msra.mxu0 0.0
        %1855 = vmatprep.subr.mxu0 0.0
        %1856 = vmatpush1.msra.mxu0 0.0
        %1857 = vmatprep.subr.mxu0 0.0
        %1858 = vmatpush1.msra.mxu0 0.0
        %1859 = vmatprep.mubr.f32.mxu0 0.0
        %1860 = vmatmul.mubr.f32.gmra.mrb[0].mxu0 %v1793
        %v1861 = vpop.f32.mrb[0].mxu0
        %v1862 = vadd.f32 0.0, %v1861
        %v1863 = vpop.f32.mrb[0].mxu0
        %1864 = vdwg.mxu0
        %v1865 = vadd.f32 %v1786, %v1862
        %v1866 = vadd.f32 %v1865, %v1151
        %v1867 = vmax.f32 %v1866, 0.0
        %1868 = vst.msk [vmem:[%s651 + $0x1a] sm:$0xff] %vm905, %v1867
        %v1869 = vld [vmem:[%s6] sm:$0x1]
        %v1870 = vmax.f32 %v1869, 0.0
        %v1872 = vlaneseq
        %v1873 = vshrl.u32 %v1872, 7
        %v1874 = vsub.s32 0, %v1873
        %v1875 = vrot.slane %v1870, %v1874
        %1877 = vst [vmem:[%s616] sm:$0xff] %v1875
        %1878 = vst [vmem:[%s616 + $0x8] sm:$0xff] %v1875
        %v1879 = vld [vmem:[%s651] sm:$0xff]
        %v1880 = vld [vmem:[%s651 + $0x8] sm:$0xf]
        %v1881 = vld [vmem:[#allocation3] sm:$0xff]
        %v1882 = vld [vmem:[#allocation3 + $0x8] sm:$0xff]
        %v1883 = vld [vmem:[#allocation3 + $0x10] sm:$0xff]
        %v1884 = vld [vmem:[#allocation3 + $0x18] sm:$0xff]
        %v1885 = vld [vmem:[#allocation3 + $0x20] sm:$0xff]
        %v1886 = vld [vmem:[#allocation3 + $0x28] sm:$0xff]
        %v1887 = vld [vmem:[#allocation3 + $0x30] sm:$0xff]
        %v1888 = vld [vmem:[#allocation3 + $0x38] sm:$0xff]
        %v1889 = vld [vmem:[%s651 + $0xc] sm:$0xff]
        %v1890 = vld [vmem:[%s651 + $0x14] sm:$0xf]
        %v1891 = vld [vmem:[#allocation3 + $0x40] sm:$0xff]
        %v1892 = vld [vmem:[#allocation3 + $0x48] sm:$0xff]
        %v1893 = vld [vmem:[#allocation3 + $0x50] sm:$0xff]
        %v1894 = vld [vmem:[#allocation3 + $0x58] sm:$0xff]
        %v1895 = vld [vmem:[#allocation3 + $0x60] sm:$0xff]
        %v1896 = vld [vmem:[#allocation3 + $0x68] sm:$0xff]
        %v1897 = vld [vmem:[#allocation3 + $0x70] sm:$0xff]
        %v1898 = vld [vmem:[#allocation3 + $0x78] sm:$0xff]
        %v1900 = vsel %vm905, %v1889, 0
        %v1903 = vsel %vm905, %v1890, 0
        %1905 = vmatprep.subr.mxu0 0.0
        %1906 = vmatpush1.msra.mxu0 %v1891
        %1907 = vmatprep.subr.mxu0 0.0
        %1908 = vmatpush1.msra.mxu0 %v1892
        %1909 = vmatprep.subr.mxu0 0.0
        %1910 = vmatpush1.msra.mxu0 %v1893
        %1911 = vmatprep.subr.mxu0 0.0
        %1912 = vmatpush1.msra.mxu0 %v1894
        %1913 = vmatprep.subr.mxu0 0.0
        %1914 = vmatpush1.msra.mxu0 %v1895
        %1915 = vmatprep.subr.mxu0 0.0
        %1916 = vmatpush1.msra.mxu0 %v1896
        %1917 = vmatprep.subr.mxu0 0.0
        %1918 = vmatpush1.msra.mxu0 %v1897
        %1919 = vmatprep.subr.mxu0 0.0
        %1920 = vmatpush1.msra.mxu0 %v1898
        %1921 = vmatprep.subr.mxu0 0.0
        %1922 = vmatpush1.msra.mxu0 0.0
        %1923 = vmatprep.subr.mxu0 0.0
        %1924 = vmatpush1.msra.mxu0 0.0
        %1925 = vmatprep.subr.mxu0 0.0
        %1926 = vmatpush1.msra.mxu0 0.0
        %1927 = vmatprep.subr.mxu0 0.0
        %1928 = vmatpush1.msra.mxu0 0.0
        %1929 = vmatprep.subr.mxu0 0.0
        %1930 = vmatpush1.msra.mxu0 0.0
        %1931 = vmatprep.subr.mxu0 0.0
        %1932 = vmatpush1.msra.mxu0 0.0
        %1933 = vmatprep.subr.mxu0 0.0
        %1934 = vmatpush1.msra.mxu0 0.0
        %1935 = vmatprep.subr.mxu0 0.0
        %1936 = vmatpush1.msra.mxu0 0.0
        %1937 = vmatprep.subr.mxu0 0.0
        %1938 = vmatpush1.msra.mxu0 0.0
        %1939 = vmatprep.subr.mxu0 0.0
        %1940 = vmatpush1.msra.mxu0 0.0
        %1941 = vmatprep.subr.mxu0 0.0
        %1942 = vmatpush1.msra.mxu0 0.0
        %1943 = vmatprep.subr.mxu0 0.0
        %1944 = vmatpush1.msra.mxu0 0.0
        %1945 = vmatprep.subr.mxu0 0.0
        %1946 = vmatpush1.msra.mxu0 0.0
        %1947 = vmatprep.subr.mxu0 0.0
        %1948 = vmatpush1.msra.mxu0 0.0
        %1949 = vmatprep.subr.mxu0 0.0
        %1950 = vmatpush1.msra.mxu0 0.0
        %1951 = vmatprep.subr.mxu0 0.0
        %1952 = vmatpush1.msra.mxu0 0.0
        %1953 = vmatprep.subr.mxu0 0.0
        %1954 = vmatpush1.msra.mxu0 0.0
        %1955 = vmatprep.subr.mxu0 0.0
        %1956 = vmatpush1.msra.mxu0 0.0
        %1957 = vmatprep.subr.mxu0 0.0
        %1958 = vmatpush1.msra.mxu0 0.0
        %1959 = vmatprep.subr.mxu0 0.0
        %1960 = vmatpush1.msra.mxu0 0.0
        %1961 = vmatprep.subr.mxu0 0.0
        %1962 = vmatpush1.msra.mxu0 0.0
        %1963 = vmatprep.subr.mxu0 0.0
        %1964 = vmatpush1.msra.mxu0 0.0
        %1965 = vmatprep.subr.mxu0 0.0
        %1966 = vmatpush1.msra.mxu0 0.0
        %1967 = vmatprep.subr.mxu0 0.0
        %1968 = vmatpush1.msra.mxu0 0.0
        %1969 = vmatprep.mubr.f32.mxu0 0.0
        %1970 = vmatmul.mubr.f32.gmra.mrb[0].mxu0 %v1900
        %v1971 = vpop.f32.mrb[0].mxu0
        %v1972 = vadd.f32 0.0, %v1971
        %v1973 = vpop.f32.mrb[0].mxu0
        %1974 = vmatprep.mubr.f32.mxu0 0.0
        %1975 = vmatmul.mubr.f32.gmra.mrb[0].mxu0 %v1903
        %v1976 = vpop.f32.mrb[0].mxu0
        %v1977 = vadd.f32 0.0, %v1976
        %v1978 = vpop.f32.mrb[0].mxu0
        %1979 = vdwg.mxu0
        %v1981 = vsel %vm905, %v1879, 0
        %v1984 = vsel %vm905, %v1880, 0
        %1986 = vmatprep.subr.mxu0 0.0
        %1987 = vmatpush1.msra.mxu0 %v1881
        %1988 = vmatprep.subr.mxu0 0.0
        %1989 = vmatpush1.msra.mxu0 %v1882
        %1990 = vmatprep.subr.mxu0 0.0
        %1991 = vmatpush1.msra.mxu0 %v1883
        %1992 = vmatprep.subr.mxu0 0.0
        %1993 = vmatpush1.msra.mxu0 %v1884
        %1994 = vmatprep.subr.mxu0 0.0
        %1995 = vmatpush1.msra.mxu0 %v1885
        %1996 = vmatprep.subr.mxu0 0.0
        %1997 = vmatpush1.msra.mxu0 %v1886
        %1998 = vmatprep.subr.mxu0 0.0
        %1999 = vmatpush1.msra.mxu0 %v1887
        %2000 = vmatprep.subr.mxu0 0.0
        %2001 = vmatpush1.msra.mxu0 %v1888
        %2002 = vmatprep.subr.mxu0 0.0
        %2003 = vmatpush1.msra.mxu0 0.0
        %2004 = vmatprep.subr.mxu0 0.0
        %2005 = vmatpush1.msra.mxu0 0.0
        %2006 = vmatprep.subr.mxu0 0.0
        %2007 = vmatpush1.msra.mxu0 0.0
        %2008 = vmatprep.subr.mxu0 0.0
        %2009 = vmatpush1.msra.mxu0 0.0
        %2010 = vmatprep.subr.mxu0 0.0
        %2011 = vmatpush1.msra.mxu0 0.0
        %2012 = vmatprep.subr.mxu0 0.0
        %2013 = vmatpush1.msra.mxu0 0.0
        %2014 = vmatprep.subr.mxu0 0.0
        %2015 = vmatpush1.msra.mxu0 0.0
        %2016 = vmatprep.subr.mxu0 0.0
        %2017 = vmatpush1.msra.mxu0 0.0
        %2018 = vmatprep.subr.mxu0 0.0
        %2019 = vmatpush1.msra.mxu0 0.0
        %2020 = vmatprep.subr.mxu0 0.0
        %2021 = vmatpush1.msra.mxu0 0.0
        %2022 = vmatprep.subr.mxu0 0.0
        %2023 = vmatpush1.msra.mxu0 0.0
        %2024 = vmatprep.subr.mxu0 0.0
        %2025 = vmatpush1.msra.mxu0 0.0
        %2026 = vmatprep.subr.mxu0 0.0
        %2027 = vmatpush1.msra.mxu0 0.0
        %2028 = vmatprep.subr.mxu0 0.0
        %2029 = vmatpush1.msra.mxu0 0.0
        %2030 = vmatprep.subr.mxu0 0.0
        %2031 = vmatpush1.msra.mxu0 0.0
        %2032 = vmatprep.subr.mxu0 0.0
        %2033 = vmatpush1.msra.mxu0 0.0
        %2034 = vmatprep.subr.mxu0 0.0
        %2035 = vmatpush1.msra.mxu0 0.0
        %2036 = vmatprep.subr.mxu0 0.0
        %2037 = vmatpush1.msra.mxu0 0.0
        %2038 = vmatprep.subr.mxu0 0.0
        %2039 = vmatpush1.msra.mxu0 0.0
        %2040 = vmatprep.subr.mxu0 0.0
        %2041 = vmatpush1.msra.mxu0 0.0
        %2042 = vmatprep.subr.mxu0 0.0
        %2043 = vmatpush1.msra.mxu0 0.0
        %2044 = vmatprep.subr.mxu0 0.0
        %2045 = vmatpush1.msra.mxu0 0.0
        %2046 = vmatprep.subr.mxu0 0.0
        %2047 = vmatpush1.msra.mxu0 0.0
        %2048 = vmatprep.subr.mxu0 0.0
        %2049 = vmatpush1.msra.mxu0 0.0
        %2050 = vmatprep.mubr.f32.mxu0 0.0
        %2051 = vmatmul.mubr.f32.gmra.mrb[0].mxu0 %v1981
        %v2052 = vpop.f32.mrb[0].mxu0
        %v2053 = vadd.f32 %v1972, %v2052
        %v2054 = vpop.f32.mrb[0].mxu0
        %2055 = vmatprep.mubr.f32.mxu0 0.0
        %2056 = vmatmul.mubr.f32.gmra.mrb[0].mxu0 %v1984
        %v2057 = vpop.f32.mrb[0].mxu0
        %v2058 = vadd.f32 %v1977, %v2057
        %v2059 = vpop.f32.mrb[0].mxu0
        %2060 = vdwg.mxu0
        %v2061 = vld [vmem:[%s651 + $0x18] sm:$0xff]
        %v2062 = vld [vmem:[%s651 + $0x20] sm:$0xf]
        %v2063 = vld [vmem:[#allocation3 + $0x80] sm:$0xff]
        %v2064 = vld [vmem:[#allocation3 + $0x88] sm:$0xff]
        %v2065 = vld [vmem:[#allocation3 + $0x90] sm:$0xff]
        %v2066 = vld [vmem:[#allocation3 + $0x98] sm:$0xff]
        %v2067 = vld [vmem:[#allocation3 + $0xa0] sm:$0xff]
        %v2068 = vld [vmem:[#allocation3 + $0xa8] sm:$0xff]
        %v2069 = vld [vmem:[#allocation3 + $0xb0] sm:$0xff]
        %v2070 = vld [vmem:[#allocation3 + $0xb8] sm:$0xff]
        %v2072 = vsel %vm905, %v2061, 0
        %v2075 = vsel %vm905, %v2062, 0
        %2077 = vmatprep.subr.mxu0 0.0
        %2078 = vmatpush1.msra.mxu0 %v2063
        %2079 = vmatprep.subr.mxu0 0.0
        %2080 = vmatpush1.msra.mxu0 %v2064
        %2081 = vmatprep.subr.mxu0 0.0
        %2082 = vmatpush1.msra.mxu0 %v2065
        %2083 = vmatprep.subr.mxu0 0.0
        %2084 = vmatpush1.msra.mxu0 %v2066
        %2085 = vmatprep.subr.mxu0 0.0
        %2086 = vmatpush1.msra.mxu0 %v2067
        %2087 = vmatprep.subr.mxu0 0.0
        %2088 = vmatpush1.msra.mxu0 %v2068
        %2089 = vmatprep.subr.mxu0 0.0
        %2090 = vmatpush1.msra.mxu0 %v2069
        %2091 = vmatprep.subr.mxu0 0.0
        %2092 = vmatpush1.msra.mxu0 %v2070
        %2093 = vmatprep.subr.mxu0 0.0
        %2094 = vmatpush1.msra.mxu0 0.0
        %2095 = vmatprep.subr.mxu0 0.0
        %2096 = vmatpush1.msra.mxu0 0.0
        %2097 = vmatprep.subr.mxu0 0.0
        %2098 = vmatpush1.msra.mxu0 0.0
        %2099 = vmatprep.subr.mxu0 0.0
        %2100 = vmatpush1.msra.mxu0 0.0
        %2101 = vmatprep.subr.mxu0 0.0
        %2102 = vmatpush1.msra.mxu0 0.0
        %2103 = vmatprep.subr.mxu0 0.0
        %2104 = vmatpush1.msra.mxu0 0.0
        %2105 = vmatprep.subr.mxu0 0.0
        %2106 = vmatpush1.msra.mxu0 0.0
        %2107 = vmatprep.subr.mxu0 0.0
        %2108 = vmatpush1.msra.mxu0 0.0
        %2109 = vmatprep.subr.mxu0 0.0
        %2110 = vmatpush1.msra.mxu0 0.0
        %2111 = vmatprep.subr.mxu0 0.0
        %2112 = vmatpush1.msra.mxu0 0.0
        %2113 = vmatprep.subr.mxu0 0.0
        %2114 = vmatpush1.msra.mxu0 0.0
        %2115 = vmatprep.subr.mxu0 0.0
        %2116 = vmatpush1.msra.mxu0 0.0
        %2117 = vmatprep.subr.mxu0 0.0
        %2118 = vmatpush1.msra.mxu0 0.0
        %2119 = vmatprep.subr.mxu0 0.0
        %2120 = vmatpush1.msra.mxu0 0.0
        %2121 = vmatprep.subr.mxu0 0.0
        %2122 = vmatpush1.msra.mxu0 0.0
        %2123 = vmatprep.subr.mxu0 0.0
        %2124 = vmatpush1.msra.mxu0 0.0
        %2125 = vmatprep.subr.mxu0 0.0
        %2126 = vmatpush1.msra.mxu0 0.0
        %2127 = vmatprep.subr.mxu0 0.0
        %2128 = vmatpush1.msra.mxu0 0.0
        %2129 = vmatprep.subr.mxu0 0.0
        %2130 = vmatpush1.msra.mxu0 0.0
        %2131 = vmatprep.subr.mxu0 0.0
        %2132 = vmatpush1.msra.mxu0 0.0
        %2133 = vmatprep.subr.mxu0 0.0
        %2134 = vmatpush1.msra.mxu0 0.0
        %2135 = vmatprep.subr.mxu0 0.0
        %2136 = vmatpush1.msra.mxu0 0.0
        %2137 = vmatprep.subr.mxu0 0.0
        %2138 = vmatpush1.msra.mxu0 0.0
        %2139 = vmatprep.subr.mxu0 0.0
        %2140 = vmatpush1.msra.mxu0 0.0
        %2141 = vmatprep.mubr.f32.mxu0 0.0
        %2142 = vmatmul.mubr.f32.gmra.mrb[0].mxu0 %v2072
        %v2143 = vpop.f32.mrb[0].mxu0
        %v2144 = vadd.f32 0.0, %v2143
        %v2145 = vpop.f32.mrb[0].mxu0
        %2146 = vmatprep.mubr.f32.mxu0 0.0
        %2147 = vmatmul.mubr.f32.gmra.mrb[0].mxu0 %v2075
        %v2148 = vpop.f32.mrb[0].mxu0
        %v2149 = vadd.f32 0.0, %v2148
        %v2150 = vpop.f32.mrb[0].mxu0
        %2151 = vdwg.mxu0
        %v2152 = vadd.f32 %v2053, %v2144
        %v2153 = vadd.f32 %v2058, %v2149
        %v2155 = vlaneseq
        %v2156 = vshrl.u32 %v2155, 7
        %v2157 = vsub.s32 0, %v2156
        %v2158 = vrot.slane %v1869, %v2157
        %v2160 = vadd.f32 %v2152, %v2158
        %v2161 = vadd.f32 %v2153, %v2158
        %v2162 = vmax.f32 %v2160, 0.0
        %v2163 = vmax.f32 %v2161, 0.0
        %2164 = vst [vmem:[%s616 + $0x2] sm:$0xff] %v2162
        %2165 = vst [vmem:[%s616 + $0xa] sm:$0xf] %v2163
        %v2166 = vld [vmem:[%s8] sm:$0x3]
        %v2167 = vmax.f32 %v2166, 0.0
        %v2169 = vlaneseq
        %v2170 = vshrl.u32 %v2169, 7
        %v2171 = vsub.s32 0, %v2170
        %v2172 = vrot.slane %v2167, %v2171
        %v2173 = vlaneseq
        %v2174 = vshrl.u32 %v2173, 7
        %v2175 = vsub.s32 1, %v2174
        %v2176 = vrot.slane %v2167, %v2175
        %2179 = vst [vmem:[%s656] sm:$0xff] %v2172
        %2180 = vst [vmem:[%s656 + $0x8] sm:$0xff] %v2176
        %2181 = vst [vmem:[%s656 + $0x10] sm:$0xff] %v2172
        %2182 = vst [vmem:[%s656 + $0x18] sm:$0xff] %v2176
        %2183 = vst [vmem:[%s656 + $0x20] sm:$0xf] %v2172
        %2184 = vst [vmem:[%s656 + $0x28] sm:$0xf] %v2176
        %v2185 = vld [vmem:[%s616] sm:$0xff]
        %v2186 = vld [vmem:[%s616 + $0x8] sm:$0xff]
        %v2187 = vld [vmem:[%s7] sm:$0xff]
        %v2188 = vld [vmem:[%s7 + $0x8] sm:$0xff]
        %v2189 = vld [vmem:[%s7 + $0x10] sm:$0xff]
        %v2190 = vld [vmem:[%s7 + $0x18] sm:$0xff]
        %v2191 = vld [vmem:[%s7 + $0x20] sm:$0xff]
        %v2192 = vld [vmem:[%s7 + $0x28] sm:$0xff]
        %v2193 = vld [vmem:[%s7 + $0x30] sm:$0xff]
        %v2194 = vld [vmem:[%s7 + $0x38] sm:$0xff]
        %v2195 = vld [vmem:[%s7 + $0x40] sm:$0xff]
        %v2196 = vld [vmem:[%s7 + $0x48] sm:$0xff]
        %v2197 = vld [vmem:[%s7 + $0x50] sm:$0xff]
        %v2198 = vld [vmem:[%s7 + $0x58] sm:$0xff]
        %v2199 = vld [vmem:[%s7 + $0x60] sm:$0xff]
        %v2200 = vld [vmem:[%s7 + $0x68] sm:$0xff]
        %v2201 = vld [vmem:[%s7 + $0x70] sm:$0xff]
        %v2202 = vld [vmem:[%s7 + $0x78] sm:$0xff]
        %v2203 = vld [vmem:[%s7 + $0x80] sm:$0xff]
        %v2204 = vld [vmem:[%s7 + $0x88] sm:$0xff]
        %v2205 = vld [vmem:[%s7 + $0x90] sm:$0xff]
        %v2206 = vld [vmem:[%s7 + $0x98] sm:$0xff]
        %v2207 = vld [vmem:[%s7 + $0xa0] sm:$0xff]
        %v2208 = vld [vmem:[%s7 + $0xa8] sm:$0xff]
        %v2209 = vld [vmem:[%s7 + $0xb0] sm:$0xff]
        %v2210 = vld [vmem:[%s7 + $0xb8] sm:$0xff]
        %v2211 = vld [vmem:[%s7 + $0xc0] sm:$0xff]
        %v2212 = vld [vmem:[%s7 + $0xc8] sm:$0xff]
        %v2213 = vld [vmem:[%s7 + $0xd0] sm:$0xff]
        %v2214 = vld [vmem:[%s7 + $0xd8] sm:$0xff]
        %v2215 = vld [vmem:[%s7 + $0xe0] sm:$0xff]
        %v2216 = vld [vmem:[%s7 + $0xe8] sm:$0xff]
        %v2217 = vld [vmem:[%s7 + $0xf0] sm:$0xff]
        %v2218 = vld [vmem:[%s7 + $0xf8] sm:$0xff]
        %v2220 = vlaneseq
        %v2221 = vshrl.u32 %v2220, 7
        %v2222 = vsub.s32 0, %v2221
        %v2223 = vrot.slane %v2166, %v2222
        %v2224 = vlaneseq
        %v2225 = vshrl.u32 %v2224, 7
        %v2226 = vsub.s32 1, %v2225
        %v2227 = vrot.slane %v2166, %v2226
        %2230 = vmatprep.subr.mxu0 %v2188
        %2231 = vmatpush1.msra.mxu0 %v2187
        %2232 = vmatprep.subr.mxu0 %v2190
        %2233 = vmatpush1.msra.mxu0 %v2189
        %2234 = vmatprep.subr.mxu0 %v2192
        %2235 = vmatpush1.msra.mxu0 %v2191
        %2236 = vmatprep.subr.mxu0 %v2194
        %2237 = vmatpush1.msra.mxu0 %v2193
        %2238 = vmatprep.subr.mxu0 %v2196
        %2239 = vmatpush1.msra.mxu0 %v2195
        %2240 = vmatprep.subr.mxu0 %v2198
        %2241 = vmatpush1.msra.mxu0 %v2197
        %2242 = vmatprep.subr.mxu0 %v2200
        %2243 = vmatpush1.msra.mxu0 %v2199
        %2244 = vmatprep.subr.mxu0 %v2202
        %2245 = vmatpush1.msra.mxu0 %v2201
        %2246 = vmatprep.subr.mxu0 %v2204
        %2247 = vmatpush1.msra.mxu0 %v2203
        %2248 = vmatprep.subr.mxu0 %v2206
        %2249 = vmatpush1.msra.mxu0 %v2205
        %2250 = vmatprep.subr.mxu0 %v2208
        %2251 = vmatpush1.msra.mxu0 %v2207
        %2252 = vmatprep.subr.mxu0 %v2210
        %2253 = vmatpush1.msra.mxu0 %v2209
        %2254 = vmatprep.subr.mxu0 %v2212
        %2255 = vmatpush1.msra.mxu0 %v2211
        %2256 = vmatprep.subr.mxu0 %v2214
        %2257 = vmatpush1.msra.mxu0 %v2213
        %2258 = vmatprep.subr.mxu0 %v2216
        %2259 = vmatpush1.msra.mxu0 %v2215
        %2260 = vmatprep.subr.mxu0 %v2218
        %2261 = vmatpush1.msra.mxu0 %v2217
        %2262 = vmatprep.subr.mxu0 0.0
        %2263 = vmatpush1.msra.mxu0 0.0
        %2264 = vmatprep.subr.mxu0 0.0
        %2265 = vmatpush1.msra.mxu0 0.0
        %2266 = vmatprep.subr.mxu0 0.0
        %2267 = vmatpush1.msra.mxu0 0.0
        %2268 = vmatprep.subr.mxu0 0.0
        %2269 = vmatpush1.msra.mxu0 0.0
        %2270 = vmatprep.subr.mxu0 0.0
        %2271 = vmatpush1.msra.mxu0 0.0
        %2272 = vmatprep.subr.mxu0 0.0
        %2273 = vmatpush1.msra.mxu0 0.0
        %2274 = vmatprep.subr.mxu0 0.0
        %2275 = vmatpush1.msra.mxu0 0.0
        %2276 = vmatprep.subr.mxu0 0.0
        %2277 = vmatpush1.msra.mxu0 0.0
        %2278 = vmatprep.subr.mxu0 0.0
        %2279 = vmatpush1.msra.mxu0 0.0
        %2280 = vmatprep.subr.mxu0 0.0
        %2281 = vmatpush1.msra.mxu0 0.0
        %2282 = vmatprep.subr.mxu0 0.0
        %2283 = vmatpush1.msra.mxu0 0.0
        %2284 = vmatprep.subr.mxu0 0.0
        %2285 = vmatpush1.msra.mxu0 0.0
        %2286 = vmatprep.subr.mxu0 0.0
        %2287 = vmatpush1.msra.mxu0 0.0
        %2288 = vmatprep.subr.mxu0 0.0
        %2289 = vmatpush1.msra.mxu0 0.0
        %2290 = vmatprep.subr.mxu0 0.0
        %2291 = vmatpush1.msra.mxu0 0.0
        %2292 = vmatprep.subr.mxu0 0.0
        %2293 = vmatpush1.msra.mxu0 0.0
        %2294 = vmatprep.mubr.f32.mxu0 0.0
        %2295 = vmatmul.mubr.f32.gmra.mrb[0].mxu0 %v2185
        %v2296 = vpop.f32.mrb[0].mxu0
        %v2297 = vadd.f32 %v2223, %v2296
        %v2298 = vpop.f32.mrb[0].mxu0
        %v2299 = vadd.f32 %v2227, %v2298
        %2300 = vmatprep.mubr.f32.mxu0 0.0
        %2301 = vmatmul.mubr.f32.gmra.mrb[0].mxu0 %v2186
        %v2302 = vpop.f32.mrb[0].mxu0
        %v2303 = vadd.f32 %v2223, %v2302
        %v2304 = vpop.f32.mrb[0].mxu0
        %v2305 = vadd.f32 %v2227, %v2304
        %2306 = vdwg.mxu0
        %v2307 = vmax.f32 %v2297, 0.0
        %v2308 = vmax.f32 %v2299, 0.0
        %v2309 = vmax.f32 %v2303, 0.0
        %v2310 = vmax.f32 %v2305, 0.0
        %vm2315 = vcmask 1041408
        %v2316 = vrot.slane %v2307, 6
        %v2317 = vrot.slane %v2308, 6
        %v2318 = vrot.slane %v2309, 6
        %v2319 = vsel %vm2315, %v2316, %v2318
        %v2320 = vrot.slane %v2310, 6
        %v2321 = vsel %vm2315, %v2317, %v2320
        %2328 = vst [vmem:[%s656] sm:$0xfc] %v2316
        %2329 = vst [vmem:[%s656 + $0x8] sm:$0xfc] %v2317
        %2330 = vst [vmem:[%s656 + $0x10] sm:$0xff] %v2319
        %2331 = vst [vmem:[%s656 + $0x18] sm:$0xff] %v2321
        %2332 = vst [vmem:[%s656 + $0x20] sm:$0x3] %v2318
        %2333 = vst [vmem:[%s656 + $0x28] sm:$0x3] %v2320
        %v2334 = vld [vmem:[%s10] sm:$0xff]
        %v2336 = vlaneseq
        %v2337 = vshrl.u32 %v2336, 7
        %v2338 = vsub.s32 0, %v2337
        %v2339 = vrot.slane %v2334, %v2338
        %v2340 = vlaneseq
        %v2341 = vshrl.u32 %v2340, 7
        %v2342 = vsub.s32 1, %v2341
        %v2343 = vrot.slane %v2334, %v2342
        %v2344 = vlaneseq
        %v2345 = vshrl.u32 %v2344, 7
        %v2346 = vsub.s32 2, %v2345
        %v2347 = vrot.slane %v2334, %v2346
        %v2348 = vlaneseq
        %v2349 = vshrl.u32 %v2348, 7
        %v2350 = vsub.s32 3, %v2349
        %v2351 = vrot.slane %v2334, %v2350
        %v2352 = vlaneseq
        %v2353 = vshrl.u32 %v2352, 7
        %v2354 = vsub.s32 4, %v2353
        %v2355 = vrot.slane %v2334, %v2354
        %v2356 = vlaneseq
        %v2357 = vshrl.u32 %v2356, 7
        %v2358 = vsub.s32 5, %v2357
        %v2359 = vrot.slane %v2334, %v2358
        %v2360 = vlaneseq
        %v2361 = vshrl.u32 %v2360, 7
        %v2362 = vsub.s32 6, %v2361
        %v2363 = vrot.slane %v2334, %v2362
        %v2364 = vlaneseq
        %v2365 = vshrl.u32 %v2364, 7
        %v2366 = vsub.s32 7, %v2365
        %v2367 = vrot.slane %v2334, %v2366
        %2376 = vst [vmem:[%s630] sm:$0xff] %v2339
        %2377 = vst [vmem:[%s630 + $0x8] sm:$0xff] %v2343
        %2378 = vst [vmem:[%s630 + $0x10] sm:$0xff] %v2347
        %2379 = vst [vmem:[%s630 + $0x18] sm:$0xff] %v2351
        %2380 = vst [vmem:[%s630 + $0x20] sm:$0xff] %v2355
        %2381 = vst [vmem:[%s630 + $0x28] sm:$0xff] %v2359
        %2382 = vst [vmem:[%s630 + $0x30] sm:$0xff] %v2363
        %2383 = vst [vmem:[%s630 + $0x38] sm:$0xff] %v2367
        %2384 = vst [vmem:[%s630 + $0x40] sm:$0xff] %v2339
        %2385 = vst [vmem:[%s630 + $0x48] sm:$0xff] %v2343
        %2386 = vst [vmem:[%s630 + $0x50] sm:$0xff] %v2347
        %2387 = vst [vmem:[%s630 + $0x58] sm:$0xff] %v2351
        %2388 = vst [vmem:[%s630 + $0x60] sm:$0xff] %v2355
        %2389 = vst [vmem:[%s630 + $0x68] sm:$0xff] %v2359
        %2390 = vst [vmem:[%s630 + $0x70] sm:$0xff] %v2363
        %2391 = vst [vmem:[%s630 + $0x78] sm:$0xff] %v2367
        %2392 = vst [vmem:[%s630 + $0x80] sm:$0xff] %v2339
        %2393 = vst [vmem:[%s630 + $0x88] sm:$0xff] %v2343
        %2394 = vst [vmem:[%s630 + $0x90] sm:$0xff] %v2347
        %2395 = vst [vmem:[%s630 + $0x98] sm:$0xff] %v2351
        %2396 = vst [vmem:[%s630 + $0xa0] sm:$0xff] %v2355
        %2397 = vst [vmem:[%s630 + $0xa8] sm:$0xff] %v2359
        %2398 = vst [vmem:[%s630 + $0xb0] sm:$0xff] %v2363
        %2399 = vst [vmem:[%s630 + $0xb8] sm:$0xff] %v2367
        %v2400 = vld [vmem:[%s656] sm:$0xff]
        %v2401 = vld [vmem:[%s656 + $0x8] sm:$0xff]
        %v2402 = vld [vmem:[%s656 + $0x10] sm:$0xff]
        %v2403 = vld [vmem:[%s656 + $0x18] sm:$0xff]
        %v2404 = vld [vmem:[%s656 + $0x20] sm:$0xf]
        %v2405 = vld [vmem:[%s656 + $0x28] sm:$0xf]
        %v2406 = vld [vmem:[#allocation6] sm:$0xff]
        %v2407 = vld [vmem:[#allocation6 + $0x8] sm:$0xff]
        %v2408 = vld [vmem:[#allocation6 + $0x10] sm:$0xff]
        %v2409 = vld [vmem:[#allocation6 + $0x18] sm:$0xff]
        %v2410 = vld [vmem:[#allocation6 + $0x20] sm:$0xff]
        %v2411 = vld [vmem:[#allocation6 + $0x28] sm:$0xff]
        %v2412 = vld [vmem:[#allocation6 + $0x30] sm:$0xff]
        %v2413 = vld [vmem:[#allocation6 + $0x38] sm:$0xff]
        %v2414 = vld [vmem:[#allocation6 + $0x40] sm:$0xff]
        %v2415 = vld [vmem:[#allocation6 + $0x48] sm:$0xff]
        %v2416 = vld [vmem:[#allocation6 + $0x50] sm:$0xff]
        %v2417 = vld [vmem:[#allocation6 + $0x58] sm:$0xff]
        %v2418 = vld [vmem:[#allocation6 + $0x60] sm:$0xff]
        %v2419 = vld [vmem:[#allocation6 + $0x68] sm:$0xff]
        %v2420 = vld [vmem:[#allocation6 + $0x70] sm:$0xff]
        %v2421 = vld [vmem:[#allocation6 + $0x78] sm:$0xff]
        %v2422 = vld [vmem:[#allocation6 + $0x80] sm:$0xff]
        %v2423 = vld [vmem:[#allocation6 + $0x88] sm:$0xff]
        %v2424 = vld [vmem:[#allocation6 + $0x90] sm:$0xff]
        %v2425 = vld [vmem:[#allocation6 + $0x98] sm:$0xff]
        %v2426 = vld [vmem:[#allocation6 + $0xa0] sm:$0xff]
        %v2427 = vld [vmem:[#allocation6 + $0xa8] sm:$0xff]
        %v2428 = vld [vmem:[#allocation6 + $0xb0] sm:$0xff]
        %v2429 = vld [vmem:[#allocation6 + $0xb8] sm:$0xff]
        %v2430 = vld [vmem:[#allocation6 + $0xc0] sm:$0xff]
        %v2431 = vld [vmem:[#allocation6 + $0xc8] sm:$0xff]
        %v2432 = vld [vmem:[#allocation6 + $0xd0] sm:$0xff]
        %v2433 = vld [vmem:[#allocation6 + $0xd8] sm:$0xff]
        %v2434 = vld [vmem:[#allocation6 + $0xe0] sm:$0xff]
        %v2435 = vld [vmem:[#allocation6 + $0xe8] sm:$0xff]
        %v2436 = vld [vmem:[#allocation6 + $0xf0] sm:$0xff]
        %v2437 = vld [vmem:[#allocation6 + $0xf8] sm:$0xff]
        %v2438 = vld [vmem:[#allocation6 + $0x100] sm:$0xff]
        %v2439 = vld [vmem:[#allocation6 + $0x108] sm:$0xff]
        %v2440 = vld [vmem:[#allocation6 + $0x110] sm:$0xff]
        %v2441 = vld [vmem:[#allocation6 + $0x118] sm:$0xff]
        %v2442 = vld [vmem:[#allocation6 + $0x120] sm:$0xff]
        %v2443 = vld [vmem:[#allocation6 + $0x128] sm:$0xff]
        %v2444 = vld [vmem:[#allocation6 + $0x130] sm:$0xff]
        %v2445 = vld [vmem:[#allocation6 + $0x138] sm:$0xff]
        %v2446 = vld [vmem:[#allocation6 + $0x140] sm:$0xff]
        %v2447 = vld [vmem:[#allocation6 + $0x148] sm:$0xff]
        %v2448 = vld [vmem:[#allocation6 + $0x150] sm:$0xff]
        %v2449 = vld [vmem:[#allocation6 + $0x158] sm:$0xff]
        %v2450 = vld [vmem:[#allocation6 + $0x160] sm:$0xff]
        %v2451 = vld [vmem:[#allocation6 + $0x168] sm:$0xff]
        %v2452 = vld [vmem:[#allocation6 + $0x170] sm:$0xff]
        %v2453 = vld [vmem:[#allocation6 + $0x178] sm:$0xff]
        %v2454 = vld [vmem:[#allocation6 + $0x180] sm:$0xff]
        %v2455 = vld [vmem:[#allocation6 + $0x188] sm:$0xff]
        %v2456 = vld [vmem:[#allocation6 + $0x190] sm:$0xff]
        %v2457 = vld [vmem:[#allocation6 + $0x198] sm:$0xff]
        %v2458 = vld [vmem:[#allocation6 + $0x1a0] sm:$0xff]
        %v2459 = vld [vmem:[#allocation6 + $0x1a8] sm:$0xff]
        %v2460 = vld [vmem:[#allocation6 + $0x1b0] sm:$0xff]
        %v2461 = vld [vmem:[#allocation6 + $0x1b8] sm:$0xff]
        %v2462 = vld [vmem:[#allocation6 + $0x1c0] sm:$0xff]
        %v2463 = vld [vmem:[#allocation6 + $0x1c8] sm:$0xff]
        %v2464 = vld [vmem:[#allocation6 + $0x1d0] sm:$0xff]
        %v2465 = vld [vmem:[#allocation6 + $0x1d8] sm:$0xff]
        %v2466 = vld [vmem:[#allocation6 + $0x1e0] sm:$0xff]
        %v2467 = vld [vmem:[#allocation6 + $0x1e8] sm:$0xff]
        %v2468 = vld [vmem:[#allocation6 + $0x1f0] sm:$0xff]
        %v2469 = vld [vmem:[#allocation6 + $0x1f8] sm:$0xff]
        %v2470 = vld [vmem:[#allocation6 + $0x200] sm:$0xff]
        %v2471 = vld [vmem:[#allocation6 + $0x208] sm:$0xff]
        %v2472 = vld [vmem:[#allocation6 + $0x210] sm:$0xff]
        %v2473 = vld [vmem:[#allocation6 + $0x218] sm:$0xff]
        %v2474 = vld [vmem:[#allocation6 + $0x220] sm:$0xff]
        %v2475 = vld [vmem:[#allocation6 + $0x228] sm:$0xff]
        %v2476 = vld [vmem:[#allocation6 + $0x230] sm:$0xff]
        %v2477 = vld [vmem:[#allocation6 + $0x238] sm:$0xff]
        %v2478 = vld [vmem:[#allocation6 + $0x240] sm:$0xff]
        %v2479 = vld [vmem:[#allocation6 + $0x248] sm:$0xff]
        %v2480 = vld [vmem:[#allocation6 + $0x250] sm:$0xff]
        %v2481 = vld [vmem:[#allocation6 + $0x258] sm:$0xff]
        %v2482 = vld [vmem:[#allocation6 + $0x260] sm:$0xff]
        %v2483 = vld [vmem:[#allocation6 + $0x268] sm:$0xff]
        %v2484 = vld [vmem:[#allocation6 + $0x270] sm:$0xff]
        %v2485 = vld [vmem:[#allocation6 + $0x278] sm:$0xff]
        %v2486 = vld [vmem:[#allocation6 + $0x280] sm:$0xff]
        %v2487 = vld [vmem:[#allocation6 + $0x288] sm:$0xff]
        %v2488 = vld [vmem:[#allocation6 + $0x290] sm:$0xff]
        %v2489 = vld [vmem:[#allocation6 + $0x298] sm:$0xff]
        %v2490 = vld [vmem:[#allocation6 + $0x2a0] sm:$0xff]
        %v2491 = vld [vmem:[#allocation6 + $0x2a8] sm:$0xff]
        %v2492 = vld [vmem:[#allocation6 + $0x2b0] sm:$0xff]
        %v2493 = vld [vmem:[#allocation6 + $0x2b8] sm:$0xff]
        %v2494 = vld [vmem:[#allocation6 + $0x2c0] sm:$0xff]
        %v2495 = vld [vmem:[#allocation6 + $0x2c8] sm:$0xff]
        %v2496 = vld [vmem:[#allocation6 + $0x2d0] sm:$0xff]
        %v2497 = vld [vmem:[#allocation6 + $0x2d8] sm:$0xff]
        %v2498 = vld [vmem:[#allocation6 + $0x2e0] sm:$0xff]
        %v2499 = vld [vmem:[#allocation6 + $0x2e8] sm:$0xff]
        %v2500 = vld [vmem:[#allocation6 + $0x2f0] sm:$0xff]
        %v2501 = vld [vmem:[#allocation6 + $0x2f8] sm:$0xff]
        %v2502 = vld [vmem:[#allocation6 + $0x300] sm:$0xff]
        %v2503 = vld [vmem:[#allocation6 + $0x308] sm:$0xff]
        %v2504 = vld [vmem:[#allocation6 + $0x310] sm:$0xff]
        %v2505 = vld [vmem:[#allocation6 + $0x318] sm:$0xff]
        %v2506 = vld [vmem:[#allocation6 + $0x320] sm:$0xff]
        %v2507 = vld [vmem:[#allocation6 + $0x328] sm:$0xff]
        %v2508 = vld [vmem:[#allocation6 + $0x330] sm:$0xff]
        %v2509 = vld [vmem:[#allocation6 + $0x338] sm:$0xff]
        %v2510 = vld [vmem:[#allocation6 + $0x340] sm:$0xff]
        %v2511 = vld [vmem:[#allocation6 + $0x348] sm:$0xff]
        %v2512 = vld [vmem:[#allocation6 + $0x350] sm:$0xff]
        %v2513 = vld [vmem:[#allocation6 + $0x358] sm:$0xff]
        %v2514 = vld [vmem:[#allocation6 + $0x360] sm:$0xff]
        %v2515 = vld [vmem:[#allocation6 + $0x368] sm:$0xff]
        %v2516 = vld [vmem:[#allocation6 + $0x370] sm:$0xff]
        %v2517 = vld [vmem:[#allocation6 + $0x378] sm:$0xff]
        %v2518 = vld [vmem:[#allocation6 + $0x380] sm:$0xff]
        %v2519 = vld [vmem:[#allocation6 + $0x388] sm:$0xff]
        %v2520 = vld [vmem:[#allocation6 + $0x390] sm:$0xff]
        %v2521 = vld [vmem:[#allocation6 + $0x398] sm:$0xff]
        %v2522 = vld [vmem:[#allocation6 + $0x3a0] sm:$0xff]
        %v2523 = vld [vmem:[#allocation6 + $0x3a8] sm:$0xff]
        %v2524 = vld [vmem:[#allocation6 + $0x3b0] sm:$0xff]
        %v2525 = vld [vmem:[#allocation6 + $0x3b8] sm:$0xff]
        %v2526 = vld [vmem:[#allocation6 + $0x3c0] sm:$0xff]
        %v2527 = vld [vmem:[#allocation6 + $0x3c8] sm:$0xff]
        %v2528 = vld [vmem:[#allocation6 + $0x3d0] sm:$0xff]
        %v2529 = vld [vmem:[#allocation6 + $0x3d8] sm:$0xff]
        %v2530 = vld [vmem:[#allocation6 + $0x3e0] sm:$0xff]
        %v2531 = vld [vmem:[#allocation6 + $0x3e8] sm:$0xff]
        %v2532 = vld [vmem:[#allocation6 + $0x3f0] sm:$0xff]
        %v2533 = vld [vmem:[#allocation6 + $0x3f8] sm:$0xff]
        %v2534 = vld [vmem:[#allocation6 + $0x400] sm:$0xff]
        %v2535 = vld [vmem:[#allocation6 + $0x408] sm:$0xff]
        %v2536 = vld [vmem:[#allocation6 + $0x410] sm:$0xff]
        %v2537 = vld [vmem:[#allocation6 + $0x418] sm:$0xff]
        %v2538 = vld [vmem:[#allocation6 + $0x420] sm:$0xff]
        %v2539 = vld [vmem:[#allocation6 + $0x428] sm:$0xff]
        %v2540 = vld [vmem:[#allocation6 + $0x430] sm:$0xff]
        %v2541 = vld [vmem:[#allocation6 + $0x438] sm:$0xff]
        %v2542 = vld [vmem:[#allocation6 + $0x440] sm:$0xff]
        %v2543 = vld [vmem:[#allocation6 + $0x448] sm:$0xff]
        %v2544 = vld [vmem:[#allocation6 + $0x450] sm:$0xff]
        %v2545 = vld [vmem:[#allocation6 + $0x458] sm:$0xff]
        %v2546 = vld [vmem:[#allocation6 + $0x460] sm:$0xff]
        %v2547 = vld [vmem:[#allocation6 + $0x468] sm:$0xff]
        %v2548 = vld [vmem:[#allocation6 + $0x470] sm:$0xff]
        %v2549 = vld [vmem:[#allocation6 + $0x478] sm:$0xff]
        %v2550 = vld [vmem:[#allocation6 + $0x480] sm:$0xff]
        %v2551 = vld [vmem:[#allocation6 + $0x488] sm:$0xff]
        %v2552 = vld [vmem:[#allocation6 + $0x490] sm:$0xff]
        %v2553 = vld [vmem:[#allocation6 + $0x498] sm:$0xff]
        %v2554 = vld [vmem:[#allocation6 + $0x4a0] sm:$0xff]
        %v2555 = vld [vmem:[#allocation6 + $0x4a8] sm:$0xff]
        %v2556 = vld [vmem:[#allocation6 + $0x4b0] sm:$0xff]
        %v2557 = vld [vmem:[#allocation6 + $0x4b8] sm:$0xff]
        %v2558 = vld [vmem:[#allocation6 + $0x4c0] sm:$0xff]
        %v2559 = vld [vmem:[#allocation6 + $0x4c8] sm:$0xff]
        %v2560 = vld [vmem:[#allocation6 + $0x4d0] sm:$0xff]
        %v2561 = vld [vmem:[#allocation6 + $0x4d8] sm:$0xff]
        %v2562 = vld [vmem:[#allocation6 + $0x4e0] sm:$0xff]
        %v2563 = vld [vmem:[#allocation6 + $0x4e8] sm:$0xff]
        %v2564 = vld [vmem:[#allocation6 + $0x4f0] sm:$0xff]
        %v2565 = vld [vmem:[#allocation6 + $0x4f8] sm:$0xff]
        %v2566 = vld [vmem:[#allocation6 + $0x500] sm:$0xff]
        %v2567 = vld [vmem:[#allocation6 + $0x508] sm:$0xff]
        %v2568 = vld [vmem:[#allocation6 + $0x510] sm:$0xff]
        %v2569 = vld [vmem:[#allocation6 + $0x518] sm:$0xff]
        %v2570 = vld [vmem:[#allocation6 + $0x520] sm:$0xff]
        %v2571 = vld [vmem:[#allocation6 + $0x528] sm:$0xff]
        %v2572 = vld [vmem:[#allocation6 + $0x530] sm:$0xff]
        %v2573 = vld [vmem:[#allocation6 + $0x538] sm:$0xff]
        %v2574 = vld [vmem:[#allocation6 + $0x540] sm:$0xff]
        %v2575 = vld [vmem:[#allocation6 + $0x548] sm:$0xff]
        %v2576 = vld [vmem:[#allocation6 + $0x550] sm:$0xff]
        %v2577 = vld [vmem:[#allocation6 + $0x558] sm:$0xff]
        %v2578 = vld [vmem:[#allocation6 + $0x560] sm:$0xff]
        %v2579 = vld [vmem:[#allocation6 + $0x568] sm:$0xff]
        %v2580 = vld [vmem:[#allocation6 + $0x570] sm:$0xff]
        %v2581 = vld [vmem:[#allocation6 + $0x578] sm:$0xff]
        %v2582 = vld [vmem:[#allocation6 + $0x580] sm:$0xff]
        %v2583 = vld [vmem:[#allocation6 + $0x588] sm:$0xff]
        %v2584 = vld [vmem:[#allocation6 + $0x590] sm:$0xff]
        %v2585 = vld [vmem:[#allocation6 + $0x598] sm:$0xff]
        %v2586 = vld [vmem:[#allocation6 + $0x5a0] sm:$0xff]
        %v2587 = vld [vmem:[#allocation6 + $0x5a8] sm:$0xff]
        %v2588 = vld [vmem:[#allocation6 + $0x5b0] sm:$0xff]
        %v2589 = vld [vmem:[#allocation6 + $0x5b8] sm:$0xff]
        %v2590 = vld [vmem:[#allocation6 + $0x5c0] sm:$0xff]
        %v2591 = vld [vmem:[#allocation6 + $0x5c8] sm:$0xff]
        %v2592 = vld [vmem:[#allocation6 + $0x5d0] sm:$0xff]
        %v2593 = vld [vmem:[#allocation6 + $0x5d8] sm:$0xff]
        %v2594 = vld [vmem:[#allocation6 + $0x5e0] sm:$0xff]
        %v2595 = vld [vmem:[#allocation6 + $0x5e8] sm:$0xff]
        %v2596 = vld [vmem:[#allocation6 + $0x5f0] sm:$0xff]
        %v2597 = vld [vmem:[#allocation6 + $0x5f8] sm:$0xff]
        %v2598 = vld [vmem:[#allocation6 + $0x600] sm:$0xff]
        %v2599 = vld [vmem:[#allocation6 + $0x608] sm:$0xff]
        %v2600 = vld [vmem:[#allocation6 + $0x610] sm:$0xff]
        %v2601 = vld [vmem:[#allocation6 + $0x618] sm:$0xff]
        %v2602 = vld [vmem:[#allocation6 + $0x620] sm:$0xff]
        %v2603 = vld [vmem:[#allocation6 + $0x628] sm:$0xff]
        %v2604 = vld [vmem:[#allocation6 + $0x630] sm:$0xff]
        %v2605 = vld [vmem:[#allocation6 + $0x638] sm:$0xff]
        %v2606 = vld [vmem:[#allocation6 + $0x640] sm:$0xff]
        %v2607 = vld [vmem:[#allocation6 + $0x648] sm:$0xff]
        %v2608 = vld [vmem:[#allocation6 + $0x650] sm:$0xff]
        %v2609 = vld [vmem:[#allocation6 + $0x658] sm:$0xff]
        %v2610 = vld [vmem:[#allocation6 + $0x660] sm:$0xff]
        %v2611 = vld [vmem:[#allocation6 + $0x668] sm:$0xff]
        %v2612 = vld [vmem:[#allocation6 + $0x670] sm:$0xff]
        %v2613 = vld [vmem:[#allocation6 + $0x678] sm:$0xff]
        %v2614 = vld [vmem:[#allocation6 + $0x680] sm:$0xff]
        %v2615 = vld [vmem:[#allocation6 + $0x688] sm:$0xff]
        %v2616 = vld [vmem:[#allocation6 + $0x690] sm:$0xff]
        %v2617 = vld [vmem:[#allocation6 + $0x698] sm:$0xff]
        %v2618 = vld [vmem:[#allocation6 + $0x6a0] sm:$0xff]
        %v2619 = vld [vmem:[#allocation6 + $0x6a8] sm:$0xff]
        %v2620 = vld [vmem:[#allocation6 + $0x6b0] sm:$0xff]
        %v2621 = vld [vmem:[#allocation6 + $0x6b8] sm:$0xff]
        %v2622 = vld [vmem:[#allocation6 + $0x6c0] sm:$0xff]
        %v2623 = vld [vmem:[#allocation6 + $0x6c8] sm:$0xff]
        %v2624 = vld [vmem:[#allocation6 + $0x6d0] sm:$0xff]
        %v2625 = vld [vmem:[#allocation6 + $0x6d8] sm:$0xff]
        %v2626 = vld [vmem:[#allocation6 + $0x6e0] sm:$0xff]
        %v2627 = vld [vmem:[#allocation6 + $0x6e8] sm:$0xff]
        %v2628 = vld [vmem:[#allocation6 + $0x6f0] sm:$0xff]
        %v2629 = vld [vmem:[#allocation6 + $0x6f8] sm:$0xff]
        %v2630 = vld [vmem:[#allocation6 + $0x700] sm:$0xff]
        %v2631 = vld [vmem:[#allocation6 + $0x708] sm:$0xff]
        %v2632 = vld [vmem:[#allocation6 + $0x710] sm:$0xff]
        %v2633 = vld [vmem:[#allocation6 + $0x718] sm:$0xff]
        %v2634 = vld [vmem:[#allocation6 + $0x720] sm:$0xff]
        %v2635 = vld [vmem:[#allocation6 + $0x728] sm:$0xff]
        %v2636 = vld [vmem:[#allocation6 + $0x730] sm:$0xff]
        %v2637 = vld [vmem:[#allocation6 + $0x738] sm:$0xff]
        %v2638 = vld [vmem:[#allocation6 + $0x740] sm:$0xff]
        %v2639 = vld [vmem:[#allocation6 + $0x748] sm:$0xff]
        %v2640 = vld [vmem:[#allocation6 + $0x750] sm:$0xff]
        %v2641 = vld [vmem:[#allocation6 + $0x758] sm:$0xff]
        %v2642 = vld [vmem:[#allocation6 + $0x760] sm:$0xff]
        %v2643 = vld [vmem:[#allocation6 + $0x768] sm:$0xff]
        %v2644 = vld [vmem:[#allocation6 + $0x770] sm:$0xff]
        %v2645 = vld [vmem:[#allocation6 + $0x778] sm:$0xff]
        %v2646 = vld [vmem:[#allocation6 + $0x780] sm:$0xff]
        %v2647 = vld [vmem:[#allocation6 + $0x788] sm:$0xff]
        %v2648 = vld [vmem:[#allocation6 + $0x790] sm:$0xff]
        %v2649 = vld [vmem:[#allocation6 + $0x798] sm:$0xff]
        %v2650 = vld [vmem:[#allocation6 + $0x7a0] sm:$0xff]
        %v2651 = vld [vmem:[#allocation6 + $0x7a8] sm:$0xff]
        %v2652 = vld [vmem:[#allocation6 + $0x7b0] sm:$0xff]
        %v2653 = vld [vmem:[#allocation6 + $0x7b8] sm:$0xff]
        %v2654 = vld [vmem:[#allocation6 + $0x7c0] sm:$0xff]
        %v2655 = vld [vmem:[#allocation6 + $0x7c8] sm:$0xff]
        %v2656 = vld [vmem:[#allocation6 + $0x7d0] sm:$0xff]
        %v2657 = vld [vmem:[#allocation6 + $0x7d8] sm:$0xff]
        %v2658 = vld [vmem:[#allocation6 + $0x7e0] sm:$0xff]
        %v2659 = vld [vmem:[#allocation6 + $0x7e8] sm:$0xff]
        %v2660 = vld [vmem:[#allocation6 + $0x7f0] sm:$0xff]
        %v2661 = vld [vmem:[#allocation6 + $0x7f8] sm:$0xff]
        %2662 = vmatprep.subr.mxu0 %v2407
        %2663 = vmatpush1.msra.mxu0 %v2406
        %2664 = vmatprep.subr.mxu0 %v2415
        %2665 = vmatpush1.msra.mxu0 %v2414
        %2666 = vmatprep.subr.mxu0 %v2423
        %2667 = vmatpush1.msra.mxu0 %v2422
        %2668 = vmatprep.subr.mxu0 %v2431
        %2669 = vmatpush1.msra.mxu0 %v2430
        %2670 = vmatprep.subr.mxu0 %v2439
        %2671 = vmatpush1.msra.mxu0 %v2438
        %2672 = vmatprep.subr.mxu0 %v2447
        %2673 = vmatpush1.msra.mxu0 %v2446
        %2674 = vmatprep.subr.mxu0 %v2455
        %2675 = vmatpush1.msra.mxu0 %v2454
        %2676 = vmatprep.subr.mxu0 %v2463
        %2677 = vmatpush1.msra.mxu0 %v2462
        %2678 = vmatprep.subr.mxu0 %v2471
        %2679 = vmatpush1.msra.mxu0 %v2470
        %2680 = vmatprep.subr.mxu0 %v2479
        %2681 = vmatpush1.msra.mxu0 %v2478
        %2682 = vmatprep.subr.mxu0 %v2487
        %2683 = vmatpush1.msra.mxu0 %v2486
        %2684 = vmatprep.subr.mxu0 %v2495
        %2685 = vmatpush1.msra.mxu0 %v2494
        %2686 = vmatprep.subr.mxu0 %v2503
        %2687 = vmatpush1.msra.mxu0 %v2502
        %2688 = vmatprep.subr.mxu0 %v2511
        %2689 = vmatpush1.msra.mxu0 %v2510
        %2690 = vmatprep.subr.mxu0 %v2519
        %2691 = vmatpush1.msra.mxu0 %v2518
        %2692 = vmatprep.subr.mxu0 %v2527
        %2693 = vmatpush1.msra.mxu0 %v2526
        %2694 = vmatprep.subr.mxu0 %v2535
        %2695 = vmatpush1.msra.mxu0 %v2534
        %2696 = vmatprep.subr.mxu0 %v2543
        %2697 = vmatpush1.msra.mxu0 %v2542
        %2698 = vmatprep.subr.mxu0 %v2551
        %2699 = vmatpush1.msra.mxu0 %v2550
        %2700 = vmatprep.subr.mxu0 %v2559
        %2701 = vmatpush1.msra.mxu0 %v2558
        %2702 = vmatprep.subr.mxu0 %v2567
        %2703 = vmatpush1.msra.mxu0 %v2566
        %2704 = vmatprep.subr.mxu0 %v2575
        %2705 = vmatpush1.msra.mxu0 %v2574
        %2706 = vmatprep.subr.mxu0 %v2583
        %2707 = vmatpush1.msra.mxu0 %v2582
        %2708 = vmatprep.subr.mxu0 %v2591
        %2709 = vmatpush1.msra.mxu0 %v2590
        %2710 = vmatprep.subr.mxu0 %v2599
        %2711 = vmatpush1.msra.mxu0 %v2598
        %2712 = vmatprep.subr.mxu0 %v2607
        %2713 = vmatpush1.msra.mxu0 %v2606
        %2714 = vmatprep.subr.mxu0 %v2615
        %2715 = vmatpush1.msra.mxu0 %v2614
        %2716 = vmatprep.subr.mxu0 %v2623
        %2717 = vmatpush1.msra.mxu0 %v2622
        %2718 = vmatprep.subr.mxu0 %v2631
        %2719 = vmatpush1.msra.mxu0 %v2630
        %2720 = vmatprep.subr.mxu0 %v2639
        %2721 = vmatpush1.msra.mxu0 %v2638
        %2722 = vmatprep.subr.mxu0 %v2647
        %2723 = vmatpush1.msra.mxu0 %v2646
        %2724 = vmatprep.subr.mxu0 %v2655
        %2725 = vmatpush1.msra.mxu0 %v2654
        %2726 = vmatprep.mubr.f32.mxu0 %v2401
        %2727 = vmatmul.mubr.f32.gmra.mrb[0].mxu0 %v2400
        %v2728 = vpop.f32.mrb[0].mxu0
        %v2729 = vadd.f32 %v2339, %v2728
        %v2730 = vpop.f32.mrb[0].mxu0
        %v2731 = vadd.f32 %v2343, %v2730
        %2732 = vmatprep.mubr.f32.mxu0 %v2403
        %2733 = vmatmul.mubr.f32.gmra.mrb[0].mxu0 %v2402
        %v2734 = vpop.f32.mrb[0].mxu0
        %v2735 = vadd.f32 %v2339, %v2734
        %v2736 = vpop.f32.mrb[0].mxu0
        %v2737 = vadd.f32 %v2343, %v2736
        %2738 = vmatprep.mubr.f32.mxu0 %v2405
        %2739 = vmatmul.mubr.f32.gmra.mrb[0].mxu0 %v2404
        %v2740 = vpop.f32.mrb[0].mxu0
        %v2741 = vadd.f32 %v2339, %v2740
        %v2742 = vpop.f32.mrb[0].mxu0
        %v2743 = vadd.f32 %v2343, %v2742
        %2744 = vdwg.mxu0
        %2745 = vmatprep.subr.mxu0 %v2409
        %2746 = vmatpush1.msra.mxu0 %v2408
        %2747 = vmatprep.subr.mxu0 %v2417
        %2748 = vmatpush1.msra.mxu0 %v2416
        %2749 = vmatprep.subr.mxu0 %v2425
        %2750 = vmatpush1.msra.mxu0 %v2424
        %2751 = vmatprep.subr.mxu0 %v2433
        %2752 = vmatpush1.msra.mxu0 %v2432
        %2753 = vmatprep.subr.mxu0 %v2441
        %2754 = vmatpush1.msra.mxu0 %v2440
        %2755 = vmatprep.subr.mxu0 %v2449
        %2756 = vmatpush1.msra.mxu0 %v2448
        %2757 = vmatprep.subr.mxu0 %v2457
        %2758 = vmatpush1.msra.mxu0 %v2456
        %2759 = vmatprep.subr.mxu0 %v2465
        %2760 = vmatpush1.msra.mxu0 %v2464
        %2761 = vmatprep.subr.mxu0 %v2473
        %2762 = vmatpush1.msra.mxu0 %v2472
        %2763 = vmatprep.subr.mxu0 %v2481
        %2764 = vmatpush1.msra.mxu0 %v2480
        %2765 = vmatprep.subr.mxu0 %v2489
        %2766 = vmatpush1.msra.mxu0 %v2488
        %2767 = vmatprep.subr.mxu0 %v2497
        %2768 = vmatpush1.msra.mxu0 %v2496
        %2769 = vmatprep.subr.mxu0 %v2505
        %2770 = vmatpush1.msra.mxu0 %v2504
        %2771 = vmatprep.subr.mxu0 %v2513
        %2772 = vmatpush1.msra.mxu0 %v2512
        %2773 = vmatprep.subr.mxu0 %v2521
        %2774 = vmatpush1.msra.mxu0 %v2520
        %2775 = vmatprep.subr.mxu0 %v2529
        %2776 = vmatpush1.msra.mxu0 %v2528
        %2777 = vmatprep.subr.mxu0 %v2537
        %2778 = vmatpush1.msra.mxu0 %v2536
        %2779 = vmatprep.subr.mxu0 %v2545
        %2780 = vmatpush1.msra.mxu0 %v2544
        %2781 = vmatprep.subr.mxu0 %v2553
        %2782 = vmatpush1.msra.mxu0 %v2552
        %2783 = vmatprep.subr.mxu0 %v2561
        %2784 = vmatpush1.msra.mxu0 %v2560
        %2785 = vmatprep.subr.mxu0 %v2569
        %2786 = vmatpush1.msra.mxu0 %v2568
        %2787 = vmatprep.subr.mxu0 %v2577
        %2788 = vmatpush1.msra.mxu0 %v2576
        %2789 = vmatprep.subr.mxu0 %v2585
        %2790 = vmatpush1.msra.mxu0 %v2584
        %2791 = vmatprep.subr.mxu0 %v2593
        %2792 = vmatpush1.msra.mxu0 %v2592
        %2793 = vmatprep.subr.mxu0 %v2601
        %2794 = vmatpush1.msra.mxu0 %v2600
        %2795 = vmatprep.subr.mxu0 %v2609
        %2796 = vmatpush1.msra.mxu0 %v2608
        %2797 = vmatprep.subr.mxu0 %v2617
        %2798 = vmatpush1.msra.mxu0 %v2616
        %2799 = vmatprep.subr.mxu0 %v2625
        %2800 = vmatpush1.msra.mxu0 %v2624
        %2801 = vmatprep.subr.mxu0 %v2633
        %2802 = vmatpush1.msra.mxu0 %v2632
        %2803 = vmatprep.subr.mxu0 %v2641
        %2804 = vmatpush1.msra.mxu0 %v2640
        %2805 = vmatprep.subr.mxu0 %v2649
        %2806 = vmatpush1.msra.mxu0 %v2648
        %2807 = vmatprep.subr.mxu0 %v2657
        %2808 = vmatpush1.msra.mxu0 %v2656
        %2809 = vmatprep.mubr.f32.mxu0 %v2401
        %2810 = vmatmul.mubr.f32.gmra.mrb[0].mxu0 %v2400
        %v2811 = vpop.f32.mrb[0].mxu0
        %v2812 = vadd.f32 %v2347, %v2811
        %v2813 = vpop.f32.mrb[0].mxu0
        %v2814 = vadd.f32 %v2351, %v2813
        %2815 = vmatprep.mubr.f32.mxu0 %v2403
        %2816 = vmatmul.mubr.f32.gmra.mrb[0].mxu0 %v2402
        %v2817 = vpop.f32.mrb[0].mxu0
        %v2818 = vadd.f32 %v2347, %v2817
        %v2819 = vpop.f32.mrb[0].mxu0
        %v2820 = vadd.f32 %v2351, %v2819
        %2821 = vmatprep.mubr.f32.mxu0 %v2405
        %2822 = vmatmul.mubr.f32.gmra.mrb[0].mxu0 %v2404
        %v2823 = vpop.f32.mrb[0].mxu0
        %v2824 = vadd.f32 %v2347, %v2823
        %v2825 = vpop.f32.mrb[0].mxu0
        %v2826 = vadd.f32 %v2351, %v2825
        %2827 = vdwg.mxu0
        %2828 = vmatprep.subr.mxu0 %v2411
        %2829 = vmatpush1.msra.mxu0 %v2410
        %2830 = vmatprep.subr.mxu0 %v2419
        %2831 = vmatpush1.msra.mxu0 %v2418
        %2832 = vmatprep.subr.mxu0 %v2427
        %2833 = vmatpush1.msra.mxu0 %v2426
        %2834 = vmatprep.subr.mxu0 %v2435
        %2835 = vmatpush1.msra.mxu0 %v2434
        %2836 = vmatprep.subr.mxu0 %v2443
        %2837 = vmatpush1.msra.mxu0 %v2442
        %2838 = vmatprep.subr.mxu0 %v2451
        %2839 = vmatpush1.msra.mxu0 %v2450
        %2840 = vmatprep.subr.mxu0 %v2459
        %2841 = vmatpush1.msra.mxu0 %v2458
        %2842 = vmatprep.subr.mxu0 %v2467
        %2843 = vmatpush1.msra.mxu0 %v2466
        %2844 = vmatprep.subr.mxu0 %v2475
        %2845 = vmatpush1.msra.mxu0 %v2474
        %2846 = vmatprep.subr.mxu0 %v2483
        %2847 = vmatpush1.msra.mxu0 %v2482
        %2848 = vmatprep.subr.mxu0 %v2491
        %2849 = vmatpush1.msra.mxu0 %v2490
        %2850 = vmatprep.subr.mxu0 %v2499
        %2851 = vmatpush1.msra.mxu0 %v2498
        %2852 = vmatprep.subr.mxu0 %v2507
        %2853 = vmatpush1.msra.mxu0 %v2506
        %2854 = vmatprep.subr.mxu0 %v2515
        %2855 = vmatpush1.msra.mxu0 %v2514
        %2856 = vmatprep.subr.mxu0 %v2523
        %2857 = vmatpush1.msra.mxu0 %v2522
        %2858 = vmatprep.subr.mxu0 %v2531
        %2859 = vmatpush1.msra.mxu0 %v2530
        %2860 = vmatprep.subr.mxu0 %v2539
        %2861 = vmatpush1.msra.mxu0 %v2538
        %2862 = vmatprep.subr.mxu0 %v2547
        %2863 = vmatpush1.msra.mxu0 %v2546
        %2864 = vmatprep.subr.mxu0 %v2555
        %2865 = vmatpush1.msra.mxu0 %v2554
        %2866 = vmatprep.subr.mxu0 %v2563
        %2867 = vmatpush1.msra.mxu0 %v2562
        %2868 = vmatprep.subr.mxu0 %v2571
        %2869 = vmatpush1.msra.mxu0 %v2570
        %2870 = vmatprep.subr.mxu0 %v2579
        %2871 = vmatpush1.msra.mxu0 %v2578
        %2872 = vmatprep.subr.mxu0 %v2587
        %2873 = vmatpush1.msra.mxu0 %v2586
        %2874 = vmatprep.subr.mxu0 %v2595
        %2875 = vmatpush1.msra.mxu0 %v2594
        %2876 = vmatprep.subr.mxu0 %v2603
        %2877 = vmatpush1.msra.mxu0 %v2602
        %2878 = vmatprep.subr.mxu0 %v2611
        %2879 = vmatpush1.msra.mxu0 %v2610
        %2880 = vmatprep.subr.mxu0 %v2619
        %2881 = vmatpush1.msra.mxu0 %v2618
        %2882 = vmatprep.subr.mxu0 %v2627
        %2883 = vmatpush1.msra.mxu0 %v2626
        %2884 = vmatprep.subr.mxu0 %v2635
        %2885 = vmatpush1.msra.mxu0 %v2634
        %2886 = vmatprep.subr.mxu0 %v2643
        %2887 = vmatpush1.msra.mxu0 %v2642
        %2888 = vmatprep.subr.mxu0 %v2651
        %2889 = vmatpush1.msra.mxu0 %v2650
        %2890 = vmatprep.subr.mxu0 %v2659
        %2891 = vmatpush1.msra.mxu0 %v2658
        %2892 = vmatprep.mubr.f32.mxu0 %v2401
        %2893 = vmatmul.mubr.f32.gmra.mrb[0].mxu0 %v2400
        %v2894 = vpop.f32.mrb[0].mxu0
        %v2895 = vadd.f32 %v2355, %v2894
        %v2896 = vpop.f32.mrb[0].mxu0
        %v2897 = vadd.f32 %v2359, %v2896
        %2898 = vmatprep.mubr.f32.mxu0 %v2403
        %2899 = vmatmul.mubr.f32.gmra.mrb[0].mxu0 %v2402
        %v2900 = vpop.f32.mrb[0].mxu0
        %v2901 = vadd.f32 %v2355, %v2900
        %v2902 = vpop.f32.mrb[0].mxu0
        %v2903 = vadd.f32 %v2359, %v2902
        %2904 = vmatprep.mubr.f32.mxu0 %v2405
        %2905 = vmatmul.mubr.f32.gmra.mrb[0].mxu0 %v2404
        %v2906 = vpop.f32.mrb[0].mxu0
        %v2907 = vadd.f32 %v2355, %v2906
        %v2908 = vpop.f32.mrb[0].mxu0
        %v2909 = vadd.f32 %v2359, %v2908
        %2910 = vdwg.mxu0
        %2911 = vmatprep.subr.mxu0 %v2413
        %2912 = vmatpush1.msra.mxu0 %v2412
        %2913 = vmatprep.subr.mxu0 %v2421
        %2914 = vmatpush1.msra.mxu0 %v2420
        %2915 = vmatprep.subr.mxu0 %v2429
        %2916 = vmatpush1.msra.mxu0 %v2428
        %2917 = vmatprep.subr.mxu0 %v2437
        %2918 = vmatpush1.msra.mxu0 %v2436
        %2919 = vmatprep.subr.mxu0 %v2445
        %2920 = vmatpush1.msra.mxu0 %v2444
        %2921 = vmatprep.subr.mxu0 %v2453
        %2922 = vmatpush1.msra.mxu0 %v2452
        %2923 = vmatprep.subr.mxu0 %v2461
        %2924 = vmatpush1.msra.mxu0 %v2460
        %2925 = vmatprep.subr.mxu0 %v2469
        %2926 = vmatpush1.msra.mxu0 %v2468
        %2927 = vmatprep.subr.mxu0 %v2477
        %2928 = vmatpush1.msra.mxu0 %v2476
        %2929 = vmatprep.subr.mxu0 %v2485
        %2930 = vmatpush1.msra.mxu0 %v2484
        %2931 = vmatprep.subr.mxu0 %v2493
        %2932 = vmatpush1.msra.mxu0 %v2492
        %2933 = vmatprep.subr.mxu0 %v2501
        %2934 = vmatpush1.msra.mxu0 %v2500
        %2935 = vmatprep.subr.mxu0 %v2509
        %2936 = vmatpush1.msra.mxu0 %v2508
        %2937 = vmatprep.subr.mxu0 %v2517
        %2938 = vmatpush1.msra.mxu0 %v2516
        %2939 = vmatprep.subr.mxu0 %v2525
        %2940 = vmatpush1.msra.mxu0 %v2524
        %2941 = vmatprep.subr.mxu0 %v2533
        %2942 = vmatpush1.msra.mxu0 %v2532
        %2943 = vmatprep.subr.mxu0 %v2541
        %2944 = vmatpush1.msra.mxu0 %v2540
        %2945 = vmatprep.subr.mxu0 %v2549
        %2946 = vmatpush1.msra.mxu0 %v2548
        %2947 = vmatprep.subr.mxu0 %v2557
        %2948 = vmatpush1.msra.mxu0 %v2556
        %2949 = vmatprep.subr.mxu0 %v2565
        %2950 = vmatpush1.msra.mxu0 %v2564
        %2951 = vmatprep.subr.mxu0 %v2573
        %2952 = vmatpush1.msra.mxu0 %v2572
        %2953 = vmatprep.subr.mxu0 %v2581
        %2954 = vmatpush1.msra.mxu0 %v2580
        %2955 = vmatprep.subr.mxu0 %v2589
        %2956 = vmatpush1.msra.mxu0 %v2588
        %2957 = vmatprep.subr.mxu0 %v2597
        %2958 = vmatpush1.msra.mxu0 %v2596
        %2959 = vmatprep.subr.mxu0 %v2605
        %2960 = vmatpush1.msra.mxu0 %v2604
        %2961 = vmatprep.subr.mxu0 %v2613
        %2962 = vmatpush1.msra.mxu0 %v2612
        %2963 = vmatprep.subr.mxu0 %v2621
        %2964 = vmatpush1.msra.mxu0 %v2620
        %2965 = vmatprep.subr.mxu0 %v2629
        %2966 = vmatpush1.msra.mxu0 %v2628
        %2967 = vmatprep.subr.mxu0 %v2637
        %2968 = vmatpush1.msra.mxu0 %v2636
        %2969 = vmatprep.subr.mxu0 %v2645
        %2970 = vmatpush1.msra.mxu0 %v2644
        %2971 = vmatprep.subr.mxu0 %v2653
        %2972 = vmatpush1.msra.mxu0 %v2652
        %2973 = vmatprep.subr.mxu0 %v2661
        %2974 = vmatpush1.msra.mxu0 %v2660
        %2975 = vmatprep.mubr.f32.mxu0 %v2401
        %2976 = vmatmul.mubr.f32.gmra.mrb[0].mxu0 %v2400
        %v2977 = vpop.f32.mrb[0].mxu0
        %v2978 = vadd.f32 %v2363, %v2977
        %v2979 = vpop.f32.mrb[0].mxu0
        %v2980 = vadd.f32 %v2367, %v2979
        %2981 = vmatprep.mubr.f32.mxu0 %v2403
        %2982 = vmatmul.mubr.f32.gmra.mrb[0].mxu0 %v2402
        %v2983 = vpop.f32.mrb[0].mxu0
        %v2984 = vadd.f32 %v2363, %v2983
        %v2985 = vpop.f32.mrb[0].mxu0
        %v2986 = vadd.f32 %v2367, %v2985
        %2987 = vmatprep.mubr.f32.mxu0 %v2405
        %2988 = vmatmul.mubr.f32.gmra.mrb[0].mxu0 %v2404
        %v2989 = vpop.f32.mrb[0].mxu0
        %v2990 = vadd.f32 %v2363, %v2989
        %v2991 = vpop.f32.mrb[0].mxu0
        %v2992 = vadd.f32 %v2367, %v2991
        %2993 = vdwg.mxu0
        %v3018 = vrot.slane %v2729, 6
        %v3019 = vrot.slane %v2731, 6
        %v3020 = vrot.slane %v2812, 6
        %v3021 = vrot.slane %v2814, 6
        %v3022 = vrot.slane %v2895, 6
        %v3023 = vrot.slane %v2897, 6
        %v3024 = vrot.slane %v2978, 6
        %v3025 = vrot.slane %v2980, 6
        %v3026 = vrot.slane %v2735, 6
        %v3027 = vsel %vm2315, %v3018, %v3026
        %v3028 = vrot.slane %v2737, 6
        %v3029 = vsel %vm2315, %v3019, %v3028
        %v3030 = vrot.slane %v2818, 6
        %v3031 = vsel %vm2315, %v3020, %v3030
        %v3032 = vrot.slane %v2820, 6
        %v3033 = vsel %vm2315, %v3021, %v3032
        %v3034 = vrot.slane %v2901, 6
        %v3035 = vsel %vm2315, %v3022, %v3034
        %v3036 = vrot.slane %v2903, 6
        %v3037 = vsel %vm2315, %v3023, %v3036
        %v3038 = vrot.slane %v2984, 6
        %v3039 = vsel %vm2315, %v3024, %v3038
        %v3040 = vrot.slane %v2986, 6
        %v3041 = vsel %vm2315, %v3025, %v3040
        %v3042 = vrot.slane %v2741, 6
        %v3043 = vsel %vm2315, %v3026, %v3042
        %v3044 = vrot.slane %v2743, 6
        %v3045 = vsel %vm2315, %v3028, %v3044
        %v3046 = vrot.slane %v2824, 6
        %v3047 = vsel %vm2315, %v3030, %v3046
        %v3048 = vrot.slane %v2826, 6
        %v3049 = vsel %vm2315, %v3032, %v3048
        %v3050 = vrot.slane %v2907, 6
        %v3051 = vsel %vm2315, %v3034, %v3050
        %v3052 = vrot.slane %v2909, 6
        %v3053 = vsel %vm2315, %v3036, %v3052
        %v3054 = vrot.slane %v2990, 6
        %v3055 = vsel %vm2315, %v3038, %v3054
        %v3056 = vrot.slane %v2992, 6
        %v3057 = vsel %vm2315, %v3040, %v3056
        %3082 = vst [vmem:[%s630] sm:$0xfc] %v3018
        %3083 = vst [vmem:[%s630 + $0x8] sm:$0xfc] %v3019
        %3084 = vst [vmem:[%s630 + $0x10] sm:$0xfc] %v3020
        %3085 = vst [vmem:[%s630 + $0x18] sm:$0xfc] %v3021
        %3086 = vst [vmem:[%s630 + $0x20] sm:$0xfc] %v3022
        %3087 = vst [vmem:[%s630 + $0x28] sm:$0xfc] %v3023
        %3088 = vst [vmem:[%s630 + $0x30] sm:$0xfc] %v3024
        %3089 = vst [vmem:[%s630 + $0x38] sm:$0xfc] %v3025
        %3090 = vst [vmem:[%s630 + $0x40] sm:$0xff] %v3027
        %3091 = vst [vmem:[%s630 + $0x48] sm:$0xff] %v3029
        %3092 = vst [vmem:[%s630 + $0x50] sm:$0xff] %v3031
        %3093 = vst [vmem:[%s630 + $0x58] sm:$0xff] %v3033
        %3094 = vst [vmem:[%s630 + $0x60] sm:$0xff] %v3035
        %3095 = vst [vmem:[%s630 + $0x68] sm:$0xff] %v3037
        %3096 = vst [vmem:[%s630 + $0x70] sm:$0xff] %v3039
        %3097 = vst [vmem:[%s630 + $0x78] sm:$0xff] %v3041
        %3098 = vst [vmem:[%s630 + $0x80] sm:$0x3f] %v3043
        %3099 = vst [vmem:[%s630 + $0x88] sm:$0x3f] %v3045
        %3100 = vst [vmem:[%s630 + $0x90] sm:$0x3f] %v3047
        %3101 = vst [vmem:[%s630 + $0x98] sm:$0x3f] %v3049
        %3102 = vst [vmem:[%s630 + $0xa0] sm:$0x3f] %v3051
        %3103 = vst [vmem:[%s630 + $0xa8] sm:$0x3f] %v3053
        %3104 = vst [vmem:[%s630 + $0xb0] sm:$0x3f] %v3055
        %3105 = vst [vmem:[%s630 + $0xb8] sm:$0x3f] %v3057
        %v3106 = vld [vmem:[#allocation2] sm:$0x1]
        %v3108 = vlaneseq
        %v3109 = vshrl.u32 %v3108, 7
        %v3110 = vsub.s32 0, %v3109
        %v3111 = vrot.slane %v3106, %v3110
        %vm3113 = vcmask 7168
        %3114 = vst.msk [vmem:[%s661] sm:$0xff] %vm3113, %v3111
        %3115 = vst.msk [vmem:[%s661 + $0x8] sm:$0xff] %vm3113, %v3111
        %3116 = vst.msk [vmem:[%s661 + $0x10] sm:$0xff] %vm3113, %v3111
        %vm3117 = vcmask 1024
        %3118 = vst.msk [vmem:[%s661 + $0x18] sm:$0x3] %vm3117, %v3111
        %v3119 = vld [vmem:[%s630] sm:$0xff]
        %v3120 = vld [vmem:[%s630 + $0x8] sm:$0xff]
        %v3121 = vld [vmem:[%s630 + $0x10] sm:$0xff]
        %v3122 = vld [vmem:[%s630 + $0x18] sm:$0xff]
        %v3123 = vld [vmem:[%s630 + $0x20] sm:$0xff]
        %v3124 = vld [vmem:[%s630 + $0x28] sm:$0xff]
        %v3125 = vld [vmem:[%s630 + $0x30] sm:$0xff]
        %v3126 = vld [vmem:[%s630 + $0x38] sm:$0xff]
        %v3127 = vld [vmem:[%s630 + $0x40] sm:$0xff]
        %v3128 = vld [vmem:[%s630 + $0x48] sm:$0xff]
        %v3129 = vld [vmem:[%s630 + $0x50] sm:$0xff]
        %v3130 = vld [vmem:[%s630 + $0x58] sm:$0xff]
        %v3131 = vld [vmem:[%s630 + $0x60] sm:$0xff]
        %v3132 = vld [vmem:[%s630 + $0x68] sm:$0xff]
        %v3133 = vld [vmem:[%s630 + $0x70] sm:$0xff]
        %v3134 = vld [vmem:[%s630 + $0x78] sm:$0xff]
        %v3135 = vld [vmem:[%s630 + $0x80] sm:$0xff]
        %v3136 = vld [vmem:[%s630 + $0x88] sm:$0xff]
        %v3137 = vld [vmem:[%s630 + $0x90] sm:$0xff]
        %v3138 = vld [vmem:[%s630 + $0x98] sm:$0xff]
        %v3139 = vld [vmem:[%s630 + $0xa0] sm:$0xff]
        %v3140 = vld [vmem:[%s630 + $0xa8] sm:$0xff]
        %v3141 = vld [vmem:[%s630 + $0xb0] sm:$0xff]
        %v3142 = vld [vmem:[%s630 + $0xb8] sm:$0xff]
        %v3143 = vmax.f32 %v3119, 0.0
        %v3144 = vmax.f32 %v3120, 0.0
        %v3145 = vmax.f32 %v3121, 0.0
        %v3146 = vmax.f32 %v3122, 0.0
        %v3147 = vmax.f32 %v3123, 0.0
        %v3148 = vmax.f32 %v3124, 0.0
        %v3149 = vmax.f32 %v3125, 0.0
        %v3150 = vmax.f32 %v3126, 0.0
        %v3151 = vmax.f32 %v3127, 0.0
        %v3152 = vmax.f32 %v3128, 0.0
        %v3153 = vmax.f32 %v3129, 0.0
        %v3154 = vmax.f32 %v3130, 0.0
        %v3155 = vmax.f32 %v3131, 0.0
        %v3156 = vmax.f32 %v3132, 0.0
        %v3157 = vmax.f32 %v3133, 0.0
        %v3158 = vmax.f32 %v3134, 0.0
        %v3159 = vmax.f32 %v3135, 0.0
        %v3160 = vmax.f32 %v3136, 0.0
        %v3161 = vmax.f32 %v3137, 0.0
        %v3162 = vmax.f32 %v3138, 0.0
        %v3163 = vmax.f32 %v3139, 0.0
        %v3164 = vmax.f32 %v3140, 0.0
        %v3165 = vmax.f32 %v3141, 0.0
        %v3166 = vmax.f32 %v3142, 0.0
        %v3167 = vld [vmem:[%s11] sm:$0xff]
        %v3169 = vlaneseq
        %v3170 = vshrl.u32 %v3169, 7
        %v3171 = vsub.s32 0, %v3170
        %v3172 = vrot.slane %v3167, %v3171
        %v3173 = vlaneseq
        %v3174 = vshrl.u32 %v3173, 7
        %v3175 = vsub.s32 1, %v3174
        %v3176 = vrot.slane %v3167, %v3175
        %v3177 = vlaneseq
        %v3178 = vshrl.u32 %v3177, 7
        %v3179 = vsub.s32 2, %v3178
        %v3180 = vrot.slane %v3167, %v3179
        %v3181 = vlaneseq
        %v3182 = vshrl.u32 %v3181, 7
        %v3183 = vsub.s32 3, %v3182
        %v3184 = vrot.slane %v3167, %v3183
        %v3185 = vlaneseq
        %v3186 = vshrl.u32 %v3185, 7
        %v3187 = vsub.s32 4, %v3186
        %v3188 = vrot.slane %v3167, %v3187
        %v3189 = vlaneseq
        %v3190 = vshrl.u32 %v3189, 7
        %v3191 = vsub.s32 5, %v3190
        %v3192 = vrot.slane %v3167, %v3191
        %v3193 = vlaneseq
        %v3194 = vshrl.u32 %v3193, 7
        %v3195 = vsub.s32 6, %v3194
        %v3196 = vrot.slane %v3167, %v3195
        %v3197 = vlaneseq
        %v3198 = vshrl.u32 %v3197, 7
        %v3199 = vsub.s32 7, %v3198
        %v3200 = vrot.slane %v3167, %v3199
        %v3209 = vmul.f32 %v3143, %v3172
        %v3210 = vmul.f32 %v3144, %v3176
        %v3211 = vmul.f32 %v3145, %v3180
        %v3212 = vmul.f32 %v3146, %v3184
        %v3213 = vmul.f32 %v3147, %v3188
        %v3214 = vmul.f32 %v3148, %v3192
        %v3215 = vmul.f32 %v3149, %v3196
        %v3216 = vmul.f32 %v3150, %v3200
        %v3217 = vmul.f32 %v3151, %v3172
        %v3218 = vmul.f32 %v3152, %v3176
        %v3219 = vmul.f32 %v3153, %v3180
        %v3220 = vmul.f32 %v3154, %v3184
        %v3221 = vmul.f32 %v3155, %v3188
        %v3222 = vmul.f32 %v3156, %v3192
        %v3223 = vmul.f32 %v3157, %v3196
        %v3224 = vmul.f32 %v3158, %v3200
        %v3225 = vmul.f32 %v3159, %v3172
        %v3226 = vmul.f32 %v3160, %v3176
        %v3227 = vmul.f32 %v3161, %v3180
        %v3228 = vmul.f32 %v3162, %v3184
        %v3229 = vmul.f32 %v3163, %v3188
        %v3230 = vmul.f32 %v3164, %v3192
        %v3231 = vmul.f32 %v3165, %v3196
        %v3232 = vmul.f32 %v3166, %v3200
        %v3233 = vadd.f32 %v3209, %v3210
        %v3234 = vadd.f32 %v3233, %v3211
        %v3235 = vadd.f32 %v3234, %v3212
        %v3236 = vadd.f32 %v3235, %v3213
        %v3237 = vadd.f32 %v3236, %v3214
        %v3238 = vadd.f32 %v3237, %v3215
        %v3239 = vadd.f32 %v3238, %v3216
        %3240 = vadd.xlane.f32.xlu0 %v3239
        %v3241 = vpop.xlane.xlu0 %3240
        %v3242 = vadd.f32 %v3217, %v3218
        %v3243 = vadd.f32 %v3242, %v3219
        %v3244 = vadd.f32 %v3243, %v3220
        %v3245 = vadd.f32 %v3244, %v3221
        %v3246 = vadd.f32 %v3245, %v3222
        %v3247 = vadd.f32 %v3246, %v3223
        %v3248 = vadd.f32 %v3247, %v3224
        %3249 = vadd.xlane.f32.xlu0 %v3248
        %v3250 = vpop.xlane.xlu0 %3249
        %v3251 = vadd.f32 %v3225, %v3226
        %v3252 = vadd.f32 %v3251, %v3227
        %v3253 = vadd.f32 %v3252, %v3228
        %v3254 = vadd.f32 %v3253, %v3229
        %v3255 = vadd.f32 %v3254, %v3230
        %v3256 = vadd.f32 %v3255, %v3231
        %v3257 = vadd.f32 %v3256, %v3232
        %3258 = vadd.xlane.f32.xlu0 %v3257
        %v3259 = vpop.xlane.xlu0 %3258
        %v3260 = vadd.f32 %v3241, %v3111
        %v3261 = vadd.f32 %v3250, %v3111
        %v3262 = vadd.f32 %v3259, %v3111
        %3263 = vst.msk [vmem:[%s661 + $0x1] sm:$0xff] %vm3113, %v3260
        %3264 = vst.msk [vmem:[%s661 + $0x9] sm:$0xff] %vm3113, %v3261
        %3265 = vst.msk [vmem:[%s661 + $0x11] sm:$0xff] %vm3113, %v3262
        %p3266 = scmp.lt.s32.totalorder %s40, 1
        %s3267 = scalar_select %p3266, %s40, 1
        %s3268 = smul.addr %s3267, 8
        %s3269 = smul.addr %s3268, 8
        %s3270 = scalar_lea.vmem %s13, %s3269
        %p3271 = scmp.lt.s32.totalorder %s40, 1
        %s3272 = scalar_select %p3271, %s40, 1
        %s3273 = smul.addr %s3272, 5
        %s3274 = smul.addr %s3273, 8
        %s3275 = scalar_lea.vmem %s14, %s3274
        %s3276 = sand.u32 %s378, 1
        %s3277 = scalar_lea.sflag [#allocation5], %s3276
        %s3278 = sand.u32 %s378, 1
        %s3279 = smul.addr %s3278, 16
        %s3280 = scalar_lea.vmem [#allocation8], %s3279
        %p3281 = scmp.lt.s32.totalorder %s40, 1
        %s3282 = scalar_select %p3281, %s40, 1
        %s3283 = smul.addr %s3282, 6
        %s3284 = smul.addr %s3283, 8
        %s3285 = scalar_lea.vmem %s16, %s3284
        %s3286 = sand.u32 %s430, 1
        %s3287 = scalar_lea.sflag [#allocation10], %s3286
        %s3288 = sand.u32 %s430, 1
        %s3289 = smul.addr %s3288, 192
        %s3290 = scalar_lea.vmem [#allocation9], %s3289
        %p3291 = scmp.lt.s32.totalorder %s40, 1
        %s3292 = scalar_select %p3291, %s40, 1
        %s3293 = smul.addr %s3292, 4
        %s3294 = smul.addr %s3293, 8
        %s3295 = scalar_lea.vmem %s18, %s3294
        // Predicated region
        $region81: #{tpu_custom_call.1} parent=71 // pred_check
          %p3296 = pneg %p336
        $region82: #{tpu_custom_call.1} parent=71 // pred_check_branch
          %3298 = sbr.rel (%p3296) target = $region84
        $region83: #{tpu_custom_call.1} parent=71 // pred_region
          _
        $region84: #{tpu_custom_call.1} parent=71 // pred_fallthru
          _
        // Predicated region
        $region85: #{tpu_custom_call.1} parent=71 // pred_check
          %p3299 = pneg %p362
        $region86: #{tpu_custom_call.1} parent=71 // pred_check_branch
          %3301 = sbr.rel (%p3299) target = $region88
        $region87: #{tpu_custom_call.1} parent=71 // pred_region
          _
        $region88: #{tpu_custom_call.1} parent=71 // pred_fallthru
          _
        // Predicated region
        $region89: #{tpu_custom_call.1} parent=71 // pred_check
          %p3302 = pneg %p388
        $region90: #{tpu_custom_call.1} parent=71 // pred_check_branch
          %3304 = sbr.rel (%p3302) target = $region92
        $region91: #{tpu_custom_call.1} parent=71 // pred_region
          %s3306 = ssub.s32 256, 256
          %3307 = vsyncadd %s3277, %s3306
          %s3308 = smul.addr %s40, 2
          %s3309 = smul.addr %s3308, 128
          %s3310 = scalar_lea.hbm %s15, %s3309
          %s3311 = sshll.u32 %s3280, 4
          %s3312 = int_to_ptr.vmem [resolvable:$true] %s3311
          %3317 = dma.vmem_to_hbm [thread:$0]  %s3312, 256, %s3310, %s3277, 128, 128, 8
        $region92: #{tpu_custom_call.1} parent=71 // pred_fallthru
          _
        // Predicated region
        $region93: #{tpu_custom_call.1} parent=71 // pred_check
          %p3318 = pneg %p414
        $region94: #{tpu_custom_call.1} parent=71 // pred_check_branch
          %3320 = sbr.rel (%p3318) target = $region96
        $region95: #{tpu_custom_call.1} parent=71 // pred_region
          _
        $region96: #{tpu_custom_call.1} parent=71 // pred_fallthru
          _
        // Predicated region
        $region97: #{tpu_custom_call.1} parent=71 // pred_check
          %p3321 = pneg %p440
        $region98: #{tpu_custom_call.1} parent=71 // pred_check_branch
          %3323 = sbr.rel (%p3321) target = $region100
        $region99: #{tpu_custom_call.1} parent=71 // pred_region
          %s3325 = ssub.s32 3072, 3072
          %3326 = vsyncadd %s3287, %s3325
          %s3327 = smul.addr %s40, 24
          %s3328 = smul.addr %s3327, 128
          %s3329 = scalar_lea.hbm %s17, %s3328
          %s3330 = sshll.u32 %s3290, 4
          %s3331 = int_to_ptr.vmem [resolvable:$true] %s3330
          %3336 = dma.vmem_to_hbm [thread:$0]  %s3331, 3072, %s3329, %s3287, 1024, 1024, 64
        $region100: #{tpu_custom_call.1} parent=71 // pred_fallthru
          _
        // Predicated region
        $region101: #{tpu_custom_call.1} parent=71 // pred_check
          %p3337 = pneg %p466
        $region102: #{tpu_custom_call.1} parent=71 // pred_check_branch
          %3339 = sbr.rel (%p3337) target = $region104
        $region103: #{tpu_custom_call.1} parent=71 // pred_region
          _
        $region104: #{tpu_custom_call.1} parent=71 // pred_fallthru
          _
      $region72: #{tpu_custom_call.1} parent=5 // pred_fallthru
        _
      %p3340 = scmp.le.s32.totalorder 2, %s35
      // Predicated region
      $region105: #{tpu_custom_call.1} parent=5 // pred_check
        %p3341 = pneg %p3340
      $region106: #{tpu_custom_call.1} parent=5 // pred_check_branch
        %3343 = sbr.rel (%p3341) target = $region108
      $region107: #{tpu_custom_call.1} parent=5 // pred_region
        %s3344 = ssub.s32 %s35, 2
        // Predicated region
        $region109: #{tpu_custom_call.1} parent=107 // pred_check
          %p3345 = pneg %p342
        $region110: #{tpu_custom_call.1} parent=107 // pred_check_branch
          %3347 = sbr.rel (%p3345) target = $region112
        $region111: #{tpu_custom_call.1} parent=107 // pred_region
          %p3348 = scmp.lt.s32.totalorder %s41, 1
          %s3349 = scalar_select %p3348, %s41, 1
          %s3350 = smul.addr %s3349, 8
          %s3351 = smul.addr %s3350, 8
          %s3352 = scalar_lea.vmem %s13, %s3351
        $region112: #{tpu_custom_call.1} parent=107 // pred_fallthru
          _
        // Predicated region
        $region113: #{tpu_custom_call.1} parent=107 // pred_check
          %p3353 = pneg %p368
        $region114: #{tpu_custom_call.1} parent=107 // pred_check_branch
          %3355 = sbr.rel (%p3353) target = $region116
        $region115: #{tpu_custom_call.1} parent=107 // pred_region
          %p3356 = scmp.lt.s32.totalorder %s41, 1
          %s3357 = scalar_select %p3356, %s41, 1
          %s3358 = smul.addr %s3357, 5
          %s3359 = smul.addr %s3358, 8
          %s3360 = scalar_lea.vmem %s14, %s3359
        $region116: #{tpu_custom_call.1} parent=107 // pred_fallthru
          _
        // Predicated region
        $region117: #{tpu_custom_call.1} parent=107 // pred_check
          %p3361 = pneg %p394
        $region118: #{tpu_custom_call.1} parent=107 // pred_check_branch
          %3363 = sbr.rel (%p3361) target = $region120
        $region119: #{tpu_custom_call.1} parent=107 // pred_region
          %s3364 = sand.u32 %s379, 1
          %s3365 = scalar_lea.sflag [#allocation5], %s3364
          %s3366 = sand.u32 %s379, 1
          %s3367 = smul.addr %s3366, 16
          %s3368 = scalar_lea.vmem [#allocation8], %s3367
          %3369 = dma.done %s3365, 256
        $region120: #{tpu_custom_call.1} parent=107 // pred_fallthru
          _
        // Predicated region
        $region121: #{tpu_custom_call.1} parent=107 // pred_check
          %p3370 = pneg %p420
        $region122: #{tpu_custom_call.1} parent=107 // pred_check_branch
          %3372 = sbr.rel (%p3370) target = $region124
        $region123: #{tpu_custom_call.1} parent=107 // pred_region
          %p3373 = scmp.lt.s32.totalorder %s41, 1
          %s3374 = scalar_select %p3373, %s41, 1
          %s3375 = smul.addr %s3374, 6
          %s3376 = smul.addr %s3375, 8
          %s3377 = scalar_lea.vmem %s16, %s3376
        $region124: #{tpu_custom_call.1} parent=107 // pred_fallthru
          _
        // Predicated region
        $region125: #{tpu_custom_call.1} parent=107 // pred_check
          %p3378 = pneg %p446
        $region126: #{tpu_custom_call.1} parent=107 // pred_check_branch
          %3380 = sbr.rel (%p3378) target = $region128
        $region127: #{tpu_custom_call.1} parent=107 // pred_region
          %s3381 = sand.u32 %s431, 1
          %s3382 = scalar_lea.sflag [#allocation10], %s3381
          %s3383 = sand.u32 %s431, 1
          %s3384 = smul.addr %s3383, 192
          %s3385 = scalar_lea.vmem [#allocation9], %s3384
          %3386 = dma.done %s3382, 3072
        $region128: #{tpu_custom_call.1} parent=107 // pred_fallthru
          _
        // Predicated region
        $region129: #{tpu_custom_call.1} parent=107 // pred_check
          %p3387 = pneg %p472
        $region130: #{tpu_custom_call.1} parent=107 // pred_check_branch
          %3389 = sbr.rel (%p3387) target = $region132
        $region131: #{tpu_custom_call.1} parent=107 // pred_region
          %p3390 = scmp.lt.s32.totalorder %s41, 1
          %s3391 = scalar_select %p3390, %s41, 1
          %s3392 = smul.addr %s3391, 4
          %s3393 = smul.addr %s3392, 8
          %s3394 = scalar_lea.vmem %s18, %s3393
        $region132: #{tpu_custom_call.1} parent=107 // pred_fallthru
          _
      $region108: #{tpu_custom_call.1} parent=5 // pred_fallthru
        _
    $region6: #{tpu_custom_call.1} parent=1 // loop_footer
      %s39 = sadd.s32 1, %s35
    $region7: #{tpu_custom_call.1} parent=1 // loop_footer_branch
      %34 = sbr.rel target = $region3
    $region8: #{tpu_custom_call.1} parent=1 // loop_exit
      _
    %3395 = vsyncpa [#allocation4], 1
    %s3396 = scalar_lea.sflag [#allocation4], 1
    %3397 = vsyncpa %s3396, 1
    %3398 = vsyncpa [#allocation7], 1
    %3399 = vsyncpa [#allocation5], 1
    %s3400 = scalar_lea.sflag [#allocation5], 1
    %3401 = vsyncpa %s3400, 1
    %3402 = vsyncpa [#allocation10], 1
    %s3403 = scalar_lea.sflag [#allocation10], 1
    %3404 = vsyncpa %s3403, 1

</llo_original>
